<compile_context>
chip_gen: v7x
topology: tpu7x:2x2x1
jax: 0.10.0
libtpu: 0.0.40
codegen_flags: <defaults>
</compile_context>

<pallas_src>
import math

import jax
import jax.numpy as jnp
import numpy as np
from jax.experimental import pallas as pl
from jax.experimental.pallas import tpu as pltpu


# ----------------------------------------------------------------------------
# Parameter initialization (deterministic, PyTorch-style uniform init)
# ----------------------------------------------------------------------------
def init_params(key, n_input=1, n_output=35, n_channel=17):
    c1, c2 = n_channel, 2 * n_channel
    ks = jax.random.split(key, 10)

    def uinit(k, shape, fan_in):
        bound = 1.0 / math.sqrt(fan_in)
        return jax.random.uniform(k, shape, jnp.float32, -bound, bound)

    return dict(
        w1=uinit(ks[0], (c1, n_input, 80), n_input * 80),
        b1=uinit(ks[1], (c1,), n_input * 80),
        w2=uinit(ks[2], (c1, c1, 3), c1 * 3),
        b2=uinit(ks[3], (c1,), c1 * 3),
        w3=uinit(ks[4], (c2, c1, 3), c1 * 3),
        b3=uinit(ks[5], (c2,), c1 * 3),
        w4=uinit(ks[6], (c2, c2, 3), c2 * 3),
        b4=uinit(ks[7], (c2,), c2 * 3),
        fw=uinit(ks[8], (n_output, c2), c2),
        fb=uinit(ks[9], (n_output,), c2),
    )


def _bn_fold(conv_bias, c, eps=1e-5):
    """Eval-mode BN (default running stats) -> per-out-channel scale + fused bias."""
    gamma = jnp.ones((c,), jnp.float32)
    beta = jnp.zeros((c,), jnp.float32)
    mean = jnp.zeros((c,), jnp.float32)
    var = jnp.ones((c,), jnp.float32)
    scale = gamma / jnp.sqrt(var + eps)
    bias = beta - mean * scale + conv_bias * scale
    return scale, bias.reshape(1, c)


def _row_chunks(total, chunk):
    """Static (start, size) pairs covering [0, total) in steps of `chunk`."""
    out, r = [], 0
    while r < total:
        out.append((r, min(chunk, total - r)))
        r += chunk
    return out


# ----------------------------------------------------------------------------
# Pallas forward
# ----------------------------------------------------------------------------
def m5_forward(x, params, n_output=35, n_channel=17, batch_block=None):
    B, cin, L = x.shape
    assert cin == 1 and L % 16 == 0
    C1, C2 = n_channel, 2 * n_channel

    # static shape pipeline (matches PyTorch floor semantics)
    T1 = (L - 80) // 16 + 1
    P1 = T1 // 4
    T2 = P1 - 2
    P2 = T2 // 4
    T3 = P2 - 2
    P3 = T3 // 4
    T4 = P3 - 2
    P4 = T4 // 4
    assert P4 >= 1, "input too short for M5"

    # ---- batch blocking: BB samples per grid step, >=2 grid steps when B >= 2 ----
    # (raise batch_block explicitly on single-core v5e/v6e; keep NB even on v7x)
    if batch_block is None:
        batch_block = min(8, max(1, B // 2)) if B > 1 else 1
    BB = int(batch_block)
    NB = -(-B // BB)
    B_pad = NB * BB

    BBT1 = BB * T1
    M2 = BB * P1 - 2          # conv2 rows computed per block (2 garbage rows/sample)
    M3 = BB * P2 - 2          # conv3 rows computed per block
    M4 = BB * P3 - 2          # conv4 rows computed per block
    CH = 192                  # row chunk for batched matmul/pool stages (vreg bound)

    NOUT = n_output
    NOUT_PAD = max(128, -(-NOUT // 128) * 128)   # lane-dense output columns

    # ---- wrapper glue: conv1 im2col (no lane pad), BN folding, weight repack ----
    xr = x.reshape(B, L // 16, 16)
    # window t, column q*16+r  <->  input sample 16*(t+q)+r  <=> kernel tap k = 16q+r
    patches = jnp.concatenate([xr[:, q:q + T1, :] for q in range(5)], axis=-1)  # (B,T1,80)
    patches = jnp.pad(patches, ((0, B_pad - B), (0, 0), (0, 0)))                # pad batch only
    xw = patches.reshape(NB, BBT1, 80)

    s1, bb1 = _bn_fold(params["b1"], C1)
    s2, bb2 = _bn_fold(params["b2"], C1)
    s3, bb3 = _bn_fold(params["b3"], C2)
    s4, bb4 = _bn_fold(params["b4"], C2)

    w1k = params["w1"].reshape(C1, 80).T * s1.reshape(1, C1)             # (80, C1), BN folded
    w2k = jnp.transpose(params["w2"], (2, 1, 0)) * s2.reshape(1, 1, C1)  # (3, C1, C1)
    w3k = jnp.transpose(params["w3"], (2, 1, 0)) * s3.reshape(1, 1, C2)  # (3, C1, C2)
    w4k = jnp.transpose(params["w4"], (2, 1, 0)) * s4.reshape(1, 1, C2)  # (3, C2, C2)
    fcw = jnp.pad(params["fw"].T, ((0, 0), (0, NOUT_PAD - NOUT)))        # (C2, 128)
    fcb = jnp.pad(params["fb"].reshape(1, NOUT),
                  ((0, 0), (0, NOUT_PAD - NOUT)), constant_values=-1e30) # (1, 128)

    f32 = jnp.float32

    def kernel(x_ref, w1_ref, w2_ref, w3_ref, w4_ref, fcw_ref, fcb_ref,
               b1_ref, b2_ref, b3_ref, b4_ref, out_ref,
               r1, p1_sc, r2, p2_sc, r3, p3_sc, feats_sc):
        # --- conv1 (k=80, stride=16) batched over the whole BB-sample block ---
        for r0, nr in _row_chunks(BBT1, CH):
            z = jnp.dot(x_ref[pl.ds(r0, nr), :], w1_ref[...],
                        preferred_element_type=f32)
            r1[pl.ds(r0, nr), :] = jnp.maximum(z + b1_ref[...], 0.0)

        # --- MaxPool1d(4) on conv1: batched when sample boundaries stay 4-aligned ---
        if T1 % 4 == 0:
            for w0, nw in _row_chunks(BB * P1, CH):
                q = r1[pl.ds(4 * w0, nw, stride=4), :]
                for k in range(1, 4):
                    q = jnp.maximum(q, r1[pl.ds(4 * w0 + k, nw, stride=4), :])
                p1_sc[pl.ds(w0, nw), :] = q
        else:
            for b in range(BB):   # fallback: per-sample pool (rarely taken)
                q = r1[pl.ds(b * T1, P1, stride=4), :]
                for k in range(1, 4):
                    q = jnp.maximum(q, r1[pl.ds(b * T1 + k, P1, stride=4), :])
                p1_sc[pl.ds(b * P1, P1), :] = q

        # --- conv2 (k=3) batched: 3 shifted matmuls over all samples' pooled rows.
        #     Rows that cross a sample boundary are computed but never read.
        for r0, nr in _row_chunks(M2, CH):
            z = jnp.dot(p1_sc[pl.ds(r0, nr), :], w2_ref[0], preferred_element_type=f32)
            for k in range(1, 3):
                z = z + jnp.dot(p1_sc[pl.ds(r0 + k, nr), :], w2_ref[k],
                                preferred_element_type=f32)
            r2[pl.ds(r0, nr), :] = jnp.maximum(z + b2_ref[...], 0.0)

        # --- pool2 per sample (tiny strided loads) ---
        for b in range(BB):
            q = r2[pl.ds(b * P1, P2, stride=4), :]
            for k in range(1, 4):
                q = jnp.maximum(q, r2[pl.ds(b * P1 + k, P2, stride=4), :])
            p2_sc[pl.ds(b * P2, P2), :] = q

        # --- conv3 (k=3) batched ---
        for r0, nr in _row_chunks(M3, CH):
            z = jnp.dot(p2_sc[pl.ds(r0, nr), :], w3_ref[0], preferred_element_type=f32)
            for k in range(1, 3):
                z = z + jnp.dot(p2_sc[pl.ds(r0 + k, nr), :], w3_ref[k],
                                preferred_element_type=f32)
            r3[pl.ds(r0, nr), :] = jnp.maximum(z + b3_ref[...], 0.0)

        # --- pool3 per sample ---
        for b in range(BB):
            q = r3[pl.ds(b * P2, P3, stride=4), :]
            for k in range(1, 4):
                q = jnp.maximum(q, r3[pl.ds(b * P2 + k, P3, stride=4), :])
            p3_sc[pl.ds(b * P3, P3), :] = q

        # --- conv4 (k=3) batched; small enough to keep in vregs ---
        z4 = jnp.dot(p3_sc[pl.ds(0, M4), :], w4_ref[0], preferred_element_type=f32)
        for k in range(1, 3):
            z4 = z4 + jnp.dot(p3_sc[pl.ds(k, M4), :], w4_ref[k],
                              preferred_element_type=f32)
        z4 = jnp.maximum(z4 + b4_ref[...], 0.0)

        # --- MaxPool1d(4) fused with the global average pool -> feats scratch ---
        for b in range(BB):
            acc = jnp.max(z4[b * P3:b * P3 + 4, :], axis=0, keepdims=True)
            for wi in range(1, P4):
                acc = acc + jnp.max(z4[b * P3 + 4 * wi:b * P3 + 4 * wi + 4, :],
                                    axis=0, keepdims=True)
            feats_sc[pl.ds(b, 1), :] = acc * (1.0 / P4)

        # --- fc + log_softmax, batched over BB samples (lane-dense 128 columns;
        #     padded logits carry bias -1e30 so the softmax ignores them) ---
        logits = (jnp.dot(feats_sc[...], fcw_ref[...], preferred_element_type=f32)
                  + fcb_ref[...])
        m = jnp.max(logits, axis=-1, keepdims=True)
        s = logits - m
        lse = jnp.log(jnp.sum(jnp.exp(s), axis=-1, keepdims=True))
        out_ref[...] = s - lse                                   # (BB, NOUT_PAD)

    out = pl.pallas_call(
        kernel,
        out_shape=jax.ShapeDtypeStruct((NB, BB, NOUT_PAD), f32),
        grid_spec=pltpu.PrefetchScalarGridSpec(
            num_scalar_prefetch=0,
            grid=(NB,),
            in_specs=[
                pl.BlockSpec((None, BBT1, 80), lambda i: (i, 0, 0)),  # im2col input block
                pl.BlockSpec((80, C1), lambda i: (0, 0)),
                pl.BlockSpec((3, C1, C1), lambda i: (0, 0, 0)),
                pl.BlockSpec((3, C1, C2), lambda i: (0, 0, 0)),
                pl.BlockSpec((3, C2, C2), lambda i: (0, 0, 0)),
                pl.BlockSpec((C2, NOUT_PAD), lambda i: (0, 0)),
                pl.BlockSpec((1, NOUT_PAD), lambda i: (0, 0)),
                pl.BlockSpec((1, C1), lambda i: (0, 0)),
                pl.BlockSpec((1, C1), lambda i: (0, 0)),
                pl.BlockSpec((1, C2), lambda i: (0, 0)),
                pl.BlockSpec((1, C2), lambda i: (0, 0)),
            ],
            out_specs=pl.BlockSpec((None, BB, NOUT_PAD), lambda i: (i, 0, 0)),
            scratch_shapes=[
                pltpu.VMEM((BBT1, C1), f32),      # r1: conv1+relu (whole block)
                pltpu.VMEM((BB * P1, C1), f32),   # p1: pool1 output
                pltpu.VMEM((M2, C1), f32),        # r2: conv2+relu
                pltpu.VMEM((BB * P2, C1), f32),   # p2: pool2 output
                pltpu.VMEM((M3, C2), f32),        # r3: conv3+relu
                pltpu.VMEM((BB * P3, C2), f32),   # p3: pool3 output
                pltpu.VMEM((BB, C2), f32),        # feats
            ],
        ),
        compiler_params=pltpu.CompilerParams(dimension_semantics=("parallel",)),
    )(xw, w1k, w2k, w3k, w4k, fcw, fcb, bb1, bb2, bb3, bb4)

    out = out.reshape(B_pad, NOUT_PAD)[:B, :NOUT]
    return out.reshape(B, 1, NOUT)


# ----------------------------------------------------------------------------
# Plain-JAX reference (independent implementation, eval-mode BN)
# ----------------------------------------------------------------------------
def ref_forward(x, p, eps=1e-5):
    def conv(x, w, b, stride=1):
        y = jax.lax.conv_general_dilated(
            x, w, (stride,), "VALID", dimension_numbers=("NCH", "OIH", "NCH"))
        return y + b[None, :, None]

    def bn_relu(x):
        y = x / jnp.sqrt(1.0 + eps)  # gamma=1, beta=0, mean=0, var=1
        return jnp.maximum(y, 0.0)

    def pool(x, k=4):
        B, C, T = x.shape
        T2 = T // k
        return jnp.max(x[:, :, :T2 * k].reshape(B, C, T2, k), axis=-1)

    x = pool(bn_relu(conv(x, p["w1"], p["b1"], 16)))
    x = pool(bn_relu(conv(x, p["w2"], p["b2"])))
    x = pool(bn_relu(conv(x, p["w3"], p["b3"])))
    x = pool(bn_relu(conv(x, p["w4"], p["b4"])))
    x = jnp.mean(x, axis=-1, keepdims=True)          # avg_pool1d(x, x.shape[-1])
    x = jnp.transpose(x, (0, 2, 1))                  # (B, 1, C2)
    x = x @ p["fw"].T + p["fb"]
    return jax.nn.log_softmax(x, axis=2)


if __name__ == "__main__":
    key = jax.random.PRNGKey(0)
    pkey, xkey = jax.random.split(key)
    params = init_params(pkey)

    B, L = 4, 8000  # small 1-second 8 kHz waveforms, batch of 4 (2 samples per grid step)
    x = jax.random.normal(xkey, (B, 1, L), jnp.float32)

    out = m5_forward(x, params)
    out = jax.block_until_ready(out)
    assert out.shape == (B, 1, 35), out.shape

    ref = ref_forward(x, params)
    np.testing.assert_allclose(np.asarray(out), np.asarray(ref), atol=1e-4, rtol=1e-4)

    print("KERNEL_OK")
</pallas_src>

<mosaic_0001>
module attributes {stable_mosaic.version = 11 : i64} {
  func.func @kernel(%arg0: i32, %arg1: memref<1x992x80xf32, #tpu.memory_space<vmem>>, %arg2: memref<80x17xf32, #tpu.memory_space<vmem>>, %arg3: memref<3x17x17xf32, #tpu.memory_space<vmem>>, %arg4: memref<3x17x34xf32, #tpu.memory_space<vmem>>, %arg5: memref<3x34x34xf32, #tpu.memory_space<vmem>>, %arg6: memref<34x128xf32, #tpu.memory_space<vmem>>, %arg7: memref<1x128xf32, #tpu.memory_space<vmem>>, %arg8: memref<1x17xf32, #tpu.memory_space<vmem>>, %arg9: memref<1x17xf32, #tpu.memory_space<vmem>>, %arg10: memref<1x34xf32, #tpu.memory_space<vmem>>, %arg11: memref<1x34xf32, #tpu.memory_space<vmem>>, %arg12: memref<1x2x128xf32, #tpu.memory_space<vmem>>, %arg13: memref<992x17xf32, #tpu.memory_space<vmem>>, %arg14: memref<248x17xf32, #tpu.memory_space<vmem>>, %arg15: memref<246x17xf32, #tpu.memory_space<vmem>>, %arg16: memref<60x17xf32, #tpu.memory_space<vmem>>, %arg17: memref<58x34xf32, #tpu.memory_space<vmem>>, %arg18: memref<14x34xf32, #tpu.memory_space<vmem>>, %arg19: memref<2x34xf32, #tpu.memory_space<vmem>>) attributes {dimension_semantics = [#tpu.dimension_semantics<parallel>], iteration_bounds = array<i64: 2>, scalar_prefetch = 0 : i64, scratch_operands = 7 : i64, tpu.core_type = #tpu.core_type<tc>, window_params = [{transform_indices = @transform_0, window_bounds = array<i64: 1, 992, 80>}, {pipeline_mode = #tpu.pipeline_mode<synchronous>, transform_indices = @transform_1, window_bounds = array<i64: 80, 17>}, {pipeline_mode = #tpu.pipeline_mode<synchronous>, transform_indices = @transform_2, window_bounds = array<i64: 3, 17, 17>}, {pipeline_mode = #tpu.pipeline_mode<synchronous>, transform_indices = @transform_3, window_bounds = array<i64: 3, 17, 34>}, {pipeline_mode = #tpu.pipeline_mode<synchronous>, transform_indices = @transform_4, window_bounds = array<i64: 3, 34, 34>}, {pipeline_mode = #tpu.pipeline_mode<synchronous>, transform_indices = @transform_5, window_bounds = array<i64: 34, 128>}, {pipeline_mode = #tpu.pipeline_mode<synchronous>, transform_indices = @transform_6, window_bounds = array<i64: 1, 128>}, {pipeline_mode = #tpu.pipeline_mode<synchronous>, transform_indices = @transform_7, window_bounds = array<i64: 1, 17>}, {pipeline_mode = #tpu.pipeline_mode<synchronous>, transform_indices = @transform_8, window_bounds = array<i64: 1, 17>}, {pipeline_mode = #tpu.pipeline_mode<synchronous>, transform_indices = @transform_9, window_bounds = array<i64: 1, 34>}, {pipeline_mode = #tpu.pipeline_mode<synchronous>, transform_indices = @transform_10, window_bounds = array<i64: 1, 34>}, {transform_indices = @transform_11, window_bounds = array<i64: 1, 2, 128>}]} {
    %c0 = arith.constant 0 : index
    %c0_0 = arith.constant 0 : index
    %c0_1 = arith.constant 0 : index
    %0 = vector.load %arg1[%c0, %c0_0, %c0_1] : memref<1x992x80xf32, #tpu.memory_space<vmem>>, vector<1x192x80xf32>
    %1 = vector.shape_cast %0 : vector<1x192x80xf32> to vector<192x80xf32>
    %c0_2 = arith.constant 0 : index
    %c0_3 = arith.constant 0 : index
    %2 = vector.load %arg2[%c0_2, %c0_3] : memref<80x17xf32, #tpu.memory_space<vmem>>, vector<80x17xf32>
    %cst = arith.constant dense<0.000000e+00> : vector<192x17xf32>
    %3 = tpu.matmul %1, %2, %cst {dimension_numbers = #tpu.dot_dimension_numbers<[1], [0], [0], [1], [0, 0, 1, 1], [], []>} : vector<192x80xf32>, vector<80x17xf32>, vector<192x17xf32> -> vector<192x17xf32>
    %c0_4 = arith.constant 0 : index
    %c0_5 = arith.constant 0 : index
    %4 = vector.load %arg8[%c0_4, %c0_5] : memref<1x17xf32, #tpu.memory_space<vmem>>, vector<1x17xf32>
    %5 = vector.broadcast %4 : vector<1x17xf32> to vector<192x17xf32>
    %6 = arith.addf %3, %5 : vector<192x17xf32>
    %cst_6 = arith.constant 0.000000e+00 : f32
    %7 = vector.broadcast %cst_6 : f32 to vector<192x17xf32>
    %8 = arith.maximumf %6, %7 : vector<192x17xf32>
    %c0_7 = arith.constant 0 : index
    %c0_8 = arith.constant 0 : index
    %9 = vector.load %arg13[%c0_7, %c0_8] : memref<992x17xf32, #tpu.memory_space<vmem>>, vector<192x17xf32>
    tpu.vector_store %arg13[%c0_7, %c0_8], %8 {strides = array<i32>} : memref<992x17xf32, #tpu.memory_space<vmem>>, vector<192x17xf32>,
    %c0_9 = arith.constant 0 : index
    %c192 = arith.constant 192 : index
    %c0_10 = arith.constant 0 : index
    %10 = vector.load %arg1[%c0_9, %c192, %c0_10] : memref<1x992x80xf32, #tpu.memory_space<vmem>>, vector<1x192x80xf32>
    %11 = vector.shape_cast %10 : vector<1x192x80xf32> to vector<192x80xf32>
    %c0_11 = arith.constant 0 : index
    %c0_12 = arith.constant 0 : index
    %12 = vector.load %arg2[%c0_11, %c0_12] : memref<80x17xf32, #tpu.memory_space<vmem>>, vector<80x17xf32>
    %cst_13 = arith.constant dense<0.000000e+00> : vector<192x17xf32>
    %13 = tpu.matmul %11, %12, %cst_13 {dimension_numbers = #tpu.dot_dimension_numbers<[1], [0], [0], [1], [0, 0, 1, 1], [], []>} : vector<192x80xf32>, vector<80x17xf32>, vector<192x17xf32> -> vector<192x17xf32>
    %c0_14 = arith.constant 0 : index
    %c0_15 = arith.constant 0 : index
    %14 = vector.load %arg8[%c0_14, %c0_15] : memref<1x17xf32, #tpu.memory_space<vmem>>, vector<1x17xf32>
    %15 = vector.broadcast %14 : vector<1x17xf32> to vector<192x17xf32>
    %16 = arith.addf %13, %15 : vector<192x17xf32>
    %cst_16 = arith.constant 0.000000e+00 : f32
    %17 = vector.broadcast %cst_16 : f32 to vector<192x17xf32>
    %18 = arith.maximumf %16, %17 : vector<192x17xf32>
    %c192_17 = arith.constant 192 : index
    %c0_18 = arith.constant 0 : index
    %19 = vector.load %arg13[%c192_17, %c0_18] : memref<992x17xf32, #tpu.memory_space<vmem>>, vector<192x17xf32>
    tpu.vector_store %arg13[%c192_17, %c0_18], %18 {strides = array<i32>} : memref<992x17xf32, #tpu.memory_space<vmem>>, vector<192x17xf32>,
    %c0_19 = arith.constant 0 : index
    %c384 = arith.constant 384 : index
    %c0_20 = arith.constant 0 : index
    %20 = vector.load %arg1[%c0_19, %c384, %c0_20] : memref<1x992x80xf32, #tpu.memory_space<vmem>>, vector<1x192x80xf32>
    %21 = vector.shape_cast %20 : vector<1x192x80xf32> to vector<192x80xf32>
    %c0_21 = arith.constant 0 : index
    %c0_22 = arith.constant 0 : index
    %22 = vector.load %arg2[%c0_21, %c0_22] : memref<80x17xf32, #tpu.memory_space<vmem>>, vector<80x17xf32>
    %cst_23 = arith.constant dense<0.000000e+00> : vector<192x17xf32>
    %23 = tpu.matmul %21, %22, %cst_23 {dimension_numbers = #tpu.dot_dimension_numbers<[1], [0], [0], [1], [0, 0, 1, 1], [], []>} : vector<192x80xf32>, vector<80x17xf32>, vector<192x17xf32> -> vector<192x17xf32>
    %c0_24 = arith.constant 0 : index
    %c0_25 = arith.constant 0 : index
    %24 = vector.load %arg8[%c0_24, %c0_25] : memref<1x17xf32, #tpu.memory_space<vmem>>, vector<1x17xf32>
    %25 = vector.broadcast %24 : vector<1x17xf32> to vector<192x17xf32>
    %26 = arith.addf %23, %25 : vector<192x17xf32>
    %cst_26 = arith.constant 0.000000e+00 : f32
    %27 = vector.broadcast %cst_26 : f32 to vector<192x17xf32>
    %28 = arith.maximumf %26, %27 : vector<192x17xf32>
    %c384_27 = arith.constant 384 : index
    %c0_28 = arith.constant 0 : index
    %29 = vector.load %arg13[%c384_27, %c0_28] : memref<992x17xf32, #tpu.memory_space<vmem>>, vector<192x17xf32>
    tpu.vector_store %arg13[%c384_27, %c0_28], %28 {strides = array<i32>} : memref<992x17xf32, #tpu.memory_space<vmem>>, vector<192x17xf32>,
    %c0_29 = arith.constant 0 : index
    %c576 = arith.constant 576 : index
    %c0_30 = arith.constant 0 : index
    %30 = vector.load %arg1[%c0_29, %c576, %c0_30] : memref<1x992x80xf32, #tpu.memory_space<vmem>>, vector<1x192x80xf32>
    %31 = vector.shape_cast %30 : vector<1x192x80xf32> to vector<192x80xf32>
    %c0_31 = arith.constant 0 : index
    %c0_32 = arith.constant 0 : index
    %32 = vector.load %arg2[%c0_31, %c0_32] : memref<80x17xf32, #tpu.memory_space<vmem>>, vector<80x17xf32>
    %cst_33 = arith.constant dense<0.000000e+00> : vector<192x17xf32>
    %33 = tpu.matmul %31, %32, %cst_33 {dimension_numbers = #tpu.dot_dimension_numbers<[1], [0], [0], [1], [0, 0, 1, 1], [], []>} : vector<192x80xf32>, vector<80x17xf32>, vector<192x17xf32> -> vector<192x17xf32>
    %c0_34 = arith.constant 0 : index
    %c0_35 = arith.constant 0 : index
    %34 = vector.load %arg8[%c0_34, %c0_35] : memref<1x17xf32, #tpu.memory_space<vmem>>, vector<1x17xf32>
    %35 = vector.broadcast %34 : vector<1x17xf32> to vector<192x17xf32>
    %36 = arith.addf %33, %35 : vector<192x17xf32>
    %cst_36 = arith.constant 0.000000e+00 : f32
    %37 = vector.broadcast %cst_36 : f32 to vector<192x17xf32>
    %38 = arith.maximumf %36, %37 : vector<192x17xf32>
    %c576_37 = arith.constant 576 : index
    %c0_38 = arith.constant 0 : index
    %39 = vector.load %arg13[%c576_37, %c0_38] : memref<992x17xf32, #tpu.memory_space<vmem>>, vector<192x17xf32>
    tpu.vector_store %arg13[%c576_37, %c0_38], %38 {strides = array<i32>} : memref<992x17xf32, #tpu.memory_space<vmem>>, vector<192x17xf32>,
    %c0_39 = arith.constant 0 : index
    %c768 = arith.constant 768 : index
    %c0_40 = arith.constant 0 : index
    %40 = vector.load %arg1[%c0_39, %c768, %c0_40] : memref<1x992x80xf32, #tpu.memory_space<vmem>>, vector<1x192x80xf32>
    %41 = vector.shape_cast %40 : vector<1x192x80xf32> to vector<192x80xf32>
    %c0_41 = arith.constant 0 : index
    %c0_42 = arith.constant 0 : index
    %42 = vector.load %arg2[%c0_41, %c0_42] : memref<80x17xf32, #tpu.memory_space<vmem>>, vector<80x17xf32>
    %cst_43 = arith.constant dense<0.000000e+00> : vector<192x17xf32>
    %43 = tpu.matmul %41, %42, %cst_43 {dimension_numbers = #tpu.dot_dimension_numbers<[1], [0], [0], [1], [0, 0, 1, 1], [], []>} : vector<192x80xf32>, vector<80x17xf32>, vector<192x17xf32> -> vector<192x17xf32>
    %c0_44 = arith.constant 0 : index
    %c0_45 = arith.constant 0 : index
    %44 = vector.load %arg8[%c0_44, %c0_45] : memref<1x17xf32, #tpu.memory_space<vmem>>, vector<1x17xf32>
    %45 = vector.broadcast %44 : vector<1x17xf32> to vector<192x17xf32>
    %46 = arith.addf %43, %45 : vector<192x17xf32>
    %cst_46 = arith.constant 0.000000e+00 : f32
    %47 = vector.broadcast %cst_46 : f32 to vector<192x17xf32>
    %48 = arith.maximumf %46, %47 : vector<192x17xf32>
    %c768_47 = arith.constant 768 : index
    %c0_48 = arith.constant 0 : index
    %49 = vector.load %arg13[%c768_47, %c0_48] : memref<992x17xf32, #tpu.memory_space<vmem>>, vector<192x17xf32>
    tpu.vector_store %arg13[%c768_47, %c0_48], %48 {strides = array<i32>} : memref<992x17xf32, #tpu.memory_space<vmem>>, vector<192x17xf32>,
    %c0_49 = arith.constant 0 : index
    %c960 = arith.constant 960 : index
    %c0_50 = arith.constant 0 : index
    %50 = vector.load %arg1[%c0_49, %c960, %c0_50] : memref<1x992x80xf32, #tpu.memory_space<vmem>>, vector<1x32x80xf32>
    %51 = vector.shape_cast %50 : vector<1x32x80xf32> to vector<32x80xf32>
    %c0_51 = arith.constant 0 : index
    %c0_52 = arith.constant 0 : index
    %52 = vector.load %arg2[%c0_51, %c0_52] : memref<80x17xf32, #tpu.memory_space<vmem>>, vector<80x17xf32>
    %cst_53 = arith.constant dense<0.000000e+00> : vector<32x17xf32>
    %53 = tpu.matmul %51, %52, %cst_53 {dimension_numbers = #tpu.dot_dimension_numbers<[1], [0], [0], [1], [0, 0, 1, 1], [], []>} : vector<32x80xf32>, vector<80x17xf32>, vector<32x17xf32> -> vector<32x17xf32>
    %c0_54 = arith.constant 0 : index
    %c0_55 = arith.constant 0 : index
    %54 = vector.load %arg8[%c0_54, %c0_55] : memref<1x17xf32, #tpu.memory_space<vmem>>, vector<1x17xf32>
    %55 = vector.broadcast %54 : vector<1x17xf32> to vector<32x17xf32>
    %56 = arith.addf %53, %55 : vector<32x17xf32>
    %cst_56 = arith.constant 0.000000e+00 : f32
    %57 = vector.broadcast %cst_56 : f32 to vector<32x17xf32>
    %58 = arith.maximumf %56, %57 : vector<32x17xf32>
    %c960_57 = arith.constant 960 : index
    %c0_58 = arith.constant 0 : index
    %59 = vector.load %arg13[%c960_57, %c0_58] : memref<992x17xf32, #tpu.memory_space<vmem>>, vector<32x17xf32>
    tpu.vector_store %arg13[%c960_57, %c0_58], %58 {strides = array<i32>} : memref<992x17xf32, #tpu.memory_space<vmem>>, vector<32x17xf32>,
    %c0_59 = arith.constant 0 : index
    %c0_60 = arith.constant 0 : index
    %60 = tpu.strided_load %arg13[%c0_59, %c0_60] {strides = array<i32: 4, 1>} : memref<992x17xf32, #tpu.memory_space<vmem>>, vector<192x17xf32>
    %c1 = arith.constant 1 : index
    %c0_61 = arith.constant 0 : index
    %61 = tpu.strided_load %arg13[%c1, %c0_61] {strides = array<i32: 4, 1>} : memref<992x17xf32, #tpu.memory_space<vmem>>, vector<192x17xf32>
    %62 = arith.maximumf %60, %61 : vector<192x17xf32>
    %c2 = arith.constant 2 : index
    %c0_62 = arith.constant 0 : index
    %63 = tpu.strided_load %arg13[%c2, %c0_62] {strides = array<i32: 4, 1>} : memref<992x17xf32, #tpu.memory_space<vmem>>, vector<192x17xf32>
    %64 = arith.maximumf %62, %63 : vector<192x17xf32>
    %c3 = arith.constant 3 : index
    %c0_63 = arith.constant 0 : index
    %65 = tpu.strided_load %arg13[%c3, %c0_63] {strides = array<i32: 4, 1>} : memref<992x17xf32, #tpu.memory_space<vmem>>, vector<192x17xf32>
    %66 = arith.maximumf %64, %65 : vector<192x17xf32>
    %c0_64 = arith.constant 0 : index
    %c0_65 = arith.constant 0 : index
    %67 = vector.load %arg14[%c0_64, %c0_65] : memref<248x17xf32, #tpu.memory_space<vmem>>, vector<192x17xf32>
    tpu.vector_store %arg14[%c0_64, %c0_65], %66 {strides = array<i32>} : memref<248x17xf32, #tpu.memory_space<vmem>>, vector<192x17xf32>,
    %c768_66 = arith.constant 768 : index
    %c0_67 = arith.constant 0 : index
    %68 = tpu.strided_load %arg13[%c768_66, %c0_67] {strides = array<i32: 4, 1>} : memref<992x17xf32, #tpu.memory_space<vmem>>, vector<56x17xf32>
    %c769 = arith.constant 769 : index
    %c0_68 = arith.constant 0 : index
    %69 = tpu.strided_load %arg13[%c769, %c0_68] {strides = array<i32: 4, 1>} : memref<992x17xf32, #tpu.memory_space<vmem>>, vector<56x17xf32>
    %70 = arith.maximumf %68, %69 : vector<56x17xf32>
    %c770 = arith.constant 770 : index
    %c0_69 = arith.constant 0 : index
    %71 = tpu.strided_load %arg13[%c770, %c0_69] {strides = array<i32: 4, 1>} : memref<992x17xf32, #tpu.memory_space<vmem>>, vector<56x17xf32>
    %72 = arith.maximumf %70, %71 : vector<56x17xf32>
    %c771 = arith.constant 771 : index
    %c0_70 = arith.constant 0 : index
    %73 = tpu.strided_load %arg13[%c771, %c0_70] {strides = array<i32: 4, 1>} : memref<992x17xf32, #tpu.memory_space<vmem>>, vector<56x17xf32>
    %74 = arith.maximumf %72, %73 : vector<56x17xf32>
    %c192_71 = arith.constant 192 : index
    %c0_72 = arith.constant 0 : index
    %75 = vector.load %arg14[%c192_71, %c0_72] : memref<248x17xf32, #tpu.memory_space<vmem>>, vector<56x17xf32>
    tpu.vector_store %arg14[%c192_71, %c0_72], %74 {strides = array<i32>} : memref<248x17xf32, #tpu.memory_space<vmem>>, vector<56x17xf32>,
    %c0_73 = arith.constant 0 : index
    %c0_74 = arith.constant 0 : index
    %76 = vector.load %arg14[%c0_73, %c0_74] : memref<248x17xf32, #tpu.memory_space<vmem>>, vector<192x17xf32>
    %c0_75 = arith.constant 0 : index
    %c0_76 = arith.constant 0 : index
    %c0_77 = arith.constant 0 : index
    %77 = vector.load %arg3[%c0_75, %c0_76, %c0_77] : memref<3x17x17xf32, #tpu.memory_space<vmem>>, vector<1x17x17xf32>
    %78 = vector.shape_cast %77 : vector<1x17x17xf32> to vector<17x17xf32>
    %cst_78 = arith.constant dense<0.000000e+00> : vector<192x17xf32>
    %79 = tpu.matmul %76, %78, %cst_78 {dimension_numbers = #tpu.dot_dimension_numbers<[1], [0], [0], [1], [0, 0, 1, 1], [], []>} : vector<192x17xf32>, vector<17x17xf32>, vector<192x17xf32> -> vector<192x17xf32>
    %c1_79 = arith.constant 1 : index
    %c0_80 = arith.constant 0 : index
    %80 = vector.load %arg14[%c1_79, %c0_80] : memref<248x17xf32, #tpu.memory_space<vmem>>, vector<192x17xf32>
    %c1_81 = arith.constant 1 : index
    %c0_82 = arith.constant 0 : index
    %c0_83 = arith.constant 0 : index
    %81 = vector.load %arg3[%c1_81, %c0_82, %c0_83] : memref<3x17x17xf32, #tpu.memory_space<vmem>>, vector<1x17x17xf32>
    %82 = vector.shape_cast %81 : vector<1x17x17xf32> to vector<17x17xf32>
    %cst_84 = arith.constant dense<0.000000e+00> : vector<192x17xf32>
    %83 = tpu.matmul %80, %82, %cst_84 {dimension_numbers = #tpu.dot_dimension_numbers<[1], [0], [0], [1], [0, 0, 1, 1], [], []>} : vector<192x17xf32>, vector<17x17xf32>, vector<192x17xf32> -> vector<192x17xf32>
    %84 = arith.addf %79, %83 : vector<192x17xf32>
    %c2_85 = arith.constant 2 : index
    %c0_86 = arith.constant 0 : index
    %85 = vector.load %arg14[%c2_85, %c0_86] : memref<248x17xf32, #tpu.memory_space<vmem>>, vector<192x17xf32>
    %c2_87 = arith.constant 2 : index
    %c0_88 = arith.constant 0 : index
    %c0_89 = arith.constant 0 : index
    %86 = vector.load %arg3[%c2_87, %c0_88, %c0_89] : memref<3x17x17xf32, #tpu.memory_space<vmem>>, vector<1x17x17xf32>
    %87 = vector.shape_cast %86 : vector<1x17x17xf32> to vector<17x17xf32>
    %cst_90 = arith.constant dense<0.000000e+00> : vector<192x17xf32>
    %88 = tpu.matmul %85, %87, %cst_90 {dimension_numbers = #tpu.dot_dimension_numbers<[1], [0], [0], [1], [0, 0, 1, 1], [], []>} : vector<192x17xf32>, vector<17x17xf32>, vector<192x17xf32> -> vector<192x17xf32>
    %89 = arith.addf %84, %88 : vector<192x17xf32>
    %c0_91 = arith.constant 0 : index
    %c0_92 = arith.constant 0 : index
    %90 = vector.load %arg9[%c0_91, %c0_92] : memref<1x17xf32, #tpu.memory_space<vmem>>, vector<1x17xf32>
    %91 = vector.broadcast %90 : vector<1x17xf32> to vector<192x17xf32>
    %92 = arith.addf %89, %91 : vector<192x17xf32>
    %cst_93 = arith.constant 0.000000e+00 : f32
    %93 = vector.broadcast %cst_93 : f32 to vector<192x17xf32>
    %94 = arith.maximumf %92, %93 : vector<192x17xf32>
    %c0_94 = arith.constant 0 : index
    %c0_95 = arith.constant 0 : index
    %95 = vector.load %arg15[%c0_94, %c0_95] : memref<246x17xf32, #tpu.memory_space<vmem>>, vector<192x17xf32>
    tpu.vector_store %arg15[%c0_94, %c0_95], %94 {strides = array<i32>} : memref<246x17xf32, #tpu.memory_space<vmem>>, vector<192x17xf32>,
    %c192_96 = arith.constant 192 : index
    %c0_97 = arith.constant 0 : index
    %96 = vector.load %arg14[%c192_96, %c0_97] : memref<248x17xf32, #tpu.memory_space<vmem>>, vector<54x17xf32>
    %c0_98 = arith.constant 0 : index
    %c0_99 = arith.constant 0 : index
    %c0_100 = arith.constant 0 : index
    %97 = vector.load %arg3[%c0_98, %c0_99, %c0_100] : memref<3x17x17xf32, #tpu.memory_space<vmem>>, vector<1x17x17xf32>
    %98 = vector.shape_cast %97 : vector<1x17x17xf32> to vector<17x17xf32>
    %cst_101 = arith.constant dense<0.000000e+00> : vector<54x17xf32>
    %99 = tpu.matmul %96, %98, %cst_101 {dimension_numbers = #tpu.dot_dimension_numbers<[1], [0], [0], [1], [0, 0, 1, 1], [], []>} : vector<54x17xf32>, vector<17x17xf32>, vector<54x17xf32> -> vector<54x17xf32>
    %c193 = arith.constant 193 : index
    %c0_102 = arith.constant 0 : index
    %100 = vector.load %arg14[%c193, %c0_102] : memref<248x17xf32, #tpu.memory_space<vmem>>, vector<54x17xf32>
    %c1_103 = arith.constant 1 : index
    %c0_104 = arith.constant 0 : index
    %c0_105 = arith.constant 0 : index
    %101 = vector.load %arg3[%c1_103, %c0_104, %c0_105] : memref<3x17x17xf32, #tpu.memory_space<vmem>>, vector<1x17x17xf32>
    %102 = vector.shape_cast %101 : vector<1x17x17xf32> to vector<17x17xf32>
    %cst_106 = arith.constant dense<0.000000e+00> : vector<54x17xf32>
    %103 = tpu.matmul %100, %102, %cst_106 {dimension_numbers = #tpu.dot_dimension_numbers<[1], [0], [0], [1], [0, 0, 1, 1], [], []>} : vector<54x17xf32>, vector<17x17xf32>, vector<54x17xf32> -> vector<54x17xf32>
    %104 = arith.addf %99, %103 : vector<54x17xf32>
    %c194 = arith.constant 194 : index
    %c0_107 = arith.constant 0 : index
    %105 = vector.load %arg14[%c194, %c0_107] : memref<248x17xf32, #tpu.memory_space<vmem>>, vector<54x17xf32>
    %c2_108 = arith.constant 2 : index
    %c0_109 = arith.constant 0 : index
    %c0_110 = arith.constant 0 : index
    %106 = vector.load %arg3[%c2_108, %c0_109, %c0_110] : memref<3x17x17xf32, #tpu.memory_space<vmem>>, vector<1x17x17xf32>
    %107 = vector.shape_cast %106 : vector<1x17x17xf32> to vector<17x17xf32>
    %cst_111 = arith.constant dense<0.000000e+00> : vector<54x17xf32>
    %108 = tpu.matmul %105, %107, %cst_111 {dimension_numbers = #tpu.dot_dimension_numbers<[1], [0], [0], [1], [0, 0, 1, 1], [], []>} : vector<54x17xf32>, vector<17x17xf32>, vector<54x17xf32> -> vector<54x17xf32>
    %109 = arith.addf %104, %108 : vector<54x17xf32>
    %c0_112 = arith.constant 0 : index
    %c0_113 = arith.constant 0 : index
    %110 = vector.load %arg9[%c0_112, %c0_113] : memref<1x17xf32, #tpu.memory_space<vmem>>, vector<1x17xf32>
    %111 = vector.broadcast %110 : vector<1x17xf32> to vector<54x17xf32>
    %112 = arith.addf %109, %111 : vector<54x17xf32>
    %cst_114 = arith.constant 0.000000e+00 : f32
    %113 = vector.broadcast %cst_114 : f32 to vector<54x17xf32>
    %114 = arith.maximumf %112, %113 : vector<54x17xf32>
    %c192_115 = arith.constant 192 : index
    %c0_116 = arith.constant 0 : index
    %115 = vector.load %arg15[%c192_115, %c0_116] : memref<246x17xf32, #tpu.memory_space<vmem>>, vector<54x17xf32>
    tpu.vector_store %arg15[%c192_115, %c0_116], %114 {strides = array<i32>} : memref<246x17xf32, #tpu.memory_space<vmem>>, vector<54x17xf32>,
    %c0_117 = arith.constant 0 : index
    %c0_118 = arith.constant 0 : index
    %116 = tpu.strided_load %arg15[%c0_117, %c0_118] {strides = array<i32: 4, 1>} : memref<246x17xf32, #tpu.memory_space<vmem>>, vector<30x17xf32>
    %c1_119 = arith.constant 1 : index
    %c0_120 = arith.constant 0 : index
    %117 = tpu.strided_load %arg15[%c1_119, %c0_120] {strides = array<i32: 4, 1>} : memref<246x17xf32, #tpu.memory_space<vmem>>, vector<30x17xf32>
    %118 = arith.maximumf %116, %117 : vector<30x17xf32>
    %c2_121 = arith.constant 2 : index
    %c0_122 = arith.constant 0 : index
    %119 = tpu.strided_load %arg15[%c2_121, %c0_122] {strides = array<i32: 4, 1>} : memref<246x17xf32, #tpu.memory_space<vmem>>, vector<30x17xf32>
    %120 = arith.maximumf %118, %119 : vector<30x17xf32>
    %c3_123 = arith.constant 3 : index
    %c0_124 = arith.constant 0 : index
    %121 = tpu.strided_load %arg15[%c3_123, %c0_124] {strides = array<i32: 4, 1>} : memref<246x17xf32, #tpu.memory_space<vmem>>, vector<30x17xf32>
    %122 = arith.maximumf %120, %121 : vector<30x17xf32>
    %c0_125 = arith.constant 0 : index
    %c0_126 = arith.constant 0 : index
    %123 = vector.load %arg16[%c0_125, %c0_126] : memref<60x17xf32, #tpu.memory_space<vmem>>, vector<30x17xf32>
    tpu.vector_store %arg16[%c0_125, %c0_126], %122 {strides = array<i32>} : memref<60x17xf32, #tpu.memory_space<vmem>>, vector<30x17xf32>,
    %c124 = arith.constant 124 : index
    %c0_127 = arith.constant 0 : index
    %124 = tpu.strided_load %arg15[%c124, %c0_127] {strides = array<i32: 4, 1>} : memref<246x17xf32, #tpu.memory_space<vmem>>, vector<30x17xf32>
    %c125 = arith.constant 125 : index
    %c0_128 = arith.constant 0 : index
    %125 = tpu.strided_load %arg15[%c125, %c0_128] {strides = array<i32: 4, 1>} : memref<246x17xf32, #tpu.memory_space<vmem>>, vector<30x17xf32>
    %126 = arith.maximumf %124, %125 : vector<30x17xf32>
    %c126 = arith.constant 126 : index
    %c0_129 = arith.constant 0 : index
    %127 = tpu.strided_load %arg15[%c126, %c0_129] {strides = array<i32: 4, 1>} : memref<246x17xf32, #tpu.memory_space<vmem>>, vector<30x17xf32>
    %128 = arith.maximumf %126, %127 : vector<30x17xf32>
    %c127 = arith.constant 127 : index
    %c0_130 = arith.constant 0 : index
    %129 = tpu.strided_load %arg15[%c127, %c0_130] {strides = array<i32: 4, 1>} : memref<246x17xf32, #tpu.memory_space<vmem>>, vector<30x17xf32>
    %130 = arith.maximumf %128, %129 : vector<30x17xf32>
    %c30 = arith.constant 30 : index
    %c0_131 = arith.constant 0 : index
    %131 = vector.load %arg16[%c30, %c0_131] : memref<60x17xf32, #tpu.memory_space<vmem>>, vector<30x17xf32>
    tpu.vector_store %arg16[%c30, %c0_131], %130 {strides = array<i32>} : memref<60x17xf32, #tpu.memory_space<vmem>>, vector<30x17xf32>,
    %c0_132 = arith.constant 0 : index
    %c0_133 = arith.constant 0 : index
    %132 = vector.load %arg16[%c0_132, %c0_133] : memref<60x17xf32, #tpu.memory_space<vmem>>, vector<58x17xf32>
    %c0_134 = arith.constant 0 : index
    %c0_135 = arith.constant 0 : index
    %c0_136 = arith.constant 0 : index
    %133 = vector.load %arg4[%c0_134, %c0_135, %c0_136] : memref<3x17x34xf32, #tpu.memory_space<vmem>>, vector<1x17x34xf32>
    %134 = vector.shape_cast %133 : vector<1x17x34xf32> to vector<17x34xf32>
    %cst_137 = arith.constant dense<0.000000e+00> : vector<58x34xf32>
    %135 = tpu.matmul %132, %134, %cst_137 {dimension_numbers = #tpu.dot_dimension_numbers<[1], [0], [0], [1], [0, 0, 1, 1], [], []>} : vector<58x17xf32>, vector<17x34xf32>, vector<58x34xf32> -> vector<58x34xf32>
    %c1_138 = arith.constant 1 : index
    %c0_139 = arith.constant 0 : index
    %136 = vector.load %arg16[%c1_138, %c0_139] : memref<60x17xf32, #tpu.memory_space<vmem>>, vector<58x17xf32>
    %c1_140 = arith.constant 1 : index
    %c0_141 = arith.constant 0 : index
    %c0_142 = arith.constant 0 : index
    %137 = vector.load %arg4[%c1_140, %c0_141, %c0_142] : memref<3x17x34xf32, #tpu.memory_space<vmem>>, vector<1x17x34xf32>
    %138 = vector.shape_cast %137 : vector<1x17x34xf32> to vector<17x34xf32>
    %cst_143 = arith.constant dense<0.000000e+00> : vector<58x34xf32>
    %139 = tpu.matmul %136, %138, %cst_143 {dimension_numbers = #tpu.dot_dimension_numbers<[1], [0], [0], [1], [0, 0, 1, 1], [], []>} : vector<58x17xf32>, vector<17x34xf32>, vector<58x34xf32> -> vector<58x34xf32>
    %140 = arith.addf %135, %139 : vector<58x34xf32>
    %c2_144 = arith.constant 2 : index
    %c0_145 = arith.constant 0 : index
    %141 = vector.load %arg16[%c2_144, %c0_145] : memref<60x17xf32, #tpu.memory_space<vmem>>, vector<58x17xf32>
    %c2_146 = arith.constant 2 : index
    %c0_147 = arith.constant 0 : index
    %c0_148 = arith.constant 0 : index
    %142 = vector.load %arg4[%c2_146, %c0_147, %c0_148] : memref<3x17x34xf32, #tpu.memory_space<vmem>>, vector<1x17x34xf32>
    %143 = vector.shape_cast %142 : vector<1x17x34xf32> to vector<17x34xf32>
    %cst_149 = arith.constant dense<0.000000e+00> : vector<58x34xf32>
    %144 = tpu.matmul %141, %143, %cst_149 {dimension_numbers = #tpu.dot_dimension_numbers<[1], [0], [0], [1], [0, 0, 1, 1], [], []>} : vector<58x17xf32>, vector<17x34xf32>, vector<58x34xf32> -> vector<58x34xf32>
    %145 = arith.addf %140, %144 : vector<58x34xf32>
    %c0_150 = arith.constant 0 : index
    %c0_151 = arith.constant 0 : index
    %146 = vector.load %arg10[%c0_150, %c0_151] : memref<1x34xf32, #tpu.memory_space<vmem>>, vector<1x34xf32>
    %147 = vector.broadcast %146 : vector<1x34xf32> to vector<58x34xf32>
    %148 = arith.addf %145, %147 : vector<58x34xf32>
    %cst_152 = arith.constant 0.000000e+00 : f32
    %149 = vector.broadcast %cst_152 : f32 to vector<58x34xf32>
    %150 = arith.maximumf %148, %149 : vector<58x34xf32>
    %c0_153 = arith.constant 0 : index
    %c0_154 = arith.constant 0 : index
    %151 = vector.load %arg17[%c0_153, %c0_154] : memref<58x34xf32, #tpu.memory_space<vmem>>, vector<58x34xf32>
    tpu.vector_store %arg17[%c0_153, %c0_154], %150 {strides = array<i32>} : memref<58x34xf32, #tpu.memory_space<vmem>>, vector<58x34xf32>,
    %c0_155 = arith.constant 0 : index
    %c0_156 = arith.constant 0 : index
    %152 = tpu.strided_load %arg17[%c0_155, %c0_156] {strides = array<i32: 4, 1>} : memref<58x34xf32, #tpu.memory_space<vmem>>, vector<7x34xf32>
    %c1_157 = arith.constant 1 : index
    %c0_158 = arith.constant 0 : index
    %153 = tpu.strided_load %arg17[%c1_157, %c0_158] {strides = array<i32: 4, 1>} : memref<58x34xf32, #tpu.memory_space<vmem>>, vector<7x34xf32>
    %154 = arith.maximumf %152, %153 : vector<7x34xf32>
    %c2_159 = arith.constant 2 : index
    %c0_160 = arith.constant 0 : index
    %155 = tpu.strided_load %arg17[%c2_159, %c0_160] {strides = array<i32: 4, 1>} : memref<58x34xf32, #tpu.memory_space<vmem>>, vector<7x34xf32>
    %156 = arith.maximumf %154, %155 : vector<7x34xf32>
    %c3_161 = arith.constant 3 : index
    %c0_162 = arith.constant 0 : index
    %157 = tpu.strided_load %arg17[%c3_161, %c0_162] {strides = array<i32: 4, 1>} : memref<58x34xf32, #tpu.memory_space<vmem>>, vector<7x34xf32>
    %158 = arith.maximumf %156, %157 : vector<7x34xf32>
    %c0_163 = arith.constant 0 : index
    %c0_164 = arith.constant 0 : index
    %159 = vector.load %arg18[%c0_163, %c0_164] : memref<14x34xf32, #tpu.memory_space<vmem>>, vector<7x34xf32>
    tpu.vector_store %arg18[%c0_163, %c0_164], %158 {strides = array<i32>} : memref<14x34xf32, #tpu.memory_space<vmem>>, vector<7x34xf32>,
    %c30_165 = arith.constant 30 : index
    %c0_166 = arith.constant 0 : index
    %160 = tpu.strided_load %arg17[%c30_165, %c0_166] {strides = array<i32: 4, 1>} : memref<58x34xf32, #tpu.memory_space<vmem>>, vector<7x34xf32>
    %c31 = arith.constant 31 : index
    %c0_167 = arith.constant 0 : index
    %161 = tpu.strided_load %arg17[%c31, %c0_167] {strides = array<i32: 4, 1>} : memref<58x34xf32, #tpu.memory_space<vmem>>, vector<7x34xf32>
    %162 = arith.maximumf %160, %161 : vector<7x34xf32>
    %c32 = arith.constant 32 : index
    %c0_168 = arith.constant 0 : index
    %163 = tpu.strided_load %arg17[%c32, %c0_168] {strides = array<i32: 4, 1>} : memref<58x34xf32, #tpu.memory_space<vmem>>, vector<7x34xf32>
    %164 = arith.maximumf %162, %163 : vector<7x34xf32>
    %c33 = arith.constant 33 : index
    %c0_169 = arith.constant 0 : index
    %165 = tpu.strided_load %arg17[%c33, %c0_169] {strides = array<i32: 4, 1>} : memref<58x34xf32, #tpu.memory_space<vmem>>, vector<7x34xf32>
    %166 = arith.maximumf %164, %165 : vector<7x34xf32>
    %c7 = arith.constant 7 : index
    %c0_170 = arith.constant 0 : index
    %167 = vector.load %arg18[%c7, %c0_170] : memref<14x34xf32, #tpu.memory_space<vmem>>, vector<7x34xf32>
    tpu.vector_store %arg18[%c7, %c0_170], %166 {strides = array<i32>} : memref<14x34xf32, #tpu.memory_space<vmem>>, vector<7x34xf32>,
    %c0_171 = arith.constant 0 : index
    %c0_172 = arith.constant 0 : index
    %168 = vector.load %arg18[%c0_171, %c0_172] : memref<14x34xf32, #tpu.memory_space<vmem>>, vector<12x34xf32>
    %c0_173 = arith.constant 0 : index
    %c0_174 = arith.constant 0 : index
    %c0_175 = arith.constant 0 : index
    %169 = vector.load %arg5[%c0_173, %c0_174, %c0_175] : memref<3x34x34xf32, #tpu.memory_space<vmem>>, vector<1x34x34xf32>
    %170 = vector.shape_cast %169 : vector<1x34x34xf32> to vector<34x34xf32>
    %cst_176 = arith.constant dense<0.000000e+00> : vector<12x34xf32>
    %171 = tpu.matmul %168, %170, %cst_176 {dimension_numbers = #tpu.dot_dimension_numbers<[1], [0], [0], [1], [0, 0, 1, 1], [], []>} : vector<12x34xf32>, vector<34x34xf32>, vector<12x34xf32> -> vector<12x34xf32>
    %c1_177 = arith.constant 1 : index
    %c0_178 = arith.constant 0 : index
    %172 = vector.load %arg18[%c1_177, %c0_178] : memref<14x34xf32, #tpu.memory_space<vmem>>, vector<12x34xf32>
    %c1_179 = arith.constant 1 : index
    %c0_180 = arith.constant 0 : index
    %c0_181 = arith.constant 0 : index
    %173 = vector.load %arg5[%c1_179, %c0_180, %c0_181] : memref<3x34x34xf32, #tpu.memory_space<vmem>>, vector<1x34x34xf32>
    %174 = vector.shape_cast %173 : vector<1x34x34xf32> to vector<34x34xf32>
    %cst_182 = arith.constant dense<0.000000e+00> : vector<12x34xf32>
    %175 = tpu.matmul %172, %174, %cst_182 {dimension_numbers = #tpu.dot_dimension_numbers<[1], [0], [0], [1], [0, 0, 1, 1], [], []>} : vector<12x34xf32>, vector<34x34xf32>, vector<12x34xf32> -> vector<12x34xf32>
    %176 = arith.addf %171, %175 : vector<12x34xf32>
    %c2_183 = arith.constant 2 : index
    %c0_184 = arith.constant 0 : index
    %177 = vector.load %arg18[%c2_183, %c0_184] : memref<14x34xf32, #tpu.memory_space<vmem>>, vector<12x34xf32>
    %c2_185 = arith.constant 2 : index
    %c0_186 = arith.constant 0 : index
    %c0_187 = arith.constant 0 : index
    %178 = vector.load %arg5[%c2_185, %c0_186, %c0_187] : memref<3x34x34xf32, #tpu.memory_space<vmem>>, vector<1x34x34xf32>
    %179 = vector.shape_cast %178 : vector<1x34x34xf32> to vector<34x34xf32>
    %cst_188 = arith.constant dense<0.000000e+00> : vector<12x34xf32>
    %180 = tpu.matmul %177, %179, %cst_188 {dimension_numbers = #tpu.dot_dimension_numbers<[1], [0], [0], [1], [0, 0, 1, 1], [], []>} : vector<12x34xf32>, vector<34x34xf32>, vector<12x34xf32> -> vector<12x34xf32>
    %181 = arith.addf %176, %180 : vector<12x34xf32>
    %c0_189 = arith.constant 0 : index
    %c0_190 = arith.constant 0 : index
    %182 = vector.load %arg11[%c0_189, %c0_190] : memref<1x34xf32, #tpu.memory_space<vmem>>, vector<1x34xf32>
    %183 = vector.broadcast %182 : vector<1x34xf32> to vector<12x34xf32>
    %184 = arith.addf %181, %183 : vector<12x34xf32>
    %cst_191 = arith.constant 0.000000e+00 : f32
    %185 = vector.broadcast %cst_191 : f32 to vector<12x34xf32>
    %186 = arith.maximumf %184, %185 : vector<12x34xf32>
    %187 = vector.extract_strided_slice %186 {offsets = [0, 0], sizes = [4, 34], strides = [1, 1]} : vector<12x34xf32> to vector<4x34xf32>
    %cst_192 = arith.constant dense<0xFF800000> : vector<34xf32>
    %188 = vector.multi_reduction <maximumf>, %187, %cst_192 [0] : vector<4x34xf32> to vector<34xf32>
    %189 = vector.shape_cast %188 : vector<34xf32> to vector<1x34xf32>
    %cst_193 = arith.constant 1.000000e+00 : f32
    %190 = vector.broadcast %cst_193 : f32 to vector<1x34xf32>
    %191 = arith.mulf %189, %190 : vector<1x34xf32>
    %c0_194 = arith.constant 0 : index
    %c0_195 = arith.constant 0 : index
    %192 = vector.load %arg19[%c0_194, %c0_195] : memref<2x34xf32, #tpu.memory_space<vmem>>, vector<1x34xf32>
    tpu.vector_store %arg19[%c0_194, %c0_195], %191 {strides = array<i32>} : memref<2x34xf32, #tpu.memory_space<vmem>>, vector<1x34xf32>,
    %193 = vector.extract_strided_slice %186 {offsets = [7, 0], sizes = [4, 34], strides = [1, 1]} : vector<12x34xf32> to vector<4x34xf32>
    %cst_196 = arith.constant dense<0xFF800000> : vector<34xf32>
    %194 = vector.multi_reduction <maximumf>, %193, %cst_196 [0] : vector<4x34xf32> to vector<34xf32>
    %195 = vector.shape_cast %194 : vector<34xf32> to vector<1x34xf32>
    %cst_197 = arith.constant 1.000000e+00 : f32
    %196 = vector.broadcast %cst_197 : f32 to vector<1x34xf32>
    %197 = arith.mulf %195, %196 : vector<1x34xf32>
    %c1_198 = arith.constant 1 : index
    %c0_199 = arith.constant 0 : index
    %198 = vector.load %arg19[%c1_198, %c0_199] : memref<2x34xf32, #tpu.memory_space<vmem>>, vector<1x34xf32>
    tpu.vector_store %arg19[%c1_198, %c0_199], %197 {strides = array<i32>} : memref<2x34xf32, #tpu.memory_space<vmem>>, vector<1x34xf32>,
    %c0_200 = arith.constant 0 : index
    %c0_201 = arith.constant 0 : index
    %199 = vector.load %arg19[%c0_200, %c0_201] : memref<2x34xf32, #tpu.memory_space<vmem>>, vector<2x34xf32>
    %c0_202 = arith.constant 0 : index
    %c0_203 = arith.constant 0 : index
    %200 = vector.load %arg6[%c0_202, %c0_203] : memref<34x128xf32, #tpu.memory_space<vmem>>, vector<34x128xf32>
    %cst_204 = arith.constant dense<0.000000e+00> : vector<2x128xf32>
    %201 = tpu.matmul %199, %200, %cst_204 {dimension_numbers = #tpu.dot_dimension_numbers<[1], [0], [0], [1], [0, 0, 1, 1], [], []>} : vector<2x34xf32>, vector<34x128xf32>, vector<2x128xf32> -> vector<2x128xf32>
    %c0_205 = arith.constant 0 : index
    %c0_206 = arith.constant 0 : index
    %202 = vector.load %arg7[%c0_205, %c0_206] : memref<1x128xf32, #tpu.memory_space<vmem>>, vector<1x128xf32>
    %203 = vector.broadcast %202 : vector<1x128xf32> to vector<2x128xf32>
    %204 = arith.addf %201, %203 : vector<2x128xf32>
    %cst_207 = arith.constant dense<0xFF800000> : vector<2xf32>
    %205 = vector.multi_reduction <maximumf>, %204, %cst_207 [1] : vector<2x128xf32> to vector<2xf32>
    %206 = vector.shape_cast %205 : vector<2xf32> to vector<2x1xf32>
    %207 = vector.broadcast %206 : vector<2x1xf32> to vector<2x128xf32>
    %208 = arith.subf %204, %207 : vector<2x128xf32>
    %209 = math.exp %208 : vector<2x128xf32>
    %cst_208 = arith.constant dense<0.000000e+00> : vector<2xf32>
    %210 = vector.multi_reduction <add>, %209, %cst_208 [1] : vector<2x128xf32> to vector<2xf32>
    %211 = vector.shape_cast %210 : vector<2xf32> to vector<2x1xf32>
    %212 = math.log %211 : vector<2x1xf32>
    %213 = vector.broadcast %212 : vector<2x1xf32> to vector<2x128xf32>
    %214 = arith.subf %208, %213 : vector<2x128xf32>
    %c0_209 = arith.constant 0 : index
    %c0_210 = arith.constant 0 : index
    %c0_211 = arith.constant 0 : index
    %215 = vector.load %arg12[%c0_209, %c0_210, %c0_211] : memref<1x2x128xf32, #tpu.memory_space<vmem>>, vector<1x2x128xf32>
    %216 = vector.shape_cast %215 : vector<1x2x128xf32> to vector<2x128xf32>
    %217 = vector.shape_cast %214 : vector<2x128xf32> to vector<1x2x128xf32>
    tpu.vector_store %arg12[%c0_209, %c0_210, %c0_211], %217 {strides = array<i32>} : memref<1x2x128xf32, #tpu.memory_space<vmem>>, vector<1x2x128xf32>,
    return
  }
  func.func @transform_0(%arg0: i32) -> (i32, i32, i32) {
    %c0_i32 = arith.constant 0 : i32
    %c0_i32_0 = arith.constant 0 : i32
    %c0_i32_1 = arith.constant 0 : i32
    return %arg0, %c0_i32, %c0_i32_0 : i32, i32, i32
  }
  func.func @transform_1(%arg0: i32) -> (i32, i32) {
    %c0_i32 = arith.constant 0 : i32
    %c0_i32_0 = arith.constant 0 : i32
    %c0_i32_1 = arith.constant 0 : i32
    return %c0_i32, %c0_i32_0 : i32, i32
  }
  func.func @transform_2(%arg0: i32) -> (i32, i32, i32) {
    %c0_i32 = arith.constant 0 : i32
    %c0_i32_0 = arith.constant 0 : i32
    %c0_i32_1 = arith.constant 0 : i32
    %c0_i32_2 = arith.constant 0 : i32
    return %c0_i32, %c0_i32_0, %c0_i32_1 : i32, i32, i32
  }
  func.func @transform_3(%arg0: i32) -> (i32, i32, i32) {
    %c0_i32 = arith.constant 0 : i32
    %c0_i32_0 = arith.constant 0 : i32
    %c0_i32_1 = arith.constant 0 : i32
    %c0_i32_2 = arith.constant 0 : i32
    return %c0_i32, %c0_i32_0, %c0_i32_1 : i32, i32, i32
  }
  func.func @transform_4(%arg0: i32) -> (i32, i32, i32) {
    %c0_i32 = arith.constant 0 : i32
    %c0_i32_0 = arith.constant 0 : i32
    %c0_i32_1 = arith.constant 0 : i32
    %c0_i32_2 = arith.constant 0 : i32
    return %c0_i32, %c0_i32_0, %c0_i32_1 : i32, i32, i32
  }
  func.func @transform_5(%arg0: i32) -> (i32, i32) {
    %c0_i32 = arith.constant 0 : i32
    %c0_i32_0 = arith.constant 0 : i32
    %c0_i32_1 = arith.constant 0 : i32
    return %c0_i32, %c0_i32_0 : i32, i32
  }
  func.func @transform_6(%arg0: i32) -> (i32, i32) {
    %c0_i32 = arith.constant 0 : i32
    %c0_i32_0 = arith.constant 0 : i32
    %c0_i32_1 = arith.constant 0 : i32
    return %c0_i32, %c0_i32_0 : i32, i32
  }
  func.func @transform_7(%arg0: i32) -> (i32, i32) {
    %c0_i32 = arith.constant 0 : i32
    %c0_i32_0 = arith.constant 0 : i32
    %c0_i32_1 = arith.constant 0 : i32
    return %c0_i32, %c0_i32_0 : i32, i32
  }
  func.func @transform_8(%arg0: i32) -> (i32, i32) {
    %c0_i32 = arith.constant 0 : i32
    %c0_i32_0 = arith.constant 0 : i32
    %c0_i32_1 = arith.constant 0 : i32
    return %c0_i32, %c0_i32_0 : i32, i32
  }
  func.func @transform_9(%arg0: i32) -> (i32, i32) {
    %c0_i32 = arith.constant 0 : i32
    %c0_i32_0 = arith.constant 0 : i32
    %c0_i32_1 = arith.constant 0 : i32
    return %c0_i32, %c0_i32_0 : i32, i32
  }
  func.func @transform_10(%arg0: i32) -> (i32, i32) {
    %c0_i32 = arith.constant 0 : i32
    %c0_i32_0 = arith.constant 0 : i32
    %c0_i32_1 = arith.constant 0 : i32
    return %c0_i32, %c0_i32_0 : i32, i32
  }
  func.func @transform_11(%arg0: i32) -> (i32, i32, i32) {
    %c0_i32 = arith.constant 0 : i32
    %c0_i32_0 = arith.constant 0 : i32
    %c0_i32_1 = arith.constant 0 : i32
    return %arg0, %c0_i32, %c0_i32_0 : i32, i32, i32
  }
}

</mosaic_0001>

<llo_original>
// kernel: tpu_custom_call.1
$region0: #{tpu_custom_call.1}
  #allocation0 [shape = 'u32[]', space=smem, size = 0x4, offset = 0x4, fixed_abs, tag = 'smem constant byte address 0x4 - core index']
  #allocation1 [shape = 'u32[144,128]{1,0:T(1,128)}', space=vmem, size = 0x12000, scoped, tag = 'internal scratch']
  #allocation2 [shape = 'f32[992,17]{1,0:T(8,128)}', space=vmem, size = 0x7c000, scoped, tag = 'scratch operand']
  #allocation3 [shape = 'f32[248,17]{1,0:T(8,128)}', space=vmem, size = 0x1f000, scoped, tag = 'scratch operand']
  #allocation4 [shape = 'f32[246,17]{1,0:T(8,128)}', space=vmem, size = 0x1f000, scoped, tag = 'scratch operand']
  #allocation5 [shape = 'f32[60,17]{1,0:T(8,128)}', space=vmem, size = 0x8000, scoped, tag = 'scratch operand']
  #allocation6 [shape = 'f32[58,34]{1,0:T(8,128)}', space=vmem, size = 0x8000, scoped, tag = 'scratch operand']
  #allocation7 [shape = 'f32[14,34]{1,0:T(8,128)}', space=vmem, size = 0x2000, scoped, tag = 'scratch operand']
  #allocation8 [shape = 'f32[2,34]{1,0:T(2,128)}', space=vmem, size = 0x400, scoped, tag = 'scratch operand']
  %s0 = inlined_call_operand.vmem [shape: f32[2,992,80], index: 0, kind: input, shape index: {}]
  %s1 = inlined_call_operand.vmem [shape: f32[80,17], index: 1, kind: input, shape index: {}]
  %s2 = inlined_call_operand.vmem [shape: f32[3,17,17], index: 2, kind: input, shape index: {}]
  %s3 = inlined_call_operand.vmem [shape: f32[3,17,34], index: 3, kind: input, shape index: {}]
  %s4 = inlined_call_operand.vmem [shape: f32[3,34,34], index: 4, kind: input, shape index: {}]
  %s5 = inlined_call_operand.vmem [shape: f32[34,128], index: 5, kind: input, shape index: {}]
  %s6 = inlined_call_operand.vmem [shape: f32[1,128], index: 6, kind: input, shape index: {}]
  %s7 = inlined_call_operand.vmem [shape: f32[1,17], index: 7, kind: input, shape index: {}]
  %s8 = inlined_call_operand.vmem [shape: f32[1,17], index: 8, kind: input, shape index: {}]
  %s9 = inlined_call_operand.vmem [shape: f32[1,34], index: 9, kind: input, shape index: {}]
  %s10 = inlined_call_operand.vmem [shape: f32[1,34], index: 10, kind: input, shape index: {}]
  %s11 = inlined_call_operand.hbm [shape: f32[2,2,128], index: 11, kind: output, shape index: {}]
  %s12 = sld [smem:[#allocation0]]
  $region77: #{tpu_custom_call.1} parent=0
    _
  %s14 = ssub.s32 1, %s12
  %s15 = scalar_select 0, %s14, %s12
  $region1: #{tpu_custom_call.1} parent=0
    #allocation9 [shape = 'u8[2048]{0}', space=vmem, size = 0x800, scoped, tag = 'output window, operand 0']
    #allocation10 [shape = 's32[2]{0}', space=sflag, size = 0x8, scoped, tag = 'scoped memory for tpu_custom_call.1']
    %16 = vsyncpa [#allocation10], 0
    %s17 = scalar_lea.sflag [#allocation10], 1
    %18 = vsyncpa %s17, 0
    loop: start=0, step=1, limit=4
    $region2: #{tpu_custom_call.1} parent=1 // loop_pre_header
      _
    $region3: #{tpu_custom_call.1} parent=1 // loop_header
      %s20 = sphi 0, %s24
      %p21 = scmp.ge.s32.totalorder %s20, 4
      %s30 = sphi 0, %s32
      %s33 = sphi 0, %s30
      %s34 = sphi 0, %s33
      %s50 = sphi 0, %s34
      %s54 = sphi 0, %s54
      %s56 = sphi 0, %s54
      %s57 = sphi 0, %s56
      %s71 = sphi 0, %s57
      %s75 = sphi 0, %s75
      %s77 = sphi 0, %s75
      %s78 = sphi 0, %s77
      %s92 = sphi 0, %s78
      %s96 = sphi 0, %s96
      %s98 = sphi 0, %s96
      %s99 = sphi 0, %s98
      %s113 = sphi 0, %s99
      %s117 = sphi 0, %s117
      %s119 = sphi 0, %s117
      %s120 = sphi 0, %s119
      %s134 = sphi 0, %s120
      %s138 = sphi 0, %s138
      %s140 = sphi 0, %s138
      %s141 = sphi 0, %s140
      %s155 = sphi 0, %s141
      %s159 = sphi 0, %s159
      %s161 = sphi 0, %s159
      %s162 = sphi 0, %s161
      %s176 = sphi 0, %s162
      %s180 = sphi 0, %s180
      %s182 = sphi 0, %s180
      %s183 = sphi 0, %s182
      %s197 = sphi 0, %s183
      %s201 = sphi 0, %s201
      %s203 = sphi 0, %s201
      %s204 = sphi 0, %s203
      %s218 = sphi 0, %s204
      %s222 = sphi 0, %s222
      %s224 = sphi 0, %s222
      %s225 = sphi 0, %s224
      %s239 = sphi 0, %s225
      %s243 = sphi 0, %s243
      %s245 = sphi 0, %s243
      %s246 = sphi 0, %s245
      %s260 = sphi 0, %s246
      %s266 = sphi 0, %s268
      %s269 = sphi 0, %s266
      %s270 = sphi 0, %s269
      %s286 = sphi 0, %s270
    $region4: #{tpu_custom_call.1} parent=1 // loop_header_branch
      %23 = sbr.rel (%p21) target = $region8
    $region5: #{tpu_custom_call.1} parent=1 // loop_body
      %s25 = ssub.s32 %s20, 1
      %s26 = ssub.s32 %s20, 2
      %s27 = sadd.s32 %s20, 1
      %s28 = ssub.s32 %s20, %s27
      %p29 = scmp.eq.s32.totalorder %s28, 0
      %s31 = sadd.s32 %s30, 1
      %s32 = scalar_select %p29, %s30, %s31
      %p35 = pneg %p29
      %p36 = scmp.eq.s32.totalorder %s20, 1
      %p37 = por %p35, %p36
      %p38 = scmp.ne.s32.totalorder %s30, %s33
      %p39 = scmp.eq.s32.totalorder %s20, 0
      %p40 = por %p38, %p39
      %p41 = scmp.ne.s32.totalorder %s30, %s33
      %p42 = scmp.eq.s32.totalorder %s25, 1
      %p43 = por %p41, %p42
      %p44 = scmp.ne.s32.totalorder %s33, %s34
      %p45 = scmp.eq.s32.totalorder %s25, 0
      %p46 = por %p44, %p45
      %p47 = scmp.ne.s32.totalorder %s33, %s34
      %p48 = scmp.eq.s32.totalorder %s26, 1
      %p49 = por %p47, %p48
      %p51 = scmp.ne.s32.totalorder %s34, %s50
      %p52 = scmp.eq.s32.totalorder %s26, 0
      %p53 = por %p51, %p52
      %s55 = sadd.s32 %s54, 1
      %p58 = scmp.eq.s32.totalorder %s20, 1
      %p59 = scmp.ne.s32.totalorder %s54, %s56
      %p60 = scmp.eq.s32.totalorder %s20, 0
      %p61 = por %p59, %p60
      %p62 = scmp.ne.s32.totalorder %s54, %s56
      %p63 = scmp.eq.s32.totalorder %s25, 1
      %p64 = por %p62, %p63
      %p65 = scmp.ne.s32.totalorder %s56, %s57
      %p66 = scmp.eq.s32.totalorder %s25, 0
      %p67 = por %p65, %p66
      %p68 = scmp.ne.s32.totalorder %s56, %s57
      %p69 = scmp.eq.s32.totalorder %s26, 1
      %p70 = por %p68, %p69
      %p72 = scmp.ne.s32.totalorder %s57, %s71
      %p73 = scmp.eq.s32.totalorder %s26, 0
      %p74 = por %p72, %p73
      %s76 = sadd.s32 %s75, 1
      %p79 = scmp.eq.s32.totalorder %s20, 1
      %p80 = scmp.ne.s32.totalorder %s75, %s77
      %p81 = scmp.eq.s32.totalorder %s20, 0
      %p82 = por %p80, %p81
      %p83 = scmp.ne.s32.totalorder %s75, %s77
      %p84 = scmp.eq.s32.totalorder %s25, 1
      %p85 = por %p83, %p84
      %p86 = scmp.ne.s32.totalorder %s77, %s78
      %p87 = scmp.eq.s32.totalorder %s25, 0
      %p88 = por %p86, %p87
      %p89 = scmp.ne.s32.totalorder %s77, %s78
      %p90 = scmp.eq.s32.totalorder %s26, 1
      %p91 = por %p89, %p90
      %p93 = scmp.ne.s32.totalorder %s78, %s92
      %p94 = scmp.eq.s32.totalorder %s26, 0
      %p95 = por %p93, %p94
      %s97 = sadd.s32 %s96, 1
      %p100 = scmp.eq.s32.totalorder %s20, 1
      %p101 = scmp.ne.s32.totalorder %s96, %s98
      %p102 = scmp.eq.s32.totalorder %s20, 0
      %p103 = por %p101, %p102
      %p104 = scmp.ne.s32.totalorder %s96, %s98
      %p105 = scmp.eq.s32.totalorder %s25, 1
      %p106 = por %p104, %p105
      %p107 = scmp.ne.s32.totalorder %s98, %s99
      %p108 = scmp.eq.s32.totalorder %s25, 0
      %p109 = por %p107, %p108
      %p110 = scmp.ne.s32.totalorder %s98, %s99
      %p111 = scmp.eq.s32.totalorder %s26, 1
      %p112 = por %p110, %p111
      %p114 = scmp.ne.s32.totalorder %s99, %s113
      %p115 = scmp.eq.s32.totalorder %s26, 0
      %p116 = por %p114, %p115
      %s118 = sadd.s32 %s117, 1
      %p121 = scmp.eq.s32.totalorder %s20, 1
      %p122 = scmp.ne.s32.totalorder %s117, %s119
      %p123 = scmp.eq.s32.totalorder %s20, 0
      %p124 = por %p122, %p123
      %p125 = scmp.ne.s32.totalorder %s117, %s119
      %p126 = scmp.eq.s32.totalorder %s25, 1
      %p127 = por %p125, %p126
      %p128 = scmp.ne.s32.totalorder %s119, %s120
      %p129 = scmp.eq.s32.totalorder %s25, 0
      %p130 = por %p128, %p129
      %p131 = scmp.ne.s32.totalorder %s119, %s120
      %p132 = scmp.eq.s32.totalorder %s26, 1
      %p133 = por %p131, %p132
      %p135 = scmp.ne.s32.totalorder %s120, %s134
      %p136 = scmp.eq.s32.totalorder %s26, 0
      %p137 = por %p135, %p136
      %s139 = sadd.s32 %s138, 1
      %p142 = scmp.eq.s32.totalorder %s20, 1
      %p143 = scmp.ne.s32.totalorder %s138, %s140
      %p144 = scmp.eq.s32.totalorder %s20, 0
      %p145 = por %p143, %p144
      %p146 = scmp.ne.s32.totalorder %s138, %s140
      %p147 = scmp.eq.s32.totalorder %s25, 1
      %p148 = por %p146, %p147
      %p149 = scmp.ne.s32.totalorder %s140, %s141
      %p150 = scmp.eq.s32.totalorder %s25, 0
      %p151 = por %p149, %p150
      %p152 = scmp.ne.s32.totalorder %s140, %s141
      %p153 = scmp.eq.s32.totalorder %s26, 1
      %p154 = por %p152, %p153
      %p156 = scmp.ne.s32.totalorder %s141, %s155
      %p157 = scmp.eq.s32.totalorder %s26, 0
      %p158 = por %p156, %p157
      %s160 = sadd.s32 %s159, 1
      %p163 = scmp.eq.s32.totalorder %s20, 1
      %p164 = scmp.ne.s32.totalorder %s159, %s161
      %p165 = scmp.eq.s32.totalorder %s20, 0
      %p166 = por %p164, %p165
      %p167 = scmp.ne.s32.totalorder %s159, %s161
      %p168 = scmp.eq.s32.totalorder %s25, 1
      %p169 = por %p167, %p168
      %p170 = scmp.ne.s32.totalorder %s161, %s162
      %p171 = scmp.eq.s32.totalorder %s25, 0
      %p172 = por %p170, %p171
      %p173 = scmp.ne.s32.totalorder %s161, %s162
      %p174 = scmp.eq.s32.totalorder %s26, 1
      %p175 = por %p173, %p174
      %p177 = scmp.ne.s32.totalorder %s162, %s176
      %p178 = scmp.eq.s32.totalorder %s26, 0
      %p179 = por %p177, %p178
      %s181 = sadd.s32 %s180, 1
      %p184 = scmp.eq.s32.totalorder %s20, 1
      %p185 = scmp.ne.s32.totalorder %s180, %s182
      %p186 = scmp.eq.s32.totalorder %s20, 0
      %p187 = por %p185, %p186
      %p188 = scmp.ne.s32.totalorder %s180, %s182
      %p189 = scmp.eq.s32.totalorder %s25, 1
      %p190 = por %p188, %p189
      %p191 = scmp.ne.s32.totalorder %s182, %s183
      %p192 = scmp.eq.s32.totalorder %s25, 0
      %p193 = por %p191, %p192
      %p194 = scmp.ne.s32.totalorder %s182, %s183
      %p195 = scmp.eq.s32.totalorder %s26, 1
      %p196 = por %p194, %p195
      %p198 = scmp.ne.s32.totalorder %s183, %s197
      %p199 = scmp.eq.s32.totalorder %s26, 0
      %p200 = por %p198, %p199
      %s202 = sadd.s32 %s201, 1
      %p205 = scmp.eq.s32.totalorder %s20, 1
      %p206 = scmp.ne.s32.totalorder %s201, %s203
      %p207 = scmp.eq.s32.totalorder %s20, 0
      %p208 = por %p206, %p207
      %p209 = scmp.ne.s32.totalorder %s201, %s203
      %p210 = scmp.eq.s32.totalorder %s25, 1
      %p211 = por %p209, %p210
      %p212 = scmp.ne.s32.totalorder %s203, %s204
      %p213 = scmp.eq.s32.totalorder %s25, 0
      %p214 = por %p212, %p213
      %p215 = scmp.ne.s32.totalorder %s203, %s204
      %p216 = scmp.eq.s32.totalorder %s26, 1
      %p217 = por %p215, %p216
      %p219 = scmp.ne.s32.totalorder %s204, %s218
      %p220 = scmp.eq.s32.totalorder %s26, 0
      %p221 = por %p219, %p220
      %s223 = sadd.s32 %s222, 1
      %p226 = scmp.eq.s32.totalorder %s20, 1
      %p227 = scmp.ne.s32.totalorder %s222, %s224
      %p228 = scmp.eq.s32.totalorder %s20, 0
      %p229 = por %p227, %p228
      %p230 = scmp.ne.s32.totalorder %s222, %s224
      %p231 = scmp.eq.s32.totalorder %s25, 1
      %p232 = por %p230, %p231
      %p233 = scmp.ne.s32.totalorder %s224, %s225
      %p234 = scmp.eq.s32.totalorder %s25, 0
      %p235 = por %p233, %p234
      %p236 = scmp.ne.s32.totalorder %s224, %s225
      %p237 = scmp.eq.s32.totalorder %s26, 1
      %p238 = por %p236, %p237
      %p240 = scmp.ne.s32.totalorder %s225, %s239
      %p241 = scmp.eq.s32.totalorder %s26, 0
      %p242 = por %p240, %p241
      %s244 = sadd.s32 %s243, 1
      %p247 = scmp.eq.s32.totalorder %s20, 1
      %p248 = scmp.ne.s32.totalorder %s243, %s245
      %p249 = scmp.eq.s32.totalorder %s20, 0
      %p250 = por %p248, %p249
      %p251 = scmp.ne.s32.totalorder %s243, %s245
      %p252 = scmp.eq.s32.totalorder %s25, 1
      %p253 = por %p251, %p252
      %p254 = scmp.ne.s32.totalorder %s245, %s246
      %p255 = scmp.eq.s32.totalorder %s25, 0
      %p256 = por %p254, %p255
      %p257 = scmp.ne.s32.totalorder %s245, %s246
      %p258 = scmp.eq.s32.totalorder %s26, 1
      %p259 = por %p257, %p258
      %p261 = scmp.ne.s32.totalorder %s246, %s260
      %p262 = scmp.eq.s32.totalorder %s26, 0
      %p263 = por %p261, %p262
      %s264 = ssub.s32 %s20, %s27
      %p265 = scmp.eq.s32.totalorder %s264, 0
      %s267 = sadd.s32 %s266, 1
      %s268 = scalar_select %p265, %s266, %s267
      %p271 = pneg %p265
      %p272 = scmp.eq.s32.totalorder %s20, 1
      %p273 = por %p271, %p272
      %p274 = scmp.ne.s32.totalorder %s266, %s269
      %p275 = scmp.eq.s32.totalorder %s20, 0
      %p276 = por %p274, %p275
      %p277 = scmp.ne.s32.totalorder %s266, %s269
      %p278 = scmp.eq.s32.totalorder %s25, 1
      %p279 = por %p277, %p278
      %p280 = scmp.ne.s32.totalorder %s269, %s270
      %p281 = scmp.eq.s32.totalorder %s25, 0
      %p282 = por %p280, %p281
      %p283 = scmp.ne.s32.totalorder %s269, %s270
      %p284 = scmp.eq.s32.totalorder %s26, 1
      %p285 = por %p283, %p284
      %p287 = scmp.ne.s32.totalorder %s270, %s286
      %p288 = scmp.eq.s32.totalorder %s26, 0
      %p289 = por %p287, %p288
      %p290 = scmp.le.s32.totalorder 1, %s20
      %p291 = scmp.lt.s32.totalorder %s20, 3
      %p292 = pnand %p290, %p291
      %p293 = pneg %p292
      // Predicated region
      $region9: #{tpu_custom_call.1} parent=5 // pred_check
        _
      $region10: #{tpu_custom_call.1} parent=5 // pred_check_branch
        %295 = sbr.rel (%p292) target = $region12
      $region11: #{tpu_custom_call.1} parent=5 // pred_region
        %s296 = ssub.s32 %s20, 1
        // Predicated region
        $region13: #{tpu_custom_call.1} parent=11 // pred_check
          %p297 = pneg %p67
        $region14: #{tpu_custom_call.1} parent=11 // pred_check_branch
          %299 = sbr.rel (%p297) target = $region16
        $region15: #{tpu_custom_call.1} parent=11 // pred_region
          _
        $region16: #{tpu_custom_call.1} parent=11 // pred_fallthru
          _
        // Predicated region
        $region17: #{tpu_custom_call.1} parent=11 // pred_check
          %p300 = pneg %p88
        $region18: #{tpu_custom_call.1} parent=11 // pred_check_branch
          %302 = sbr.rel (%p300) target = $region20
        $region19: #{tpu_custom_call.1} parent=11 // pred_region
          _
        $region20: #{tpu_custom_call.1} parent=11 // pred_fallthru
          _
        // Predicated region
        $region21: #{tpu_custom_call.1} parent=11 // pred_check
          %p303 = pneg %p109
        $region22: #{tpu_custom_call.1} parent=11 // pred_check_branch
          %305 = sbr.rel (%p303) target = $region24
        $region23: #{tpu_custom_call.1} parent=11 // pred_region
          _
        $region24: #{tpu_custom_call.1} parent=11 // pred_fallthru
          _
        // Predicated region
        $region25: #{tpu_custom_call.1} parent=11 // pred_check
          %p306 = pneg %p130
        $region26: #{tpu_custom_call.1} parent=11 // pred_check_branch
          %308 = sbr.rel (%p306) target = $region28
        $region27: #{tpu_custom_call.1} parent=11 // pred_region
          _
        $region28: #{tpu_custom_call.1} parent=11 // pred_fallthru
          _
        // Predicated region
        $region29: #{tpu_custom_call.1} parent=11 // pred_check
          %p309 = pneg %p151
        $region30: #{tpu_custom_call.1} parent=11 // pred_check_branch
          %311 = sbr.rel (%p309) target = $region32
        $region31: #{tpu_custom_call.1} parent=11 // pred_region
          _
        $region32: #{tpu_custom_call.1} parent=11 // pred_fallthru
          _
        // Predicated region
        $region33: #{tpu_custom_call.1} parent=11 // pred_check
          %p312 = pneg %p172
        $region34: #{tpu_custom_call.1} parent=11 // pred_check_branch
          %314 = sbr.rel (%p312) target = $region36
        $region35: #{tpu_custom_call.1} parent=11 // pred_region
          _
        $region36: #{tpu_custom_call.1} parent=11 // pred_fallthru
          _
        // Predicated region
        $region37: #{tpu_custom_call.1} parent=11 // pred_check
          %p315 = pneg %p193
        $region38: #{tpu_custom_call.1} parent=11 // pred_check_branch
          %317 = sbr.rel (%p315) target = $region40
        $region39: #{tpu_custom_call.1} parent=11 // pred_region
          _
        $region40: #{tpu_custom_call.1} parent=11 // pred_fallthru
          _
        // Predicated region
        $region41: #{tpu_custom_call.1} parent=11 // pred_check
          %p318 = pneg %p214
        $region42: #{tpu_custom_call.1} parent=11 // pred_check_branch
          %320 = sbr.rel (%p318) target = $region44
        $region43: #{tpu_custom_call.1} parent=11 // pred_region
          _
        $region44: #{tpu_custom_call.1} parent=11 // pred_fallthru
          _
        // Predicated region
        $region45: #{tpu_custom_call.1} parent=11 // pred_check
          %p321 = pneg %p235
        $region46: #{tpu_custom_call.1} parent=11 // pred_check_branch
          %323 = sbr.rel (%p321) target = $region48
        $region47: #{tpu_custom_call.1} parent=11 // pred_region
          _
        $region48: #{tpu_custom_call.1} parent=11 // pred_fallthru
          _
        // Predicated region
        $region49: #{tpu_custom_call.1} parent=11 // pred_check
          %p324 = pneg %p256
        $region50: #{tpu_custom_call.1} parent=11 // pred_check_branch
          %326 = sbr.rel (%p324) target = $region52
        $region51: #{tpu_custom_call.1} parent=11 // pred_region
          _
        $region52: #{tpu_custom_call.1} parent=11 // pred_fallthru
          _
      $region12: #{tpu_custom_call.1} parent=5 // pred_fallthru
        _
      %p327 = scmp.lt.s32.totalorder %s20, 2
      // Predicated region
      $region53: #{tpu_custom_call.1} parent=5 // pred_check
        %p328 = pneg %p327
      $region54: #{tpu_custom_call.1} parent=5 // pred_check_branch
        %330 = sbr.rel (%p328) target = $region56
      $region55: #{tpu_custom_call.1} parent=5 // pred_region
        // Predicated region
        $region57: #{tpu_custom_call.1} parent=55 // pred_check
          %p331 = pneg %p40
        $region58: #{tpu_custom_call.1} parent=55 // pred_check_branch
          %333 = sbr.rel (%p331) target = $region60
        $region59: #{tpu_custom_call.1} parent=55 // pred_region
          %p334 = scmp.lt.s32.totalorder %s20, 1
          %s335 = scalar_select %p334, %s20, 1
          %s336 = smul.addr %s335, 124
          %s337 = smul.addr %s336, 8
          %s338 = scalar_lea.vmem %s0, %s337
        $region60: #{tpu_custom_call.1} parent=55 // pred_fallthru
          _
      $region56: #{tpu_custom_call.1} parent=5 // pred_fallthru
        _
      %p339 = scmp.le.s32.totalorder 1, %s20
      %p340 = scmp.lt.s32.totalorder %s20, 3
      %p341 = pnand %p339, %p340
      %p342 = pneg %p341
      // Predicated region
      $region61: #{tpu_custom_call.1} parent=5 // pred_check
        _
      $region62: #{tpu_custom_call.1} parent=5 // pred_check_branch
        %344 = sbr.rel (%p341) target = $region64
      $region63: #{tpu_custom_call.1} parent=5 // pred_region
        %s345 = ssub.s32 %s20, 1
        %p346 = scmp.lt.s32.totalorder %s25, 1
        %s347 = scalar_select %p346, %s25, 1
        %s348 = smul.addr %s347, 124
        %s349 = smul.addr %s348, 8
        %s350 = scalar_lea.vmem %s0, %s349
        %p351 = pneg %p46
        %p352 = pneg %p43
        %p353 = pneg %p67
        %p354 = pneg %p64
        %p355 = pneg %p88
        %p356 = pneg %p85
        %p357 = pneg %p109
        %p358 = pneg %p106
        %p359 = pneg %p130
        %p360 = pneg %p127
        %p361 = pneg %p151
        %p362 = pneg %p148
        %p363 = pneg %p172
        %p364 = pneg %p169
        %p365 = pneg %p193
        %p366 = pneg %p190
        %p367 = pneg %p214
        %p368 = pneg %p211
        %p369 = pneg %p235
        %p370 = pneg %p232
        %p371 = pneg %p256
        %p372 = pneg %p253
        %p373 = pneg %p282
        %p374 = pneg %p279
        %s375 = sand.u32 %s269, 1
        %s376 = scalar_lea.sflag [#allocation10], %s375
        %s377 = sand.u32 %s269, 1
        %s378 = smul.addr %s377, 2
        %s379 = scalar_lea.vmem [#allocation9], %s378
        %p380 = scmp.lt.s32.totalorder %s25, 1
        %s381 = scalar_select %p380, %s25, 1
        %s382 = smul.addr %s381, 124
        %s383 = smul.addr %s382, 8
        %s384 = scalar_lea.vmem %s0, %s383
        %v385 = vld [vmem:[%s384] sm:$0xff]
        %v386 = vld [vmem:[%s384 + $0x8] sm:$0xff]
        %v387 = vld [vmem:[%s384 + $0x10] sm:$0xff]
        %v388 = vld [vmem:[%s384 + $0x18] sm:$0xff]
        %v389 = vld [vmem:[%s384 + $0x20] sm:$0xff]
        %v390 = vld [vmem:[%s384 + $0x28] sm:$0xff]
        %v391 = vld [vmem:[%s384 + $0x30] sm:$0xff]
        %v392 = vld [vmem:[%s384 + $0x38] sm:$0xff]
        %v393 = vld [vmem:[%s384 + $0x40] sm:$0xff]
        %v394 = vld [vmem:[%s384 + $0x48] sm:$0xff]
        %v395 = vld [vmem:[%s384 + $0x50] sm:$0xff]
        %v396 = vld [vmem:[%s384 + $0x58] sm:$0xff]
        %v397 = vld [vmem:[%s384 + $0x60] sm:$0xff]
        %v398 = vld [vmem:[%s384 + $0x68] sm:$0xff]
        %v399 = vld [vmem:[%s384 + $0x70] sm:$0xff]
        %v400 = vld [vmem:[%s384 + $0x78] sm:$0xff]
        %v401 = vld [vmem:[%s384 + $0x80] sm:$0xff]
        %v402 = vld [vmem:[%s384 + $0x88] sm:$0xff]
        %v403 = vld [vmem:[%s384 + $0x90] sm:$0xff]
        %v404 = vld [vmem:[%s384 + $0x98] sm:$0xff]
        %v405 = vld [vmem:[%s384 + $0xa0] sm:$0xff]
        %v406 = vld [vmem:[%s384 + $0xa8] sm:$0xff]
        %v407 = vld [vmem:[%s384 + $0xb0] sm:$0xff]
        %v408 = vld [vmem:[%s384 + $0xb8] sm:$0xff]
        %v409 = vld [vmem:[%s1] sm:$0xff]
        %v410 = vld [vmem:[%s1 + $0x8] sm:$0xff]
        %v411 = vld [vmem:[%s1 + $0x10] sm:$0xff]
        %v412 = vld [vmem:[%s1 + $0x18] sm:$0xff]
        %v413 = vld [vmem:[%s1 + $0x20] sm:$0xff]
        %v414 = vld [vmem:[%s1 + $0x28] sm:$0xff]
        %v415 = vld [vmem:[%s1 + $0x30] sm:$0xff]
        %v416 = vld [vmem:[%s1 + $0x38] sm:$0xff]
        %v417 = vld [vmem:[%s1 + $0x40] sm:$0xff]
        %v418 = vld [vmem:[%s1 + $0x48] sm:$0xff]
        %v419 = vld [vmem:[%s7] sm:$0x1]
        %v421 = vlaneseq
        %v422 = vshrl.u32 %v421, 7
        %v423 = vsub.s32 0, %v422
        %v424 = vrot.slane %v419, %v423
        %vm426 = vcmask 654336
        %v428 = vsel %vm426, %v385, 0
        %v431 = vsel %vm426, %v386, 0
        %v434 = vsel %vm426, %v387, 0
        %v437 = vsel %vm426, %v388, 0
        %v440 = vsel %vm426, %v389, 0
        %v443 = vsel %vm426, %v390, 0
        %v446 = vsel %vm426, %v391, 0
        %v449 = vsel %vm426, %v392, 0
        %v452 = vsel %vm426, %v393, 0
        %v455 = vsel %vm426, %v394, 0
        %v458 = vsel %vm426, %v395, 0
        %v461 = vsel %vm426, %v396, 0
        %v464 = vsel %vm426, %v397, 0
        %v467 = vsel %vm426, %v398, 0
        %v470 = vsel %vm426, %v399, 0
        %v473 = vsel %vm426, %v400, 0
        %v476 = vsel %vm426, %v401, 0
        %v479 = vsel %vm426, %v402, 0
        %v482 = vsel %vm426, %v403, 0
        %v485 = vsel %vm426, %v404, 0
        %v488 = vsel %vm426, %v405, 0
        %v491 = vsel %vm426, %v406, 0
        %v494 = vsel %vm426, %v407, 0
        %v497 = vsel %vm426, %v408, 0
        %499 = vmatprep.subr.mxu0 0.0
        %500 = vmatpush1.msra.mxu0 %v409
        %501 = vmatprep.subr.mxu0 0.0
        %502 = vmatpush1.msra.mxu0 %v410
        %503 = vmatprep.subr.mxu0 0.0
        %504 = vmatpush1.msra.mxu0 %v411
        %505 = vmatprep.subr.mxu0 0.0
        %506 = vmatpush1.msra.mxu0 %v412
        %507 = vmatprep.subr.mxu0 0.0
        %508 = vmatpush1.msra.mxu0 %v413
        %509 = vmatprep.subr.mxu0 0.0
        %510 = vmatpush1.msra.mxu0 %v414
        %511 = vmatprep.subr.mxu0 0.0
        %512 = vmatpush1.msra.mxu0 %v415
        %513 = vmatprep.subr.mxu0 0.0
        %514 = vmatpush1.msra.mxu0 %v416
        %515 = vmatprep.subr.mxu0 0.0
        %516 = vmatpush1.msra.mxu0 %v417
        %517 = vmatprep.subr.mxu0 0.0
        %518 = vmatpush1.msra.mxu0 %v418
        %519 = vmatprep.subr.mxu0 0.0
        %520 = vmatpush1.msra.mxu0 0.0
        %521 = vmatprep.subr.mxu0 0.0
        %522 = vmatpush1.msra.mxu0 0.0
        %523 = vmatprep.subr.mxu0 0.0
        %524 = vmatpush1.msra.mxu0 0.0
        %525 = vmatprep.subr.mxu0 0.0
        %526 = vmatpush1.msra.mxu0 0.0
        %527 = vmatprep.subr.mxu0 0.0
        %528 = vmatpush1.msra.mxu0 0.0
        %529 = vmatprep.subr.mxu0 0.0
        %530 = vmatpush1.msra.mxu0 0.0
        %531 = vmatprep.subr.mxu0 0.0
        %532 = vmatpush1.msra.mxu0 0.0
        %533 = vmatprep.subr.mxu0 0.0
        %534 = vmatpush1.msra.mxu0 0.0
        %535 = vmatprep.subr.mxu0 0.0
        %536 = vmatpush1.msra.mxu0 0.0
        %537 = vmatprep.subr.mxu0 0.0
        %538 = vmatpush1.msra.mxu0 0.0
        %539 = vmatprep.subr.mxu0 0.0
        %540 = vmatpush1.msra.mxu0 0.0
        %541 = vmatprep.subr.mxu0 0.0
        %542 = vmatpush1.msra.mxu0 0.0
        %543 = vmatprep.subr.mxu0 0.0
        %544 = vmatpush1.msra.mxu0 0.0
        %545 = vmatprep.subr.mxu0 0.0
        %546 = vmatpush1.msra.mxu0 0.0
        %547 = vmatprep.subr.mxu0 0.0
        %548 = vmatpush1.msra.mxu0 0.0
        %549 = vmatprep.subr.mxu0 0.0
        %550 = vmatpush1.msra.mxu0 0.0
        %551 = vmatprep.subr.mxu0 0.0
        %552 = vmatpush1.msra.mxu0 0.0
        %553 = vmatprep.subr.mxu0 0.0
        %554 = vmatpush1.msra.mxu0 0.0
        %555 = vmatprep.subr.mxu0 0.0
        %556 = vmatpush1.msra.mxu0 0.0
        %557 = vmatprep.subr.mxu0 0.0
        %558 = vmatpush1.msra.mxu0 0.0
        %559 = vmatprep.subr.mxu0 0.0
        %560 = vmatpush1.msra.mxu0 0.0
        %561 = vmatprep.subr.mxu0 0.0
        %562 = vmatpush1.msra.mxu0 0.0
        %563 = vmatprep.mubr.f32.mxu0 0.0
        %564 = vmatmul.mubr.f32.gmra.mrb[0].mxu0 %v428
        %v565 = vpop.f32.mrb[0].mxu0
        %v566 = vadd.f32 %v424, %v565
        %v567 = vpop.f32.mrb[0].mxu0
        %568 = vmatprep.mubr.f32.mxu0 0.0
        %569 = vmatmul.mubr.f32.gmra.mrb[0].mxu0 %v431
        %v570 = vpop.f32.mrb[0].mxu0
        %v571 = vadd.f32 %v424, %v570
        %v572 = vpop.f32.mrb[0].mxu0
        %573 = vmatprep.mubr.f32.mxu0 0.0
        %574 = vmatmul.mubr.f32.gmra.mrb[0].mxu0 %v434
        %v575 = vpop.f32.mrb[0].mxu0
        %v576 = vadd.f32 %v424, %v575
        %v577 = vpop.f32.mrb[0].mxu0
        %578 = vmatprep.mubr.f32.mxu0 0.0
        %579 = vmatmul.mubr.f32.gmra.mrb[0].mxu0 %v437
        %v580 = vpop.f32.mrb[0].mxu0
        %v581 = vadd.f32 %v424, %v580
        %v582 = vpop.f32.mrb[0].mxu0
        %583 = vmatprep.mubr.f32.mxu0 0.0
        %584 = vmatmul.mubr.f32.gmra.mrb[0].mxu0 %v440
        %v585 = vpop.f32.mrb[0].mxu0
        %v586 = vadd.f32 %v424, %v585
        %v587 = vpop.f32.mrb[0].mxu0
        %588 = vmatprep.mubr.f32.mxu0 0.0
        %589 = vmatmul.mubr.f32.gmra.mrb[0].mxu0 %v443
        %v590 = vpop.f32.mrb[0].mxu0
        %v591 = vadd.f32 %v424, %v590
        %v592 = vpop.f32.mrb[0].mxu0
        %593 = vmatprep.mubr.f32.mxu0 0.0
        %594 = vmatmul.mubr.f32.gmra.mrb[0].mxu0 %v446
        %v595 = vpop.f32.mrb[0].mxu0
        %v596 = vadd.f32 %v424, %v595
        %v597 = vpop.f32.mrb[0].mxu0
        %598 = vmatprep.mubr.f32.mxu0 0.0
        %599 = vmatmul.mubr.f32.gmra.mrb[0].mxu0 %v449
        %v600 = vpop.f32.mrb[0].mxu0
        %v601 = vadd.f32 %v424, %v600
        %v602 = vpop.f32.mrb[0].mxu0
        %603 = vmatprep.mubr.f32.mxu0 0.0
        %604 = vmatmul.mubr.f32.gmra.mrb[0].mxu0 %v452
        %v605 = vpop.f32.mrb[0].mxu0
        %v606 = vadd.f32 %v424, %v605
        %v607 = vpop.f32.mrb[0].mxu0
        %608 = vmatprep.mubr.f32.mxu0 0.0
        %609 = vmatmul.mubr.f32.gmra.mrb[0].mxu0 %v455
        %v610 = vpop.f32.mrb[0].mxu0
        %v611 = vadd.f32 %v424, %v610
        %v612 = vpop.f32.mrb[0].mxu0
        %613 = vmatprep.mubr.f32.mxu0 0.0
        %614 = vmatmul.mubr.f32.gmra.mrb[0].mxu0 %v458
        %v615 = vpop.f32.mrb[0].mxu0
        %v616 = vadd.f32 %v424, %v615
        %v617 = vpop.f32.mrb[0].mxu0
        %618 = vmatprep.mubr.f32.mxu0 0.0
        %619 = vmatmul.mubr.f32.gmra.mrb[0].mxu0 %v461
        %v620 = vpop.f32.mrb[0].mxu0
        %v621 = vadd.f32 %v424, %v620
        %v622 = vpop.f32.mrb[0].mxu0
        %623 = vmatprep.mubr.f32.mxu0 0.0
        %624 = vmatmul.mubr.f32.gmra.mrb[0].mxu0 %v464
        %v625 = vpop.f32.mrb[0].mxu0
        %v626 = vadd.f32 %v424, %v625
        %v627 = vpop.f32.mrb[0].mxu0
        %628 = vmatprep.mubr.f32.mxu0 0.0
        %629 = vmatmul.mubr.f32.gmra.mrb[0].mxu0 %v467
        %v630 = vpop.f32.mrb[0].mxu0
        %v631 = vadd.f32 %v424, %v630
        %v632 = vpop.f32.mrb[0].mxu0
        %633 = vmatprep.mubr.f32.mxu0 0.0
        %634 = vmatmul.mubr.f32.gmra.mrb[0].mxu0 %v470
        %v635 = vpop.f32.mrb[0].mxu0
        %v636 = vadd.f32 %v424, %v635
        %v637 = vpop.f32.mrb[0].mxu0
        %638 = vmatprep.mubr.f32.mxu0 0.0
        %639 = vmatmul.mubr.f32.gmra.mrb[0].mxu0 %v473
        %v640 = vpop.f32.mrb[0].mxu0
        %v641 = vadd.f32 %v424, %v640
        %v642 = vpop.f32.mrb[0].mxu0
        %643 = vmatprep.mubr.f32.mxu0 0.0
        %644 = vmatmul.mubr.f32.gmra.mrb[0].mxu0 %v476
        %v645 = vpop.f32.mrb[0].mxu0
        %v646 = vadd.f32 %v424, %v645
        %v647 = vpop.f32.mrb[0].mxu0
        %648 = vmatprep.mubr.f32.mxu0 0.0
        %649 = vmatmul.mubr.f32.gmra.mrb[0].mxu0 %v479
        %v650 = vpop.f32.mrb[0].mxu0
        %v651 = vadd.f32 %v424, %v650
        %v652 = vpop.f32.mrb[0].mxu0
        %653 = vmatprep.mubr.f32.mxu0 0.0
        %654 = vmatmul.mubr.f32.gmra.mrb[0].mxu0 %v482
        %v655 = vpop.f32.mrb[0].mxu0
        %v656 = vadd.f32 %v424, %v655
        %v657 = vpop.f32.mrb[0].mxu0
        %658 = vmatprep.mubr.f32.mxu0 0.0
        %659 = vmatmul.mubr.f32.gmra.mrb[0].mxu0 %v485
        %v660 = vpop.f32.mrb[0].mxu0
        %v661 = vadd.f32 %v424, %v660
        %v662 = vpop.f32.mrb[0].mxu0
        %663 = vmatprep.mubr.f32.mxu0 0.0
        %664 = vmatmul.mubr.f32.gmra.mrb[0].mxu0 %v488
        %v665 = vpop.f32.mrb[0].mxu0
        %v666 = vadd.f32 %v424, %v665
        %v667 = vpop.f32.mrb[0].mxu0
        %668 = vmatprep.mubr.f32.mxu0 0.0
        %669 = vmatmul.mubr.f32.gmra.mrb[0].mxu0 %v491
        %v670 = vpop.f32.mrb[0].mxu0
        %v671 = vadd.f32 %v424, %v670
        %v672 = vpop.f32.mrb[0].mxu0
        %673 = vmatprep.mubr.f32.mxu0 0.0
        %674 = vmatmul.mubr.f32.gmra.mrb[0].mxu0 %v494
        %v675 = vpop.f32.mrb[0].mxu0
        %v676 = vadd.f32 %v424, %v675
        %v677 = vpop.f32.mrb[0].mxu0
        %678 = vmatprep.mubr.f32.mxu0 0.0
        %679 = vmatmul.mubr.f32.gmra.mrb[0].mxu0 %v497
        %v680 = vpop.f32.mrb[0].mxu0
        %v681 = vadd.f32 %v424, %v680
        %v682 = vpop.f32.mrb[0].mxu0
        %683 = vdwg.mxu0
        %v684 = vmax.f32 %v566, 0.0
        %v685 = vmax.f32 %v571, 0.0
        %v686 = vmax.f32 %v576, 0.0
        %v687 = vmax.f32 %v581, 0.0
        %v688 = vmax.f32 %v586, 0.0
        %v689 = vmax.f32 %v591, 0.0
        %v690 = vmax.f32 %v596, 0.0
        %v691 = vmax.f32 %v601, 0.0
        %v692 = vmax.f32 %v606, 0.0
        %v693 = vmax.f32 %v611, 0.0
        %v694 = vmax.f32 %v616, 0.0
        %v695 = vmax.f32 %v621, 0.0
        %v696 = vmax.f32 %v626, 0.0
        %v697 = vmax.f32 %v631, 0.0
        %v698 = vmax.f32 %v636, 0.0
        %v699 = vmax.f32 %v641, 0.0
        %v700 = vmax.f32 %v646, 0.0
        %v701 = vmax.f32 %v651, 0.0
        %v702 = vmax.f32 %v656, 0.0
        %v703 = vmax.f32 %v661, 0.0
        %v704 = vmax.f32 %v666, 0.0
        %v705 = vmax.f32 %v671, 0.0
        %v706 = vmax.f32 %v676, 0.0
        %v707 = vmax.f32 %v681, 0.0
        %vm708 = vcmask 138240
        %709 = vst.msk [vmem:[#allocation2] sm:$0xff] %vm708, %v684
        %710 = vst.msk [vmem:[#allocation2 + $0x8] sm:$0xff] %vm708, %v685
        %711 = vst.msk [vmem:[#allocation2 + $0x10] sm:$0xff] %vm708, %v686
        %712 = vst.msk [vmem:[#allocation2 + $0x18] sm:$0xff] %vm708, %v687
        %713 = vst.msk [vmem:[#allocation2 + $0x20] sm:$0xff] %vm708, %v688
        %714 = vst.msk [vmem:[#allocation2 + $0x28] sm:$0xff] %vm708, %v689
        %715 = vst.msk [vmem:[#allocation2 + $0x30] sm:$0xff] %vm708, %v690
        %716 = vst.msk [vmem:[#allocation2 + $0x38] sm:$0xff] %vm708, %v691
        %717 = vst.msk [vmem:[#allocation2 + $0x40] sm:$0xff] %vm708, %v692
        %718 = vst.msk [vmem:[#allocation2 + $0x48] sm:$0xff] %vm708, %v693
        %719 = vst.msk [vmem:[#allocation2 + $0x50] sm:$0xff] %vm708, %v694
        %720 = vst.msk [vmem:[#allocation2 + $0x58] sm:$0xff] %vm708, %v695
        %721 = vst.msk [vmem:[#allocation2 + $0x60] sm:$0xff] %vm708, %v696
        %722 = vst.msk [vmem:[#allocation2 + $0x68] sm:$0xff] %vm708, %v697
        %723 = vst.msk [vmem:[#allocation2 + $0x70] sm:$0xff] %vm708, %v698
        %724 = vst.msk [vmem:[#allocation2 + $0x78] sm:$0xff] %vm708, %v699
        %725 = vst.msk [vmem:[#allocation2 + $0x80] sm:$0xff] %vm708, %v700
        %726 = vst.msk [vmem:[#allocation2 + $0x88] sm:$0xff] %vm708, %v701
        %727 = vst.msk [vmem:[#allocation2 + $0x90] sm:$0xff] %vm708, %v702
        %728 = vst.msk [vmem:[#allocation2 + $0x98] sm:$0xff] %vm708, %v703
        %729 = vst.msk [vmem:[#allocation2 + $0xa0] sm:$0xff] %vm708, %v704
        %730 = vst.msk [vmem:[#allocation2 + $0xa8] sm:$0xff] %vm708, %v705
        %731 = vst.msk [vmem:[#allocation2 + $0xb0] sm:$0xff] %vm708, %v706
        %732 = vst.msk [vmem:[#allocation2 + $0xb8] sm:$0xff] %vm708, %v707
        %v733 = vld [vmem:[%s384 + $0xc0] sm:$0xff]
        %v734 = vld [vmem:[%s384 + $0xc8] sm:$0xff]
        %v735 = vld [vmem:[%s384 + $0xd0] sm:$0xff]
        %v736 = vld [vmem:[%s384 + $0xd8] sm:$0xff]
        %v737 = vld [vmem:[%s384 + $0xe0] sm:$0xff]
        %v738 = vld [vmem:[%s384 + $0xe8] sm:$0xff]
        %v739 = vld [vmem:[%s384 + $0xf0] sm:$0xff]
        %v740 = vld [vmem:[%s384 + $0xf8] sm:$0xff]
        %v741 = vld [vmem:[%s384 + $0x100] sm:$0xff]
        %v742 = vld [vmem:[%s384 + $0x108] sm:$0xff]
        %v743 = vld [vmem:[%s384 + $0x110] sm:$0xff]
        %v744 = vld [vmem:[%s384 + $0x118] sm:$0xff]
        %v745 = vld [vmem:[%s384 + $0x120] sm:$0xff]
        %v746 = vld [vmem:[%s384 + $0x128] sm:$0xff]
        %v747 = vld [vmem:[%s384 + $0x130] sm:$0xff]
        %v748 = vld [vmem:[%s384 + $0x138] sm:$0xff]
        %v749 = vld [vmem:[%s384 + $0x140] sm:$0xff]
        %v750 = vld [vmem:[%s384 + $0x148] sm:$0xff]
        %v751 = vld [vmem:[%s384 + $0x150] sm:$0xff]
        %v752 = vld [vmem:[%s384 + $0x158] sm:$0xff]
        %v753 = vld [vmem:[%s384 + $0x160] sm:$0xff]
        %v754 = vld [vmem:[%s384 + $0x168] sm:$0xff]
        %v755 = vld [vmem:[%s384 + $0x170] sm:$0xff]
        %v756 = vld [vmem:[%s384 + $0x178] sm:$0xff]
        %v757 = vld [vmem:[%s1] sm:$0xff]
        %v758 = vld [vmem:[%s1 + $0x8] sm:$0xff]
        %v759 = vld [vmem:[%s1 + $0x10] sm:$0xff]
        %v760 = vld [vmem:[%s1 + $0x18] sm:$0xff]
        %v761 = vld [vmem:[%s1 + $0x20] sm:$0xff]
        %v762 = vld [vmem:[%s1 + $0x28] sm:$0xff]
        %v763 = vld [vmem:[%s1 + $0x30] sm:$0xff]
        %v764 = vld [vmem:[%s1 + $0x38] sm:$0xff]
        %v765 = vld [vmem:[%s1 + $0x40] sm:$0xff]
        %v766 = vld [vmem:[%s1 + $0x48] sm:$0xff]
        %v767 = vld [vmem:[%s7] sm:$0x1]
        %v769 = vlaneseq
        %v770 = vshrl.u32 %v769, 7
        %v771 = vsub.s32 0, %v770
        %v772 = vrot.slane %v767, %v771
        %v775 = vsel %vm426, %v733, 0
        %v778 = vsel %vm426, %v734, 0
        %v781 = vsel %vm426, %v735, 0
        %v784 = vsel %vm426, %v736, 0
        %v787 = vsel %vm426, %v737, 0
        %v790 = vsel %vm426, %v738, 0
        %v793 = vsel %vm426, %v739, 0
        %v796 = vsel %vm426, %v740, 0
        %v799 = vsel %vm426, %v741, 0
        %v802 = vsel %vm426, %v742, 0
        %v805 = vsel %vm426, %v743, 0
        %v808 = vsel %vm426, %v744, 0
        %v811 = vsel %vm426, %v745, 0
        %v814 = vsel %vm426, %v746, 0
        %v817 = vsel %vm426, %v747, 0
        %v820 = vsel %vm426, %v748, 0
        %v823 = vsel %vm426, %v749, 0
        %v826 = vsel %vm426, %v750, 0
        %v829 = vsel %vm426, %v751, 0
        %v832 = vsel %vm426, %v752, 0
        %v835 = vsel %vm426, %v753, 0
        %v838 = vsel %vm426, %v754, 0
        %v841 = vsel %vm426, %v755, 0
        %v844 = vsel %vm426, %v756, 0
        %846 = vmatprep.subr.mxu0 0.0
        %847 = vmatpush1.msra.mxu0 %v757
        %848 = vmatprep.subr.mxu0 0.0
        %849 = vmatpush1.msra.mxu0 %v758
        %850 = vmatprep.subr.mxu0 0.0
        %851 = vmatpush1.msra.mxu0 %v759
        %852 = vmatprep.subr.mxu0 0.0
        %853 = vmatpush1.msra.mxu0 %v760
        %854 = vmatprep.subr.mxu0 0.0
        %855 = vmatpush1.msra.mxu0 %v761
        %856 = vmatprep.subr.mxu0 0.0
        %857 = vmatpush1.msra.mxu0 %v762
        %858 = vmatprep.subr.mxu0 0.0
        %859 = vmatpush1.msra.mxu0 %v763
        %860 = vmatprep.subr.mxu0 0.0
        %861 = vmatpush1.msra.mxu0 %v764
        %862 = vmatprep.subr.mxu0 0.0
        %863 = vmatpush1.msra.mxu0 %v765
        %864 = vmatprep.subr.mxu0 0.0
        %865 = vmatpush1.msra.mxu0 %v766
        %866 = vmatprep.subr.mxu0 0.0
        %867 = vmatpush1.msra.mxu0 0.0
        %868 = vmatprep.subr.mxu0 0.0
        %869 = vmatpush1.msra.mxu0 0.0
        %870 = vmatprep.subr.mxu0 0.0
        %871 = vmatpush1.msra.mxu0 0.0
        %872 = vmatprep.subr.mxu0 0.0
        %873 = vmatpush1.msra.mxu0 0.0
        %874 = vmatprep.subr.mxu0 0.0
        %875 = vmatpush1.msra.mxu0 0.0
        %876 = vmatprep.subr.mxu0 0.0
        %877 = vmatpush1.msra.mxu0 0.0
        %878 = vmatprep.subr.mxu0 0.0
        %879 = vmatpush1.msra.mxu0 0.0
        %880 = vmatprep.subr.mxu0 0.0
        %881 = vmatpush1.msra.mxu0 0.0
        %882 = vmatprep.subr.mxu0 0.0
        %883 = vmatpush1.msra.mxu0 0.0
        %884 = vmatprep.subr.mxu0 0.0
        %885 = vmatpush1.msra.mxu0 0.0
        %886 = vmatprep.subr.mxu0 0.0
        %887 = vmatpush1.msra.mxu0 0.0
        %888 = vmatprep.subr.mxu0 0.0
        %889 = vmatpush1.msra.mxu0 0.0
        %890 = vmatprep.subr.mxu0 0.0
        %891 = vmatpush1.msra.mxu0 0.0
        %892 = vmatprep.subr.mxu0 0.0
        %893 = vmatpush1.msra.mxu0 0.0
        %894 = vmatprep.subr.mxu0 0.0
        %895 = vmatpush1.msra.mxu0 0.0
        %896 = vmatprep.subr.mxu0 0.0
        %897 = vmatpush1.msra.mxu0 0.0
        %898 = vmatprep.subr.mxu0 0.0
        %899 = vmatpush1.msra.mxu0 0.0
        %900 = vmatprep.subr.mxu0 0.0
        %901 = vmatpush1.msra.mxu0 0.0
        %902 = vmatprep.subr.mxu0 0.0
        %903 = vmatpush1.msra.mxu0 0.0
        %904 = vmatprep.subr.mxu0 0.0
        %905 = vmatpush1.msra.mxu0 0.0
        %906 = vmatprep.subr.mxu0 0.0
        %907 = vmatpush1.msra.mxu0 0.0
        %908 = vmatprep.subr.mxu0 0.0
        %909 = vmatpush1.msra.mxu0 0.0
        %910 = vmatprep.mubr.f32.mxu0 0.0
        %911 = vmatmul.mubr.f32.gmra.mrb[0].mxu0 %v775
        %v912 = vpop.f32.mrb[0].mxu0
        %v913 = vadd.f32 %v772, %v912
        %v914 = vpop.f32.mrb[0].mxu0
        %915 = vmatprep.mubr.f32.mxu0 0.0
        %916 = vmatmul.mubr.f32.gmra.mrb[0].mxu0 %v778
        %v917 = vpop.f32.mrb[0].mxu0
        %v918 = vadd.f32 %v772, %v917
        %v919 = vpop.f32.mrb[0].mxu0
        %920 = vmatprep.mubr.f32.mxu0 0.0
        %921 = vmatmul.mubr.f32.gmra.mrb[0].mxu0 %v781
        %v922 = vpop.f32.mrb[0].mxu0
        %v923 = vadd.f32 %v772, %v922
        %v924 = vpop.f32.mrb[0].mxu0
        %925 = vmatprep.mubr.f32.mxu0 0.0
        %926 = vmatmul.mubr.f32.gmra.mrb[0].mxu0 %v784
        %v927 = vpop.f32.mrb[0].mxu0
        %v928 = vadd.f32 %v772, %v927
        %v929 = vpop.f32.mrb[0].mxu0
        %930 = vmatprep.mubr.f32.mxu0 0.0
        %931 = vmatmul.mubr.f32.gmra.mrb[0].mxu0 %v787
        %v932 = vpop.f32.mrb[0].mxu0
        %v933 = vadd.f32 %v772, %v932
        %v934 = vpop.f32.mrb[0].mxu0
        %935 = vmatprep.mubr.f32.mxu0 0.0
        %936 = vmatmul.mubr.f32.gmra.mrb[0].mxu0 %v790
        %v937 = vpop.f32.mrb[0].mxu0
        %v938 = vadd.f32 %v772, %v937
        %v939 = vpop.f32.mrb[0].mxu0
        %940 = vmatprep.mubr.f32.mxu0 0.0
        %941 = vmatmul.mubr.f32.gmra.mrb[0].mxu0 %v793
        %v942 = vpop.f32.mrb[0].mxu0
        %v943 = vadd.f32 %v772, %v942
        %v944 = vpop.f32.mrb[0].mxu0
        %945 = vmatprep.mubr.f32.mxu0 0.0
        %946 = vmatmul.mubr.f32.gmra.mrb[0].mxu0 %v796
        %v947 = vpop.f32.mrb[0].mxu0
        %v948 = vadd.f32 %v772, %v947
        %v949 = vpop.f32.mrb[0].mxu0
        %950 = vmatprep.mubr.f32.mxu0 0.0
        %951 = vmatmul.mubr.f32.gmra.mrb[0].mxu0 %v799
        %v952 = vpop.f32.mrb[0].mxu0
        %v953 = vadd.f32 %v772, %v952
        %v954 = vpop.f32.mrb[0].mxu0
        %955 = vmatprep.mubr.f32.mxu0 0.0
        %956 = vmatmul.mubr.f32.gmra.mrb[0].mxu0 %v802
        %v957 = vpop.f32.mrb[0].mxu0
        %v958 = vadd.f32 %v772, %v957
        %v959 = vpop.f32.mrb[0].mxu0
        %960 = vmatprep.mubr.f32.mxu0 0.0
        %961 = vmatmul.mubr.f32.gmra.mrb[0].mxu0 %v805
        %v962 = vpop.f32.mrb[0].mxu0
        %v963 = vadd.f32 %v772, %v962
        %v964 = vpop.f32.mrb[0].mxu0
        %965 = vmatprep.mubr.f32.mxu0 0.0
        %966 = vmatmul.mubr.f32.gmra.mrb[0].mxu0 %v808
        %v967 = vpop.f32.mrb[0].mxu0
        %v968 = vadd.f32 %v772, %v967
        %v969 = vpop.f32.mrb[0].mxu0
        %970 = vmatprep.mubr.f32.mxu0 0.0
        %971 = vmatmul.mubr.f32.gmra.mrb[0].mxu0 %v811
        %v972 = vpop.f32.mrb[0].mxu0
        %v973 = vadd.f32 %v772, %v972
        %v974 = vpop.f32.mrb[0].mxu0
        %975 = vmatprep.mubr.f32.mxu0 0.0
        %976 = vmatmul.mubr.f32.gmra.mrb[0].mxu0 %v814
        %v977 = vpop.f32.mrb[0].mxu0
        %v978 = vadd.f32 %v772, %v977
        %v979 = vpop.f32.mrb[0].mxu0
        %980 = vmatprep.mubr.f32.mxu0 0.0
        %981 = vmatmul.mubr.f32.gmra.mrb[0].mxu0 %v817
        %v982 = vpop.f32.mrb[0].mxu0
        %v983 = vadd.f32 %v772, %v982
        %v984 = vpop.f32.mrb[0].mxu0
        %985 = vmatprep.mubr.f32.mxu0 0.0
        %986 = vmatmul.mubr.f32.gmra.mrb[0].mxu0 %v820
        %v987 = vpop.f32.mrb[0].mxu0
        %v988 = vadd.f32 %v772, %v987
        %v989 = vpop.f32.mrb[0].mxu0
        %990 = vmatprep.mubr.f32.mxu0 0.0
        %991 = vmatmul.mubr.f32.gmra.mrb[0].mxu0 %v823
        %v992 = vpop.f32.mrb[0].mxu0
        %v993 = vadd.f32 %v772, %v992
        %v994 = vpop.f32.mrb[0].mxu0
        %995 = vmatprep.mubr.f32.mxu0 0.0
        %996 = vmatmul.mubr.f32.gmra.mrb[0].mxu0 %v826
        %v997 = vpop.f32.mrb[0].mxu0
        %v998 = vadd.f32 %v772, %v997
        %v999 = vpop.f32.mrb[0].mxu0
        %1000 = vmatprep.mubr.f32.mxu0 0.0
        %1001 = vmatmul.mubr.f32.gmra.mrb[0].mxu0 %v829
        %v1002 = vpop.f32.mrb[0].mxu0
        %v1003 = vadd.f32 %v772, %v1002
        %v1004 = vpop.f32.mrb[0].mxu0
        %1005 = vmatprep.mubr.f32.mxu0 0.0
        %1006 = vmatmul.mubr.f32.gmra.mrb[0].mxu0 %v832
        %v1007 = vpop.f32.mrb[0].mxu0
        %v1008 = vadd.f32 %v772, %v1007
        %v1009 = vpop.f32.mrb[0].mxu0
        %1010 = vmatprep.mubr.f32.mxu0 0.0
        %1011 = vmatmul.mubr.f32.gmra.mrb[0].mxu0 %v835
        %v1012 = vpop.f32.mrb[0].mxu0
        %v1013 = vadd.f32 %v772, %v1012
        %v1014 = vpop.f32.mrb[0].mxu0
        %1015 = vmatprep.mubr.f32.mxu0 0.0
        %1016 = vmatmul.mubr.f32.gmra.mrb[0].mxu0 %v838
        %v1017 = vpop.f32.mrb[0].mxu0
        %v1018 = vadd.f32 %v772, %v1017
        %v1019 = vpop.f32.mrb[0].mxu0
        %1020 = vmatprep.mubr.f32.mxu0 0.0
        %1021 = vmatmul.mubr.f32.gmra.mrb[0].mxu0 %v841
        %v1022 = vpop.f32.mrb[0].mxu0
        %v1023 = vadd.f32 %v772, %v1022
        %v1024 = vpop.f32.mrb[0].mxu0
        %1025 = vmatprep.mubr.f32.mxu0 0.0
        %1026 = vmatmul.mubr.f32.gmra.mrb[0].mxu0 %v844
        %v1027 = vpop.f32.mrb[0].mxu0
        %v1028 = vadd.f32 %v772, %v1027
        %v1029 = vpop.f32.mrb[0].mxu0
        %1030 = vdwg.mxu0
        %v1031 = vmax.f32 %v913, 0.0
        %v1032 = vmax.f32 %v918, 0.0
        %v1033 = vmax.f32 %v923, 0.0
        %v1034 = vmax.f32 %v928, 0.0
        %v1035 = vmax.f32 %v933, 0.0
        %v1036 = vmax.f32 %v938, 0.0
        %v1037 = vmax.f32 %v943, 0.0
        %v1038 = vmax.f32 %v948, 0.0
        %v1039 = vmax.f32 %v953, 0.0
        %v1040 = vmax.f32 %v958, 0.0
        %v1041 = vmax.f32 %v963, 0.0
        %v1042 = vmax.f32 %v968, 0.0
        %v1043 = vmax.f32 %v973, 0.0
        %v1044 = vmax.f32 %v978, 0.0
        %v1045 = vmax.f32 %v983, 0.0
        %v1046 = vmax.f32 %v988, 0.0
        %v1047 = vmax.f32 %v993, 0.0
        %v1048 = vmax.f32 %v998, 0.0
        %v1049 = vmax.f32 %v1003, 0.0
        %v1050 = vmax.f32 %v1008, 0.0
        %v1051 = vmax.f32 %v1013, 0.0
        %v1052 = vmax.f32 %v1018, 0.0
        %v1053 = vmax.f32 %v1023, 0.0
        %v1054 = vmax.f32 %v1028, 0.0
        %1055 = vst.msk [vmem:[#allocation2 + $0xc0] sm:$0xff] %vm708, %v1031
        %1056 = vst.msk [vmem:[#allocation2 + $0xc8] sm:$0xff] %vm708, %v1032
        %1057 = vst.msk [vmem:[#allocation2 + $0xd0] sm:$0xff] %vm708, %v1033
        %1058 = vst.msk [vmem:[#allocation2 + $0xd8] sm:$0xff] %vm708, %v1034
        %1059 = vst.msk [vmem:[#allocation2 + $0xe0] sm:$0xff] %vm708, %v1035
        %1060 = vst.msk [vmem:[#allocation2 + $0xe8] sm:$0xff] %vm708, %v1036
        %1061 = vst.msk [vmem:[#allocation2 + $0xf0] sm:$0xff] %vm708, %v1037
        %1062 = vst.msk [vmem:[#allocation2 + $0xf8] sm:$0xff] %vm708, %v1038
        %1063 = vst.msk [vmem:[#allocation2 + $0x100] sm:$0xff] %vm708, %v1039
        %1064 = vst.msk [vmem:[#allocation2 + $0x108] sm:$0xff] %vm708, %v1040
        %1065 = vst.msk [vmem:[#allocation2 + $0x110] sm:$0xff] %vm708, %v1041
        %1066 = vst.msk [vmem:[#allocation2 + $0x118] sm:$0xff] %vm708, %v1042
        %1067 = vst.msk [vmem:[#allocation2 + $0x120] sm:$0xff] %vm708, %v1043
        %1068 = vst.msk [vmem:[#allocation2 + $0x128] sm:$0xff] %vm708, %v1044
        %1069 = vst.msk [vmem:[#allocation2 + $0x130] sm:$0xff] %vm708, %v1045
        %1070 = vst.msk [vmem:[#allocation2 + $0x138] sm:$0xff] %vm708, %v1046
        %1071 = vst.msk [vmem:[#allocation2 + $0x140] sm:$0xff] %vm708, %v1047
        %1072 = vst.msk [vmem:[#allocation2 + $0x148] sm:$0xff] %vm708, %v1048
        %1073 = vst.msk [vmem:[#allocation2 + $0x150] sm:$0xff] %vm708, %v1049
        %1074 = vst.msk [vmem:[#allocation2 + $0x158] sm:$0xff] %vm708, %v1050
        %1075 = vst.msk [vmem:[#allocation2 + $0x160] sm:$0xff] %vm708, %v1051
        %1076 = vst.msk [vmem:[#allocation2 + $0x168] sm:$0xff] %vm708, %v1052
        %1077 = vst.msk [vmem:[#allocation2 + $0x170] sm:$0xff] %vm708, %v1053
        %1078 = vst.msk [vmem:[#allocation2 + $0x178] sm:$0xff] %vm708, %v1054
        %v1079 = vld [vmem:[%s384 + $0x180] sm:$0xff]
        %v1080 = vld [vmem:[%s384 + $0x188] sm:$0xff]
        %v1081 = vld [vmem:[%s384 + $0x190] sm:$0xff]
        %v1082 = vld [vmem:[%s384 + $0x198] sm:$0xff]
        %v1083 = vld [vmem:[%s384 + $0x1a0] sm:$0xff]
        %v1084 = vld [vmem:[%s384 + $0x1a8] sm:$0xff]
        %v1085 = vld [vmem:[%s384 + $0x1b0] sm:$0xff]
        %v1086 = vld [vmem:[%s384 + $0x1b8] sm:$0xff]
        %v1087 = vld [vmem:[%s384 + $0x1c0] sm:$0xff]
        %v1088 = vld [vmem:[%s384 + $0x1c8] sm:$0xff]
        %v1089 = vld [vmem:[%s384 + $0x1d0] sm:$0xff]
        %v1090 = vld [vmem:[%s384 + $0x1d8] sm:$0xff]
        %v1091 = vld [vmem:[%s384 + $0x1e0] sm:$0xff]
        %v1092 = vld [vmem:[%s384 + $0x1e8] sm:$0xff]
        %v1093 = vld [vmem:[%s384 + $0x1f0] sm:$0xff]
        %v1094 = vld [vmem:[%s384 + $0x1f8] sm:$0xff]
        %v1095 = vld [vmem:[%s384 + $0x200] sm:$0xff]
        %v1096 = vld [vmem:[%s384 + $0x208] sm:$0xff]
        %v1097 = vld [vmem:[%s384 + $0x210] sm:$0xff]
        %v1098 = vld [vmem:[%s384 + $0x218] sm:$0xff]
        %v1099 = vld [vmem:[%s384 + $0x220] sm:$0xff]
        %v1100 = vld [vmem:[%s384 + $0x228] sm:$0xff]
        %v1101 = vld [vmem:[%s384 + $0x230] sm:$0xff]
        %v1102 = vld [vmem:[%s384 + $0x238] sm:$0xff]
        %v1103 = vld [vmem:[%s1] sm:$0xff]
        %v1104 = vld [vmem:[%s1 + $0x8] sm:$0xff]
        %v1105 = vld [vmem:[%s1 + $0x10] sm:$0xff]
        %v1106 = vld [vmem:[%s1 + $0x18] sm:$0xff]
        %v1107 = vld [vmem:[%s1 + $0x20] sm:$0xff]
        %v1108 = vld [vmem:[%s1 + $0x28] sm:$0xff]
        %v1109 = vld [vmem:[%s1 + $0x30] sm:$0xff]
        %v1110 = vld [vmem:[%s1 + $0x38] sm:$0xff]
        %v1111 = vld [vmem:[%s1 + $0x40] sm:$0xff]
        %v1112 = vld [vmem:[%s1 + $0x48] sm:$0xff]
        %v1113 = vld [vmem:[%s7] sm:$0x1]
        %v1115 = vlaneseq
        %v1116 = vshrl.u32 %v1115, 7
        %v1117 = vsub.s32 0, %v1116
        %v1118 = vrot.slane %v1113, %v1117
        %v1121 = vsel %vm426, %v1079, 0
        %v1124 = vsel %vm426, %v1080, 0
        %v1127 = vsel %vm426, %v1081, 0
        %v1130 = vsel %vm426, %v1082, 0
        %v1133 = vsel %vm426, %v1083, 0
        %v1136 = vsel %vm426, %v1084, 0
        %v1139 = vsel %vm426, %v1085, 0
        %v1142 = vsel %vm426, %v1086, 0
        %v1145 = vsel %vm426, %v1087, 0
        %v1148 = vsel %vm426, %v1088, 0
        %v1151 = vsel %vm426, %v1089, 0
        %v1154 = vsel %vm426, %v1090, 0
        %v1157 = vsel %vm426, %v1091, 0
        %v1160 = vsel %vm426, %v1092, 0
        %v1163 = vsel %vm426, %v1093, 0
        %v1166 = vsel %vm426, %v1094, 0
        %v1169 = vsel %vm426, %v1095, 0
        %v1172 = vsel %vm426, %v1096, 0
        %v1175 = vsel %vm426, %v1097, 0
        %v1178 = vsel %vm426, %v1098, 0
        %v1181 = vsel %vm426, %v1099, 0
        %v1184 = vsel %vm426, %v1100, 0
        %v1187 = vsel %vm426, %v1101, 0
        %v1190 = vsel %vm426, %v1102, 0
        %1192 = vmatprep.subr.mxu0 0.0
        %1193 = vmatpush1.msra.mxu0 %v1103
        %1194 = vmatprep.subr.mxu0 0.0
        %1195 = vmatpush1.msra.mxu0 %v1104
        %1196 = vmatprep.subr.mxu0 0.0
        %1197 = vmatpush1.msra.mxu0 %v1105
        %1198 = vmatprep.subr.mxu0 0.0
        %1199 = vmatpush1.msra.mxu0 %v1106
        %1200 = vmatprep.subr.mxu0 0.0
        %1201 = vmatpush1.msra.mxu0 %v1107
        %1202 = vmatprep.subr.mxu0 0.0
        %1203 = vmatpush1.msra.mxu0 %v1108
        %1204 = vmatprep.subr.mxu0 0.0
        %1205 = vmatpush1.msra.mxu0 %v1109
        %1206 = vmatprep.subr.mxu0 0.0
        %1207 = vmatpush1.msra.mxu0 %v1110
        %1208 = vmatprep.subr.mxu0 0.0
        %1209 = vmatpush1.msra.mxu0 %v1111
        %1210 = vmatprep.subr.mxu0 0.0
        %1211 = vmatpush1.msra.mxu0 %v1112
        %1212 = vmatprep.subr.mxu0 0.0
        %1213 = vmatpush1.msra.mxu0 0.0
        %1214 = vmatprep.subr.mxu0 0.0
        %1215 = vmatpush1.msra.mxu0 0.0
        %1216 = vmatprep.subr.mxu0 0.0
        %1217 = vmatpush1.msra.mxu0 0.0
        %1218 = vmatprep.subr.mxu0 0.0
        %1219 = vmatpush1.msra.mxu0 0.0
        %1220 = vmatprep.subr.mxu0 0.0
        %1221 = vmatpush1.msra.mxu0 0.0
        %1222 = vmatprep.subr.mxu0 0.0
        %1223 = vmatpush1.msra.mxu0 0.0
        %1224 = vmatprep.subr.mxu0 0.0
        %1225 = vmatpush1.msra.mxu0 0.0
        %1226 = vmatprep.subr.mxu0 0.0
        %1227 = vmatpush1.msra.mxu0 0.0
        %1228 = vmatprep.subr.mxu0 0.0
        %1229 = vmatpush1.msra.mxu0 0.0
        %1230 = vmatprep.subr.mxu0 0.0
        %1231 = vmatpush1.msra.mxu0 0.0
        %1232 = vmatprep.subr.mxu0 0.0
        %1233 = vmatpush1.msra.mxu0 0.0
        %1234 = vmatprep.subr.mxu0 0.0
        %1235 = vmatpush1.msra.mxu0 0.0
        %1236 = vmatprep.subr.mxu0 0.0
        %1237 = vmatpush1.msra.mxu0 0.0
        %1238 = vmatprep.subr.mxu0 0.0
        %1239 = vmatpush1.msra.mxu0 0.0
        %1240 = vmatprep.subr.mxu0 0.0
        %1241 = vmatpush1.msra.mxu0 0.0
        %1242 = vmatprep.subr.mxu0 0.0
        %1243 = vmatpush1.msra.mxu0 0.0
        %1244 = vmatprep.subr.mxu0 0.0
        %1245 = vmatpush1.msra.mxu0 0.0
        %1246 = vmatprep.subr.mxu0 0.0
        %1247 = vmatpush1.msra.mxu0 0.0
        %1248 = vmatprep.subr.mxu0 0.0
        %1249 = vmatpush1.msra.mxu0 0.0
        %1250 = vmatprep.subr.mxu0 0.0
        %1251 = vmatpush1.msra.mxu0 0.0
        %1252 = vmatprep.subr.mxu0 0.0
        %1253 = vmatpush1.msra.mxu0 0.0
        %1254 = vmatprep.subr.mxu0 0.0
        %1255 = vmatpush1.msra.mxu0 0.0
        %1256 = vmatprep.mubr.f32.mxu0 0.0
        %1257 = vmatmul.mubr.f32.gmra.mrb[0].mxu0 %v1121
        %v1258 = vpop.f32.mrb[0].mxu0
        %v1259 = vadd.f32 %v1118, %v1258
        %v1260 = vpop.f32.mrb[0].mxu0
        %1261 = vmatprep.mubr.f32.mxu0 0.0
        %1262 = vmatmul.mubr.f32.gmra.mrb[0].mxu0 %v1124
        %v1263 = vpop.f32.mrb[0].mxu0
        %v1264 = vadd.f32 %v1118, %v1263
        %v1265 = vpop.f32.mrb[0].mxu0
        %1266 = vmatprep.mubr.f32.mxu0 0.0
        %1267 = vmatmul.mubr.f32.gmra.mrb[0].mxu0 %v1127
        %v1268 = vpop.f32.mrb[0].mxu0
        %v1269 = vadd.f32 %v1118, %v1268
        %v1270 = vpop.f32.mrb[0].mxu0
        %1271 = vmatprep.mubr.f32.mxu0 0.0
        %1272 = vmatmul.mubr.f32.gmra.mrb[0].mxu0 %v1130
        %v1273 = vpop.f32.mrb[0].mxu0
        %v1274 = vadd.f32 %v1118, %v1273
        %v1275 = vpop.f32.mrb[0].mxu0
        %1276 = vmatprep.mubr.f32.mxu0 0.0
        %1277 = vmatmul.mubr.f32.gmra.mrb[0].mxu0 %v1133
        %v1278 = vpop.f32.mrb[0].mxu0
        %v1279 = vadd.f32 %v1118, %v1278
        %v1280 = vpop.f32.mrb[0].mxu0
        %1281 = vmatprep.mubr.f32.mxu0 0.0
        %1282 = vmatmul.mubr.f32.gmra.mrb[0].mxu0 %v1136
        %v1283 = vpop.f32.mrb[0].mxu0
        %v1284 = vadd.f32 %v1118, %v1283
        %v1285 = vpop.f32.mrb[0].mxu0
        %1286 = vmatprep.mubr.f32.mxu0 0.0
        %1287 = vmatmul.mubr.f32.gmra.mrb[0].mxu0 %v1139
        %v1288 = vpop.f32.mrb[0].mxu0
        %v1289 = vadd.f32 %v1118, %v1288
        %v1290 = vpop.f32.mrb[0].mxu0
        %1291 = vmatprep.mubr.f32.mxu0 0.0
        %1292 = vmatmul.mubr.f32.gmra.mrb[0].mxu0 %v1142
        %v1293 = vpop.f32.mrb[0].mxu0
        %v1294 = vadd.f32 %v1118, %v1293
        %v1295 = vpop.f32.mrb[0].mxu0
        %1296 = vmatprep.mubr.f32.mxu0 0.0
        %1297 = vmatmul.mubr.f32.gmra.mrb[0].mxu0 %v1145
        %v1298 = vpop.f32.mrb[0].mxu0
        %v1299 = vadd.f32 %v1118, %v1298
        %v1300 = vpop.f32.mrb[0].mxu0
        %1301 = vmatprep.mubr.f32.mxu0 0.0
        %1302 = vmatmul.mubr.f32.gmra.mrb[0].mxu0 %v1148
        %v1303 = vpop.f32.mrb[0].mxu0
        %v1304 = vadd.f32 %v1118, %v1303
        %v1305 = vpop.f32.mrb[0].mxu0
        %1306 = vmatprep.mubr.f32.mxu0 0.0
        %1307 = vmatmul.mubr.f32.gmra.mrb[0].mxu0 %v1151
        %v1308 = vpop.f32.mrb[0].mxu0
        %v1309 = vadd.f32 %v1118, %v1308
        %v1310 = vpop.f32.mrb[0].mxu0
        %1311 = vmatprep.mubr.f32.mxu0 0.0
        %1312 = vmatmul.mubr.f32.gmra.mrb[0].mxu0 %v1154
        %v1313 = vpop.f32.mrb[0].mxu0
        %v1314 = vadd.f32 %v1118, %v1313
        %v1315 = vpop.f32.mrb[0].mxu0
        %1316 = vmatprep.mubr.f32.mxu0 0.0
        %1317 = vmatmul.mubr.f32.gmra.mrb[0].mxu0 %v1157
        %v1318 = vpop.f32.mrb[0].mxu0
        %v1319 = vadd.f32 %v1118, %v1318
        %v1320 = vpop.f32.mrb[0].mxu0
        %1321 = vmatprep.mubr.f32.mxu0 0.0
        %1322 = vmatmul.mubr.f32.gmra.mrb[0].mxu0 %v1160
        %v1323 = vpop.f32.mrb[0].mxu0
        %v1324 = vadd.f32 %v1118, %v1323
        %v1325 = vpop.f32.mrb[0].mxu0
        %1326 = vmatprep.mubr.f32.mxu0 0.0
        %1327 = vmatmul.mubr.f32.gmra.mrb[0].mxu0 %v1163
        %v1328 = vpop.f32.mrb[0].mxu0
        %v1329 = vadd.f32 %v1118, %v1328
        %v1330 = vpop.f32.mrb[0].mxu0
        %1331 = vmatprep.mubr.f32.mxu0 0.0
        %1332 = vmatmul.mubr.f32.gmra.mrb[0].mxu0 %v1166
        %v1333 = vpop.f32.mrb[0].mxu0
        %v1334 = vadd.f32 %v1118, %v1333
        %v1335 = vpop.f32.mrb[0].mxu0
        %1336 = vmatprep.mubr.f32.mxu0 0.0
        %1337 = vmatmul.mubr.f32.gmra.mrb[0].mxu0 %v1169
        %v1338 = vpop.f32.mrb[0].mxu0
        %v1339 = vadd.f32 %v1118, %v1338
        %v1340 = vpop.f32.mrb[0].mxu0
        %1341 = vmatprep.mubr.f32.mxu0 0.0
        %1342 = vmatmul.mubr.f32.gmra.mrb[0].mxu0 %v1172
        %v1343 = vpop.f32.mrb[0].mxu0
        %v1344 = vadd.f32 %v1118, %v1343
        %v1345 = vpop.f32.mrb[0].mxu0
        %1346 = vmatprep.mubr.f32.mxu0 0.0
        %1347 = vmatmul.mubr.f32.gmra.mrb[0].mxu0 %v1175
        %v1348 = vpop.f32.mrb[0].mxu0
        %v1349 = vadd.f32 %v1118, %v1348
        %v1350 = vpop.f32.mrb[0].mxu0
        %1351 = vmatprep.mubr.f32.mxu0 0.0
        %1352 = vmatmul.mubr.f32.gmra.mrb[0].mxu0 %v1178
        %v1353 = vpop.f32.mrb[0].mxu0
        %v1354 = vadd.f32 %v1118, %v1353
        %v1355 = vpop.f32.mrb[0].mxu0
        %1356 = vmatprep.mubr.f32.mxu0 0.0
        %1357 = vmatmul.mubr.f32.gmra.mrb[0].mxu0 %v1181
        %v1358 = vpop.f32.mrb[0].mxu0
        %v1359 = vadd.f32 %v1118, %v1358
        %v1360 = vpop.f32.mrb[0].mxu0
        %1361 = vmatprep.mubr.f32.mxu0 0.0
        %1362 = vmatmul.mubr.f32.gmra.mrb[0].mxu0 %v1184
        %v1363 = vpop.f32.mrb[0].mxu0
        %v1364 = vadd.f32 %v1118, %v1363
        %v1365 = vpop.f32.mrb[0].mxu0
        %1366 = vmatprep.mubr.f32.mxu0 0.0
        %1367 = vmatmul.mubr.f32.gmra.mrb[0].mxu0 %v1187
        %v1368 = vpop.f32.mrb[0].mxu0
        %v1369 = vadd.f32 %v1118, %v1368
        %v1370 = vpop.f32.mrb[0].mxu0
        %1371 = vmatprep.mubr.f32.mxu0 0.0
        %1372 = vmatmul.mubr.f32.gmra.mrb[0].mxu0 %v1190
        %v1373 = vpop.f32.mrb[0].mxu0
        %v1374 = vadd.f32 %v1118, %v1373
        %v1375 = vpop.f32.mrb[0].mxu0
        %1376 = vdwg.mxu0
        %v1377 = vmax.f32 %v1259, 0.0
        %v1378 = vmax.f32 %v1264, 0.0
        %v1379 = vmax.f32 %v1269, 0.0
        %v1380 = vmax.f32 %v1274, 0.0
        %v1381 = vmax.f32 %v1279, 0.0
        %v1382 = vmax.f32 %v1284, 0.0
        %v1383 = vmax.f32 %v1289, 0.0
        %v1384 = vmax.f32 %v1294, 0.0
        %v1385 = vmax.f32 %v1299, 0.0
        %v1386 = vmax.f32 %v1304, 0.0
        %v1387 = vmax.f32 %v1309, 0.0
        %v1388 = vmax.f32 %v1314, 0.0
        %v1389 = vmax.f32 %v1319, 0.0
        %v1390 = vmax.f32 %v1324, 0.0
        %v1391 = vmax.f32 %v1329, 0.0
        %v1392 = vmax.f32 %v1334, 0.0
        %v1393 = vmax.f32 %v1339, 0.0
        %v1394 = vmax.f32 %v1344, 0.0
        %v1395 = vmax.f32 %v1349, 0.0
        %v1396 = vmax.f32 %v1354, 0.0
        %v1397 = vmax.f32 %v1359, 0.0
        %v1398 = vmax.f32 %v1364, 0.0
        %v1399 = vmax.f32 %v1369, 0.0
        %v1400 = vmax.f32 %v1374, 0.0
        %1401 = vst.msk [vmem:[#allocation2 + $0x180] sm:$0xff] %vm708, %v1377
        %1402 = vst.msk [vmem:[#allocation2 + $0x188] sm:$0xff] %vm708, %v1378
        %1403 = vst.msk [vmem:[#allocation2 + $0x190] sm:$0xff] %vm708, %v1379
        %1404 = vst.msk [vmem:[#allocation2 + $0x198] sm:$0xff] %vm708, %v1380
        %1405 = vst.msk [vmem:[#allocation2 + $0x1a0] sm:$0xff] %vm708, %v1381
        %1406 = vst.msk [vmem:[#allocation2 + $0x1a8] sm:$0xff] %vm708, %v1382
        %1407 = vst.msk [vmem:[#allocation2 + $0x1b0] sm:$0xff] %vm708, %v1383
        %1408 = vst.msk [vmem:[#allocation2 + $0x1b8] sm:$0xff] %vm708, %v1384
        %1409 = vst.msk [vmem:[#allocation2 + $0x1c0] sm:$0xff] %vm708, %v1385
        %1410 = vst.msk [vmem:[#allocation2 + $0x1c8] sm:$0xff] %vm708, %v1386
        %1411 = vst.msk [vmem:[#allocation2 + $0x1d0] sm:$0xff] %vm708, %v1387
        %1412 = vst.msk [vmem:[#allocation2 + $0x1d8] sm:$0xff] %vm708, %v1388
        %1413 = vst.msk [vmem:[#allocation2 + $0x1e0] sm:$0xff] %vm708, %v1389
        %1414 = vst.msk [vmem:[#allocation2 + $0x1e8] sm:$0xff] %vm708, %v1390
        %1415 = vst.msk [vmem:[#allocation2 + $0x1f0] sm:$0xff] %vm708, %v1391
        %1416 = vst.msk [vmem:[#allocation2 + $0x1f8] sm:$0xff] %vm708, %v1392
        %1417 = vst.msk [vmem:[#allocation2 + $0x200] sm:$0xff] %vm708, %v1393
        %1418 = vst.msk [vmem:[#allocation2 + $0x208] sm:$0xff] %vm708, %v1394
        %1419 = vst.msk [vmem:[#allocation2 + $0x210] sm:$0xff] %vm708, %v1395
        %1420 = vst.msk [vmem:[#allocation2 + $0x218] sm:$0xff] %vm708, %v1396
        %1421 = vst.msk [vmem:[#allocation2 + $0x220] sm:$0xff] %vm708, %v1397
        %1422 = vst.msk [vmem:[#allocation2 + $0x228] sm:$0xff] %vm708, %v1398
        %1423 = vst.msk [vmem:[#allocation2 + $0x230] sm:$0xff] %vm708, %v1399
        %1424 = vst.msk [vmem:[#allocation2 + $0x238] sm:$0xff] %vm708, %v1400
        %v1425 = vld [vmem:[%s384 + $0x240] sm:$0xff]
        %v1426 = vld [vmem:[%s384 + $0x248] sm:$0xff]
        %v1427 = vld [vmem:[%s384 + $0x250] sm:$0xff]
        %v1428 = vld [vmem:[%s384 + $0x258] sm:$0xff]
        %v1429 = vld [vmem:[%s384 + $0x260] sm:$0xff]
        %v1430 = vld [vmem:[%s384 + $0x268] sm:$0xff]
        %v1431 = vld [vmem:[%s384 + $0x270] sm:$0xff]
        %v1432 = vld [vmem:[%s384 + $0x278] sm:$0xff]
        %v1433 = vld [vmem:[%s384 + $0x280] sm:$0xff]
        %v1434 = vld [vmem:[%s384 + $0x288] sm:$0xff]
        %v1435 = vld [vmem:[%s384 + $0x290] sm:$0xff]
        %v1436 = vld [vmem:[%s384 + $0x298] sm:$0xff]
        %v1437 = vld [vmem:[%s384 + $0x2a0] sm:$0xff]
        %v1438 = vld [vmem:[%s384 + $0x2a8] sm:$0xff]
        %v1439 = vld [vmem:[%s384 + $0x2b0] sm:$0xff]
        %v1440 = vld [vmem:[%s384 + $0x2b8] sm:$0xff]
        %v1441 = vld [vmem:[%s384 + $0x2c0] sm:$0xff]
        %v1442 = vld [vmem:[%s384 + $0x2c8] sm:$0xff]
        %v1443 = vld [vmem:[%s384 + $0x2d0] sm:$0xff]
        %v1444 = vld [vmem:[%s384 + $0x2d8] sm:$0xff]
        %v1445 = vld [vmem:[%s384 + $0x2e0] sm:$0xff]
        %v1446 = vld [vmem:[%s384 + $0x2e8] sm:$0xff]
        %v1447 = vld [vmem:[%s384 + $0x2f0] sm:$0xff]
        %v1448 = vld [vmem:[%s384 + $0x2f8] sm:$0xff]
        %v1449 = vld [vmem:[%s1] sm:$0xff]
        %v1450 = vld [vmem:[%s1 + $0x8] sm:$0xff]
        %v1451 = vld [vmem:[%s1 + $0x10] sm:$0xff]
        %v1452 = vld [vmem:[%s1 + $0x18] sm:$0xff]
        %v1453 = vld [vmem:[%s1 + $0x20] sm:$0xff]
        %v1454 = vld [vmem:[%s1 + $0x28] sm:$0xff]
        %v1455 = vld [vmem:[%s1 + $0x30] sm:$0xff]
        %v1456 = vld [vmem:[%s1 + $0x38] sm:$0xff]
        %v1457 = vld [vmem:[%s1 + $0x40] sm:$0xff]
        %v1458 = vld [vmem:[%s1 + $0x48] sm:$0xff]
        %v1459 = vld [vmem:[%s7] sm:$0x1]
        %v1461 = vlaneseq
        %v1462 = vshrl.u32 %v1461, 7
        %v1463 = vsub.s32 0, %v1462
        %v1464 = vrot.slane %v1459, %v1463
        %v1467 = vsel %vm426, %v1425, 0
        %v1470 = vsel %vm426, %v1426, 0
        %v1473 = vsel %vm426, %v1427, 0
        %v1476 = vsel %vm426, %v1428, 0
        %v1479 = vsel %vm426, %v1429, 0
        %v1482 = vsel %vm426, %v1430, 0
        %v1485 = vsel %vm426, %v1431, 0
        %v1488 = vsel %vm426, %v1432, 0
        %v1491 = vsel %vm426, %v1433, 0
        %v1494 = vsel %vm426, %v1434, 0
        %v1497 = vsel %vm426, %v1435, 0
        %v1500 = vsel %vm426, %v1436, 0
        %v1503 = vsel %vm426, %v1437, 0
        %v1506 = vsel %vm426, %v1438, 0
        %v1509 = vsel %vm426, %v1439, 0
        %v1512 = vsel %vm426, %v1440, 0
        %v1515 = vsel %vm426, %v1441, 0
        %v1518 = vsel %vm426, %v1442, 0
        %v1521 = vsel %vm426, %v1443, 0
        %v1524 = vsel %vm426, %v1444, 0
        %v1527 = vsel %vm426, %v1445, 0
        %v1530 = vsel %vm426, %v1446, 0
        %v1533 = vsel %vm426, %v1447, 0
        %v1536 = vsel %vm426, %v1448, 0
        %1538 = vmatprep.subr.mxu0 0.0
        %1539 = vmatpush1.msra.mxu0 %v1449
        %1540 = vmatprep.subr.mxu0 0.0
        %1541 = vmatpush1.msra.mxu0 %v1450
        %1542 = vmatprep.subr.mxu0 0.0
        %1543 = vmatpush1.msra.mxu0 %v1451
        %1544 = vmatprep.subr.mxu0 0.0
        %1545 = vmatpush1.msra.mxu0 %v1452
        %1546 = vmatprep.subr.mxu0 0.0
        %1547 = vmatpush1.msra.mxu0 %v1453
        %1548 = vmatprep.subr.mxu0 0.0
        %1549 = vmatpush1.msra.mxu0 %v1454
        %1550 = vmatprep.subr.mxu0 0.0
        %1551 = vmatpush1.msra.mxu0 %v1455
        %1552 = vmatprep.subr.mxu0 0.0
        %1553 = vmatpush1.msra.mxu0 %v1456
        %1554 = vmatprep.subr.mxu0 0.0
        %1555 = vmatpush1.msra.mxu0 %v1457
        %1556 = vmatprep.subr.mxu0 0.0
        %1557 = vmatpush1.msra.mxu0 %v1458
        %1558 = vmatprep.subr.mxu0 0.0
        %1559 = vmatpush1.msra.mxu0 0.0
        %1560 = vmatprep.subr.mxu0 0.0
        %1561 = vmatpush1.msra.mxu0 0.0
        %1562 = vmatprep.subr.mxu0 0.0
        %1563 = vmatpush1.msra.mxu0 0.0
        %1564 = vmatprep.subr.mxu0 0.0
        %1565 = vmatpush1.msra.mxu0 0.0
        %1566 = vmatprep.subr.mxu0 0.0
        %1567 = vmatpush1.msra.mxu0 0.0
        %1568 = vmatprep.subr.mxu0 0.0
        %1569 = vmatpush1.msra.mxu0 0.0
        %1570 = vmatprep.subr.mxu0 0.0
        %1571 = vmatpush1.msra.mxu0 0.0
        %1572 = vmatprep.subr.mxu0 0.0
        %1573 = vmatpush1.msra.mxu0 0.0
        %1574 = vmatprep.subr.mxu0 0.0
        %1575 = vmatpush1.msra.mxu0 0.0
        %1576 = vmatprep.subr.mxu0 0.0
        %1577 = vmatpush1.msra.mxu0 0.0
        %1578 = vmatprep.subr.mxu0 0.0
        %1579 = vmatpush1.msra.mxu0 0.0
        %1580 = vmatprep.subr.mxu0 0.0
        %1581 = vmatpush1.msra.mxu0 0.0
        %1582 = vmatprep.subr.mxu0 0.0
        %1583 = vmatpush1.msra.mxu0 0.0
        %1584 = vmatprep.subr.mxu0 0.0
        %1585 = vmatpush1.msra.mxu0 0.0
        %1586 = vmatprep.subr.mxu0 0.0
        %1587 = vmatpush1.msra.mxu0 0.0
        %1588 = vmatprep.subr.mxu0 0.0
        %1589 = vmatpush1.msra.mxu0 0.0
        %1590 = vmatprep.subr.mxu0 0.0
        %1591 = vmatpush1.msra.mxu0 0.0
        %1592 = vmatprep.subr.mxu0 0.0
        %1593 = vmatpush1.msra.mxu0 0.0
        %1594 = vmatprep.subr.mxu0 0.0
        %1595 = vmatpush1.msra.mxu0 0.0
        %1596 = vmatprep.subr.mxu0 0.0
        %1597 = vmatpush1.msra.mxu0 0.0
        %1598 = vmatprep.subr.mxu0 0.0
        %1599 = vmatpush1.msra.mxu0 0.0
        %1600 = vmatprep.subr.mxu0 0.0
        %1601 = vmatpush1.msra.mxu0 0.0
        %1602 = vmatprep.mubr.f32.mxu0 0.0
        %1603 = vmatmul.mubr.f32.gmra.mrb[0].mxu0 %v1467
        %v1604 = vpop.f32.mrb[0].mxu0
        %v1605 = vadd.f32 %v1464, %v1604
        %v1606 = vpop.f32.mrb[0].mxu0
        %1607 = vmatprep.mubr.f32.mxu0 0.0
        %1608 = vmatmul.mubr.f32.gmra.mrb[0].mxu0 %v1470
        %v1609 = vpop.f32.mrb[0].mxu0
        %v1610 = vadd.f32 %v1464, %v1609
        %v1611 = vpop.f32.mrb[0].mxu0
        %1612 = vmatprep.mubr.f32.mxu0 0.0
        %1613 = vmatmul.mubr.f32.gmra.mrb[0].mxu0 %v1473
        %v1614 = vpop.f32.mrb[0].mxu0
        %v1615 = vadd.f32 %v1464, %v1614
        %v1616 = vpop.f32.mrb[0].mxu0
        %1617 = vmatprep.mubr.f32.mxu0 0.0
        %1618 = vmatmul.mubr.f32.gmra.mrb[0].mxu0 %v1476
        %v1619 = vpop.f32.mrb[0].mxu0
        %v1620 = vadd.f32 %v1464, %v1619
        %v1621 = vpop.f32.mrb[0].mxu0
        %1622 = vmatprep.mubr.f32.mxu0 0.0
        %1623 = vmatmul.mubr.f32.gmra.mrb[0].mxu0 %v1479
        %v1624 = vpop.f32.mrb[0].mxu0
        %v1625 = vadd.f32 %v1464, %v1624
        %v1626 = vpop.f32.mrb[0].mxu0
        %1627 = vmatprep.mubr.f32.mxu0 0.0
        %1628 = vmatmul.mubr.f32.gmra.mrb[0].mxu0 %v1482
        %v1629 = vpop.f32.mrb[0].mxu0
        %v1630 = vadd.f32 %v1464, %v1629
        %v1631 = vpop.f32.mrb[0].mxu0
        %1632 = vmatprep.mubr.f32.mxu0 0.0
        %1633 = vmatmul.mubr.f32.gmra.mrb[0].mxu0 %v1485
        %v1634 = vpop.f32.mrb[0].mxu0
        %v1635 = vadd.f32 %v1464, %v1634
        %v1636 = vpop.f32.mrb[0].mxu0
        %1637 = vmatprep.mubr.f32.mxu0 0.0
        %1638 = vmatmul.mubr.f32.gmra.mrb[0].mxu0 %v1488
        %v1639 = vpop.f32.mrb[0].mxu0
        %v1640 = vadd.f32 %v1464, %v1639
        %v1641 = vpop.f32.mrb[0].mxu0
        %1642 = vmatprep.mubr.f32.mxu0 0.0
        %1643 = vmatmul.mubr.f32.gmra.mrb[0].mxu0 %v1491
        %v1644 = vpop.f32.mrb[0].mxu0
        %v1645 = vadd.f32 %v1464, %v1644
        %v1646 = vpop.f32.mrb[0].mxu0
        %1647 = vmatprep.mubr.f32.mxu0 0.0
        %1648 = vmatmul.mubr.f32.gmra.mrb[0].mxu0 %v1494
        %v1649 = vpop.f32.mrb[0].mxu0
        %v1650 = vadd.f32 %v1464, %v1649
        %v1651 = vpop.f32.mrb[0].mxu0
        %1652 = vmatprep.mubr.f32.mxu0 0.0
        %1653 = vmatmul.mubr.f32.gmra.mrb[0].mxu0 %v1497
        %v1654 = vpop.f32.mrb[0].mxu0
        %v1655 = vadd.f32 %v1464, %v1654
        %v1656 = vpop.f32.mrb[0].mxu0
        %1657 = vmatprep.mubr.f32.mxu0 0.0
        %1658 = vmatmul.mubr.f32.gmra.mrb[0].mxu0 %v1500
        %v1659 = vpop.f32.mrb[0].mxu0
        %v1660 = vadd.f32 %v1464, %v1659
        %v1661 = vpop.f32.mrb[0].mxu0
        %1662 = vmatprep.mubr.f32.mxu0 0.0
        %1663 = vmatmul.mubr.f32.gmra.mrb[0].mxu0 %v1503
        %v1664 = vpop.f32.mrb[0].mxu0
        %v1665 = vadd.f32 %v1464, %v1664
        %v1666 = vpop.f32.mrb[0].mxu0
        %1667 = vmatprep.mubr.f32.mxu0 0.0
        %1668 = vmatmul.mubr.f32.gmra.mrb[0].mxu0 %v1506
        %v1669 = vpop.f32.mrb[0].mxu0
        %v1670 = vadd.f32 %v1464, %v1669
        %v1671 = vpop.f32.mrb[0].mxu0
        %1672 = vmatprep.mubr.f32.mxu0 0.0
        %1673 = vmatmul.mubr.f32.gmra.mrb[0].mxu0 %v1509
        %v1674 = vpop.f32.mrb[0].mxu0
        %v1675 = vadd.f32 %v1464, %v1674
        %v1676 = vpop.f32.mrb[0].mxu0
        %1677 = vmatprep.mubr.f32.mxu0 0.0
        %1678 = vmatmul.mubr.f32.gmra.mrb[0].mxu0 %v1512
        %v1679 = vpop.f32.mrb[0].mxu0
        %v1680 = vadd.f32 %v1464, %v1679
        %v1681 = vpop.f32.mrb[0].mxu0
        %1682 = vmatprep.mubr.f32.mxu0 0.0
        %1683 = vmatmul.mubr.f32.gmra.mrb[0].mxu0 %v1515
        %v1684 = vpop.f32.mrb[0].mxu0
        %v1685 = vadd.f32 %v1464, %v1684
        %v1686 = vpop.f32.mrb[0].mxu0
        %1687 = vmatprep.mubr.f32.mxu0 0.0
        %1688 = vmatmul.mubr.f32.gmra.mrb[0].mxu0 %v1518
        %v1689 = vpop.f32.mrb[0].mxu0
        %v1690 = vadd.f32 %v1464, %v1689
        %v1691 = vpop.f32.mrb[0].mxu0
        %1692 = vmatprep.mubr.f32.mxu0 0.0
        %1693 = vmatmul.mubr.f32.gmra.mrb[0].mxu0 %v1521
        %v1694 = vpop.f32.mrb[0].mxu0
        %v1695 = vadd.f32 %v1464, %v1694
        %v1696 = vpop.f32.mrb[0].mxu0
        %1697 = vmatprep.mubr.f32.mxu0 0.0
        %1698 = vmatmul.mubr.f32.gmra.mrb[0].mxu0 %v1524
        %v1699 = vpop.f32.mrb[0].mxu0
        %v1700 = vadd.f32 %v1464, %v1699
        %v1701 = vpop.f32.mrb[0].mxu0
        %1702 = vmatprep.mubr.f32.mxu0 0.0
        %1703 = vmatmul.mubr.f32.gmra.mrb[0].mxu0 %v1527
        %v1704 = vpop.f32.mrb[0].mxu0
        %v1705 = vadd.f32 %v1464, %v1704
        %v1706 = vpop.f32.mrb[0].mxu0
        %1707 = vmatprep.mubr.f32.mxu0 0.0
        %1708 = vmatmul.mubr.f32.gmra.mrb[0].mxu0 %v1530
        %v1709 = vpop.f32.mrb[0].mxu0
        %v1710 = vadd.f32 %v1464, %v1709
        %v1711 = vpop.f32.mrb[0].mxu0
        %1712 = vmatprep.mubr.f32.mxu0 0.0
        %1713 = vmatmul.mubr.f32.gmra.mrb[0].mxu0 %v1533
        %v1714 = vpop.f32.mrb[0].mxu0
        %v1715 = vadd.f32 %v1464, %v1714
        %v1716 = vpop.f32.mrb[0].mxu0
        %1717 = vmatprep.mubr.f32.mxu0 0.0
        %1718 = vmatmul.mubr.f32.gmra.mrb[0].mxu0 %v1536
        %v1719 = vpop.f32.mrb[0].mxu0
        %v1720 = vadd.f32 %v1464, %v1719
        %v1721 = vpop.f32.mrb[0].mxu0
        %1722 = vdwg.mxu0
        %v1723 = vmax.f32 %v1605, 0.0
        %v1724 = vmax.f32 %v1610, 0.0
        %v1725 = vmax.f32 %v1615, 0.0
        %v1726 = vmax.f32 %v1620, 0.0
        %v1727 = vmax.f32 %v1625, 0.0
        %v1728 = vmax.f32 %v1630, 0.0
        %v1729 = vmax.f32 %v1635, 0.0
        %v1730 = vmax.f32 %v1640, 0.0
        %v1731 = vmax.f32 %v1645, 0.0
        %v1732 = vmax.f32 %v1650, 0.0
        %v1733 = vmax.f32 %v1655, 0.0
        %v1734 = vmax.f32 %v1660, 0.0
        %v1735 = vmax.f32 %v1665, 0.0
        %v1736 = vmax.f32 %v1670, 0.0
        %v1737 = vmax.f32 %v1675, 0.0
        %v1738 = vmax.f32 %v1680, 0.0
        %v1739 = vmax.f32 %v1685, 0.0
        %v1740 = vmax.f32 %v1690, 0.0
        %v1741 = vmax.f32 %v1695, 0.0
        %v1742 = vmax.f32 %v1700, 0.0
        %v1743 = vmax.f32 %v1705, 0.0
        %v1744 = vmax.f32 %v1710, 0.0
        %v1745 = vmax.f32 %v1715, 0.0
        %v1746 = vmax.f32 %v1720, 0.0
        %1747 = vst.msk [vmem:[#allocation2 + $0x240] sm:$0xff] %vm708, %v1723
        %1748 = vst.msk [vmem:[#allocation2 + $0x248] sm:$0xff] %vm708, %v1724
        %1749 = vst.msk [vmem:[#allocation2 + $0x250] sm:$0xff] %vm708, %v1725
        %1750 = vst.msk [vmem:[#allocation2 + $0x258] sm:$0xff] %vm708, %v1726
        %1751 = vst.msk [vmem:[#allocation2 + $0x260] sm:$0xff] %vm708, %v1727
        %1752 = vst.msk [vmem:[#allocation2 + $0x268] sm:$0xff] %vm708, %v1728
        %1753 = vst.msk [vmem:[#allocation2 + $0x270] sm:$0xff] %vm708, %v1729
        %1754 = vst.msk [vmem:[#allocation2 + $0x278] sm:$0xff] %vm708, %v1730
        %1755 = vst.msk [vmem:[#allocation2 + $0x280] sm:$0xff] %vm708, %v1731
        %1756 = vst.msk [vmem:[#allocation2 + $0x288] sm:$0xff] %vm708, %v1732
        %1757 = vst.msk [vmem:[#allocation2 + $0x290] sm:$0xff] %vm708, %v1733
        %1758 = vst.msk [vmem:[#allocation2 + $0x298] sm:$0xff] %vm708, %v1734
        %1759 = vst.msk [vmem:[#allocation2 + $0x2a0] sm:$0xff] %vm708, %v1735
        %1760 = vst.msk [vmem:[#allocation2 + $0x2a8] sm:$0xff] %vm708, %v1736
        %1761 = vst.msk [vmem:[#allocation2 + $0x2b0] sm:$0xff] %vm708, %v1737
        %1762 = vst.msk [vmem:[#allocation2 + $0x2b8] sm:$0xff] %vm708, %v1738
        %1763 = vst.msk [vmem:[#allocation2 + $0x2c0] sm:$0xff] %vm708, %v1739
        %1764 = vst.msk [vmem:[#allocation2 + $0x2c8] sm:$0xff] %vm708, %v1740
        %1765 = vst.msk [vmem:[#allocation2 + $0x2d0] sm:$0xff] %vm708, %v1741
        %1766 = vst.msk [vmem:[#allocation2 + $0x2d8] sm:$0xff] %vm708, %v1742
        %1767 = vst.msk [vmem:[#allocation2 + $0x2e0] sm:$0xff] %vm708, %v1743
        %1768 = vst.msk [vmem:[#allocation2 + $0x2e8] sm:$0xff] %vm708, %v1744
        %1769 = vst.msk [vmem:[#allocation2 + $0x2f0] sm:$0xff] %vm708, %v1745
        %1770 = vst.msk [vmem:[#allocation2 + $0x2f8] sm:$0xff] %vm708, %v1746
        %v1771 = vld [vmem:[%s384 + $0x300] sm:$0xff]
        %v1772 = vld [vmem:[%s384 + $0x308] sm:$0xff]
        %v1773 = vld [vmem:[%s384 + $0x310] sm:$0xff]
        %v1774 = vld [vmem:[%s384 + $0x318] sm:$0xff]
        %v1775 = vld [vmem:[%s384 + $0x320] sm:$0xff]
        %v1776 = vld [vmem:[%s384 + $0x328] sm:$0xff]
        %v1777 = vld [vmem:[%s384 + $0x330] sm:$0xff]
        %v1778 = vld [vmem:[%s384 + $0x338] sm:$0xff]
        %v1779 = vld [vmem:[%s384 + $0x340] sm:$0xff]
        %v1780 = vld [vmem:[%s384 + $0x348] sm:$0xff]
        %v1781 = vld [vmem:[%s384 + $0x350] sm:$0xff]
        %v1782 = vld [vmem:[%s384 + $0x358] sm:$0xff]
        %v1783 = vld [vmem:[%s384 + $0x360] sm:$0xff]
        %v1784 = vld [vmem:[%s384 + $0x368] sm:$0xff]
        %v1785 = vld [vmem:[%s384 + $0x370] sm:$0xff]
        %v1786 = vld [vmem:[%s384 + $0x378] sm:$0xff]
        %v1787 = vld [vmem:[%s384 + $0x380] sm:$0xff]
        %v1788 = vld [vmem:[%s384 + $0x388] sm:$0xff]
        %v1789 = vld [vmem:[%s384 + $0x390] sm:$0xff]
        %v1790 = vld [vmem:[%s384 + $0x398] sm:$0xff]
        %v1791 = vld [vmem:[%s384 + $0x3a0] sm:$0xff]
        %v1792 = vld [vmem:[%s384 + $0x3a8] sm:$0xff]
        %v1793 = vld [vmem:[%s384 + $0x3b0] sm:$0xff]
        %v1794 = vld [vmem:[%s384 + $0x3b8] sm:$0xff]
        %v1795 = vld [vmem:[%s1] sm:$0xff]
        %v1796 = vld [vmem:[%s1 + $0x8] sm:$0xff]
        %v1797 = vld [vmem:[%s1 + $0x10] sm:$0xff]
        %v1798 = vld [vmem:[%s1 + $0x18] sm:$0xff]
        %v1799 = vld [vmem:[%s1 + $0x20] sm:$0xff]
        %v1800 = vld [vmem:[%s1 + $0x28] sm:$0xff]
        %v1801 = vld [vmem:[%s1 + $0x30] sm:$0xff]
        %v1802 = vld [vmem:[%s1 + $0x38] sm:$0xff]
        %v1803 = vld [vmem:[%s1 + $0x40] sm:$0xff]
        %v1804 = vld [vmem:[%s1 + $0x48] sm:$0xff]
        %v1805 = vld [vmem:[%s7] sm:$0x1]
        %v1807 = vlaneseq
        %v1808 = vshrl.u32 %v1807, 7
        %v1809 = vsub.s32 0, %v1808
        %v1810 = vrot.slane %v1805, %v1809
        %v1813 = vsel %vm426, %v1771, 0
        %v1816 = vsel %vm426, %v1772, 0
        %v1819 = vsel %vm426, %v1773, 0
        %v1822 = vsel %vm426, %v1774, 0
        %v1825 = vsel %vm426, %v1775, 0
        %v1828 = vsel %vm426, %v1776, 0
        %v1831 = vsel %vm426, %v1777, 0
        %v1834 = vsel %vm426, %v1778, 0
        %v1837 = vsel %vm426, %v1779, 0
        %v1840 = vsel %vm426, %v1780, 0
        %v1843 = vsel %vm426, %v1781, 0
        %v1846 = vsel %vm426, %v1782, 0
        %v1849 = vsel %vm426, %v1783, 0
        %v1852 = vsel %vm426, %v1784, 0
        %v1855 = vsel %vm426, %v1785, 0
        %v1858 = vsel %vm426, %v1786, 0
        %v1861 = vsel %vm426, %v1787, 0
        %v1864 = vsel %vm426, %v1788, 0
        %v1867 = vsel %vm426, %v1789, 0
        %v1870 = vsel %vm426, %v1790, 0
        %v1873 = vsel %vm426, %v1791, 0
        %v1876 = vsel %vm426, %v1792, 0
        %v1879 = vsel %vm426, %v1793, 0
        %v1882 = vsel %vm426, %v1794, 0
        %1884 = vmatprep.subr.mxu0 0.0
        %1885 = vmatpush1.msra.mxu0 %v1795
        %1886 = vmatprep.subr.mxu0 0.0
        %1887 = vmatpush1.msra.mxu0 %v1796
        %1888 = vmatprep.subr.mxu0 0.0
        %1889 = vmatpush1.msra.mxu0 %v1797
        %1890 = vmatprep.subr.mxu0 0.0
        %1891 = vmatpush1.msra.mxu0 %v1798
        %1892 = vmatprep.subr.mxu0 0.0
        %1893 = vmatpush1.msra.mxu0 %v1799
        %1894 = vmatprep.subr.mxu0 0.0
        %1895 = vmatpush1.msra.mxu0 %v1800
        %1896 = vmatprep.subr.mxu0 0.0
        %1897 = vmatpush1.msra.mxu0 %v1801
        %1898 = vmatprep.subr.mxu0 0.0
        %1899 = vmatpush1.msra.mxu0 %v1802
        %1900 = vmatprep.subr.mxu0 0.0
        %1901 = vmatpush1.msra.mxu0 %v1803
        %1902 = vmatprep.subr.mxu0 0.0
        %1903 = vmatpush1.msra.mxu0 %v1804
        %1904 = vmatprep.subr.mxu0 0.0
        %1905 = vmatpush1.msra.mxu0 0.0
        %1906 = vmatprep.subr.mxu0 0.0
        %1907 = vmatpush1.msra.mxu0 0.0
        %1908 = vmatprep.subr.mxu0 0.0
        %1909 = vmatpush1.msra.mxu0 0.0
        %1910 = vmatprep.subr.mxu0 0.0
        %1911 = vmatpush1.msra.mxu0 0.0
        %1912 = vmatprep.subr.mxu0 0.0
        %1913 = vmatpush1.msra.mxu0 0.0
        %1914 = vmatprep.subr.mxu0 0.0
        %1915 = vmatpush1.msra.mxu0 0.0
        %1916 = vmatprep.subr.mxu0 0.0
        %1917 = vmatpush1.msra.mxu0 0.0
        %1918 = vmatprep.subr.mxu0 0.0
        %1919 = vmatpush1.msra.mxu0 0.0
        %1920 = vmatprep.subr.mxu0 0.0
        %1921 = vmatpush1.msra.mxu0 0.0
        %1922 = vmatprep.subr.mxu0 0.0
        %1923 = vmatpush1.msra.mxu0 0.0
        %1924 = vmatprep.subr.mxu0 0.0
        %1925 = vmatpush1.msra.mxu0 0.0
        %1926 = vmatprep.subr.mxu0 0.0
        %1927 = vmatpush1.msra.mxu0 0.0
        %1928 = vmatprep.subr.mxu0 0.0
        %1929 = vmatpush1.msra.mxu0 0.0
        %1930 = vmatprep.subr.mxu0 0.0
        %1931 = vmatpush1.msra.mxu0 0.0
        %1932 = vmatprep.subr.mxu0 0.0
        %1933 = vmatpush1.msra.mxu0 0.0
        %1934 = vmatprep.subr.mxu0 0.0
        %1935 = vmatpush1.msra.mxu0 0.0
        %1936 = vmatprep.subr.mxu0 0.0
        %1937 = vmatpush1.msra.mxu0 0.0
        %1938 = vmatprep.subr.mxu0 0.0
        %1939 = vmatpush1.msra.mxu0 0.0
        %1940 = vmatprep.subr.mxu0 0.0
        %1941 = vmatpush1.msra.mxu0 0.0
        %1942 = vmatprep.subr.mxu0 0.0
        %1943 = vmatpush1.msra.mxu0 0.0
        %1944 = vmatprep.subr.mxu0 0.0
        %1945 = vmatpush1.msra.mxu0 0.0
        %1946 = vmatprep.subr.mxu0 0.0
        %1947 = vmatpush1.msra.mxu0 0.0
        %1948 = vmatprep.mubr.f32.mxu0 0.0
        %1949 = vmatmul.mubr.f32.gmra.mrb[0].mxu0 %v1813
        %v1950 = vpop.f32.mrb[0].mxu0
        %v1951 = vadd.f32 %v1810, %v1950
        %v1952 = vpop.f32.mrb[0].mxu0
        %1953 = vmatprep.mubr.f32.mxu0 0.0
        %1954 = vmatmul.mubr.f32.gmra.mrb[0].mxu0 %v1816
        %v1955 = vpop.f32.mrb[0].mxu0
        %v1956 = vadd.f32 %v1810, %v1955
        %v1957 = vpop.f32.mrb[0].mxu0
        %1958 = vmatprep.mubr.f32.mxu0 0.0
        %1959 = vmatmul.mubr.f32.gmra.mrb[0].mxu0 %v1819
        %v1960 = vpop.f32.mrb[0].mxu0
        %v1961 = vadd.f32 %v1810, %v1960
        %v1962 = vpop.f32.mrb[0].mxu0
        %1963 = vmatprep.mubr.f32.mxu0 0.0
        %1964 = vmatmul.mubr.f32.gmra.mrb[0].mxu0 %v1822
        %v1965 = vpop.f32.mrb[0].mxu0
        %v1966 = vadd.f32 %v1810, %v1965
        %v1967 = vpop.f32.mrb[0].mxu0
        %1968 = vmatprep.mubr.f32.mxu0 0.0
        %1969 = vmatmul.mubr.f32.gmra.mrb[0].mxu0 %v1825
        %v1970 = vpop.f32.mrb[0].mxu0
        %v1971 = vadd.f32 %v1810, %v1970
        %v1972 = vpop.f32.mrb[0].mxu0
        %1973 = vmatprep.mubr.f32.mxu0 0.0
        %1974 = vmatmul.mubr.f32.gmra.mrb[0].mxu0 %v1828
        %v1975 = vpop.f32.mrb[0].mxu0
        %v1976 = vadd.f32 %v1810, %v1975
        %v1977 = vpop.f32.mrb[0].mxu0
        %1978 = vmatprep.mubr.f32.mxu0 0.0
        %1979 = vmatmul.mubr.f32.gmra.mrb[0].mxu0 %v1831
        %v1980 = vpop.f32.mrb[0].mxu0
        %v1981 = vadd.f32 %v1810, %v1980
        %v1982 = vpop.f32.mrb[0].mxu0
        %1983 = vmatprep.mubr.f32.mxu0 0.0
        %1984 = vmatmul.mubr.f32.gmra.mrb[0].mxu0 %v1834
        %v1985 = vpop.f32.mrb[0].mxu0
        %v1986 = vadd.f32 %v1810, %v1985
        %v1987 = vpop.f32.mrb[0].mxu0
        %1988 = vmatprep.mubr.f32.mxu0 0.0
        %1989 = vmatmul.mubr.f32.gmra.mrb[0].mxu0 %v1837
        %v1990 = vpop.f32.mrb[0].mxu0
        %v1991 = vadd.f32 %v1810, %v1990
        %v1992 = vpop.f32.mrb[0].mxu0
        %1993 = vmatprep.mubr.f32.mxu0 0.0
        %1994 = vmatmul.mubr.f32.gmra.mrb[0].mxu0 %v1840
        %v1995 = vpop.f32.mrb[0].mxu0
        %v1996 = vadd.f32 %v1810, %v1995
        %v1997 = vpop.f32.mrb[0].mxu0
        %1998 = vmatprep.mubr.f32.mxu0 0.0
        %1999 = vmatmul.mubr.f32.gmra.mrb[0].mxu0 %v1843
        %v2000 = vpop.f32.mrb[0].mxu0
        %v2001 = vadd.f32 %v1810, %v2000
        %v2002 = vpop.f32.mrb[0].mxu0
        %2003 = vmatprep.mubr.f32.mxu0 0.0
        %2004 = vmatmul.mubr.f32.gmra.mrb[0].mxu0 %v1846
        %v2005 = vpop.f32.mrb[0].mxu0
        %v2006 = vadd.f32 %v1810, %v2005
        %v2007 = vpop.f32.mrb[0].mxu0
        %2008 = vmatprep.mubr.f32.mxu0 0.0
        %2009 = vmatmul.mubr.f32.gmra.mrb[0].mxu0 %v1849
        %v2010 = vpop.f32.mrb[0].mxu0
        %v2011 = vadd.f32 %v1810, %v2010
        %v2012 = vpop.f32.mrb[0].mxu0
        %2013 = vmatprep.mubr.f32.mxu0 0.0
        %2014 = vmatmul.mubr.f32.gmra.mrb[0].mxu0 %v1852
        %v2015 = vpop.f32.mrb[0].mxu0
        %v2016 = vadd.f32 %v1810, %v2015
        %v2017 = vpop.f32.mrb[0].mxu0
        %2018 = vmatprep.mubr.f32.mxu0 0.0
        %2019 = vmatmul.mubr.f32.gmra.mrb[0].mxu0 %v1855
        %v2020 = vpop.f32.mrb[0].mxu0
        %v2021 = vadd.f32 %v1810, %v2020
        %v2022 = vpop.f32.mrb[0].mxu0
        %2023 = vmatprep.mubr.f32.mxu0 0.0
        %2024 = vmatmul.mubr.f32.gmra.mrb[0].mxu0 %v1858
        %v2025 = vpop.f32.mrb[0].mxu0
        %v2026 = vadd.f32 %v1810, %v2025
        %v2027 = vpop.f32.mrb[0].mxu0
        %2028 = vmatprep.mubr.f32.mxu0 0.0
        %2029 = vmatmul.mubr.f32.gmra.mrb[0].mxu0 %v1861
        %v2030 = vpop.f32.mrb[0].mxu0
        %v2031 = vadd.f32 %v1810, %v2030
        %v2032 = vpop.f32.mrb[0].mxu0
        %2033 = vmatprep.mubr.f32.mxu0 0.0
        %2034 = vmatmul.mubr.f32.gmra.mrb[0].mxu0 %v1864
        %v2035 = vpop.f32.mrb[0].mxu0
        %v2036 = vadd.f32 %v1810, %v2035
        %v2037 = vpop.f32.mrb[0].mxu0
        %2038 = vmatprep.mubr.f32.mxu0 0.0
        %2039 = vmatmul.mubr.f32.gmra.mrb[0].mxu0 %v1867
        %v2040 = vpop.f32.mrb[0].mxu0
        %v2041 = vadd.f32 %v1810, %v2040
        %v2042 = vpop.f32.mrb[0].mxu0
        %2043 = vmatprep.mubr.f32.mxu0 0.0
        %2044 = vmatmul.mubr.f32.gmra.mrb[0].mxu0 %v1870
        %v2045 = vpop.f32.mrb[0].mxu0
        %v2046 = vadd.f32 %v1810, %v2045
        %v2047 = vpop.f32.mrb[0].mxu0
        %2048 = vmatprep.mubr.f32.mxu0 0.0
        %2049 = vmatmul.mubr.f32.gmra.mrb[0].mxu0 %v1873
        %v2050 = vpop.f32.mrb[0].mxu0
        %v2051 = vadd.f32 %v1810, %v2050
        %v2052 = vpop.f32.mrb[0].mxu0
        %2053 = vmatprep.mubr.f32.mxu0 0.0
        %2054 = vmatmul.mubr.f32.gmra.mrb[0].mxu0 %v1876
        %v2055 = vpop.f32.mrb[0].mxu0
        %v2056 = vadd.f32 %v1810, %v2055
        %v2057 = vpop.f32.mrb[0].mxu0
        %2058 = vmatprep.mubr.f32.mxu0 0.0
        %2059 = vmatmul.mubr.f32.gmra.mrb[0].mxu0 %v1879
        %v2060 = vpop.f32.mrb[0].mxu0
        %v2061 = vadd.f32 %v1810, %v2060
        %v2062 = vpop.f32.mrb[0].mxu0
        %2063 = vmatprep.mubr.f32.mxu0 0.0
        %2064 = vmatmul.mubr.f32.gmra.mrb[0].mxu0 %v1882
        %v2065 = vpop.f32.mrb[0].mxu0
        %v2066 = vadd.f32 %v1810, %v2065
        %v2067 = vpop.f32.mrb[0].mxu0
        %2068 = vdwg.mxu0
        %v2069 = vmax.f32 %v1951, 0.0
        %v2070 = vmax.f32 %v1956, 0.0
        %v2071 = vmax.f32 %v1961, 0.0
        %v2072 = vmax.f32 %v1966, 0.0
        %v2073 = vmax.f32 %v1971, 0.0
        %v2074 = vmax.f32 %v1976, 0.0
        %v2075 = vmax.f32 %v1981, 0.0
        %v2076 = vmax.f32 %v1986, 0.0
        %v2077 = vmax.f32 %v1991, 0.0
        %v2078 = vmax.f32 %v1996, 0.0
        %v2079 = vmax.f32 %v2001, 0.0
        %v2080 = vmax.f32 %v2006, 0.0
        %v2081 = vmax.f32 %v2011, 0.0
        %v2082 = vmax.f32 %v2016, 0.0
        %v2083 = vmax.f32 %v2021, 0.0
        %v2084 = vmax.f32 %v2026, 0.0
        %v2085 = vmax.f32 %v2031, 0.0
        %v2086 = vmax.f32 %v2036, 0.0
        %v2087 = vmax.f32 %v2041, 0.0
        %v2088 = vmax.f32 %v2046, 0.0
        %v2089 = vmax.f32 %v2051, 0.0
        %v2090 = vmax.f32 %v2056, 0.0
        %v2091 = vmax.f32 %v2061, 0.0
        %v2092 = vmax.f32 %v2066, 0.0
        %2093 = vst.msk [vmem:[#allocation2 + $0x300] sm:$0xff] %vm708, %v2069
        %2094 = vst.msk [vmem:[#allocation2 + $0x308] sm:$0xff] %vm708, %v2070
        %2095 = vst.msk [vmem:[#allocation2 + $0x310] sm:$0xff] %vm708, %v2071
        %2096 = vst.msk [vmem:[#allocation2 + $0x318] sm:$0xff] %vm708, %v2072
        %2097 = vst.msk [vmem:[#allocation2 + $0x320] sm:$0xff] %vm708, %v2073
        %2098 = vst.msk [vmem:[#allocation2 + $0x328] sm:$0xff] %vm708, %v2074
        %2099 = vst.msk [vmem:[#allocation2 + $0x330] sm:$0xff] %vm708, %v2075
        %2100 = vst.msk [vmem:[#allocation2 + $0x338] sm:$0xff] %vm708, %v2076
        %2101 = vst.msk [vmem:[#allocation2 + $0x340] sm:$0xff] %vm708, %v2077
        %2102 = vst.msk [vmem:[#allocation2 + $0x348] sm:$0xff] %vm708, %v2078
        %2103 = vst.msk [vmem:[#allocation2 + $0x350] sm:$0xff] %vm708, %v2079
        %2104 = vst.msk [vmem:[#allocation2 + $0x358] sm:$0xff] %vm708, %v2080
        %2105 = vst.msk [vmem:[#allocation2 + $0x360] sm:$0xff] %vm708, %v2081
        %2106 = vst.msk [vmem:[#allocation2 + $0x368] sm:$0xff] %vm708, %v2082
        %2107 = vst.msk [vmem:[#allocation2 + $0x370] sm:$0xff] %vm708, %v2083
        %2108 = vst.msk [vmem:[#allocation2 + $0x378] sm:$0xff] %vm708, %v2084
        %2109 = vst.msk [vmem:[#allocation2 + $0x380] sm:$0xff] %vm708, %v2085
        %2110 = vst.msk [vmem:[#allocation2 + $0x388] sm:$0xff] %vm708, %v2086
        %2111 = vst.msk [vmem:[#allocation2 + $0x390] sm:$0xff] %vm708, %v2087
        %2112 = vst.msk [vmem:[#allocation2 + $0x398] sm:$0xff] %vm708, %v2088
        %2113 = vst.msk [vmem:[#allocation2 + $0x3a0] sm:$0xff] %vm708, %v2089
        %2114 = vst.msk [vmem:[#allocation2 + $0x3a8] sm:$0xff] %vm708, %v2090
        %2115 = vst.msk [vmem:[#allocation2 + $0x3b0] sm:$0xff] %vm708, %v2091
        %2116 = vst.msk [vmem:[#allocation2 + $0x3b8] sm:$0xff] %vm708, %v2092
        %v2117 = vld [vmem:[%s384 + $0x3c0] sm:$0xff]
        %v2118 = vld [vmem:[%s384 + $0x3c8] sm:$0xff]
        %v2119 = vld [vmem:[%s384 + $0x3d0] sm:$0xff]
        %v2120 = vld [vmem:[%s384 + $0x3d8] sm:$0xff]
        %v2121 = vld [vmem:[%s1] sm:$0xff]
        %v2122 = vld [vmem:[%s1 + $0x8] sm:$0xff]
        %v2123 = vld [vmem:[%s1 + $0x10] sm:$0xff]
        %v2124 = vld [vmem:[%s1 + $0x18] sm:$0xff]
        %v2125 = vld [vmem:[%s1 + $0x20] sm:$0xff]
        %v2126 = vld [vmem:[%s1 + $0x28] sm:$0xff]
        %v2127 = vld [vmem:[%s1 + $0x30] sm:$0xff]
        %v2128 = vld [vmem:[%s1 + $0x38] sm:$0xff]
        %v2129 = vld [vmem:[%s1 + $0x40] sm:$0xff]
        %v2130 = vld [vmem:[%s1 + $0x48] sm:$0xff]
        %v2131 = vld [vmem:[%s7] sm:$0x1]
        %v2133 = vlaneseq
        %v2134 = vshrl.u32 %v2133, 7
        %v2135 = vsub.s32 0, %v2134
        %v2136 = vrot.slane %v2131, %v2135
        %v2139 = vsel %vm426, %v2117, 0
        %v2142 = vsel %vm426, %v2118, 0
        %v2145 = vsel %vm426, %v2119, 0
        %v2148 = vsel %vm426, %v2120, 0
        %2150 = vmatprep.subr.mxu0 0.0
        %2151 = vmatpush1.msra.mxu0 %v2121
        %2152 = vmatprep.subr.mxu0 0.0
        %2153 = vmatpush1.msra.mxu0 %v2122
        %2154 = vmatprep.subr.mxu0 0.0
        %2155 = vmatpush1.msra.mxu0 %v2123
        %2156 = vmatprep.subr.mxu0 0.0
        %2157 = vmatpush1.msra.mxu0 %v2124
        %2158 = vmatprep.subr.mxu0 0.0
        %2159 = vmatpush1.msra.mxu0 %v2125
        %2160 = vmatprep.subr.mxu0 0.0
        %2161 = vmatpush1.msra.mxu0 %v2126
        %2162 = vmatprep.subr.mxu0 0.0
        %2163 = vmatpush1.msra.mxu0 %v2127
        %2164 = vmatprep.subr.mxu0 0.0
        %2165 = vmatpush1.msra.mxu0 %v2128
        %2166 = vmatprep.subr.mxu0 0.0
        %2167 = vmatpush1.msra.mxu0 %v2129
        %2168 = vmatprep.subr.mxu0 0.0
        %2169 = vmatpush1.msra.mxu0 %v2130
        %2170 = vmatprep.subr.mxu0 0.0
        %2171 = vmatpush1.msra.mxu0 0.0
        %2172 = vmatprep.subr.mxu0 0.0
        %2173 = vmatpush1.msra.mxu0 0.0
        %2174 = vmatprep.subr.mxu0 0.0
        %2175 = vmatpush1.msra.mxu0 0.0
        %2176 = vmatprep.subr.mxu0 0.0
        %2177 = vmatpush1.msra.mxu0 0.0
        %2178 = vmatprep.subr.mxu0 0.0
        %2179 = vmatpush1.msra.mxu0 0.0
        %2180 = vmatprep.subr.mxu0 0.0
        %2181 = vmatpush1.msra.mxu0 0.0
        %2182 = vmatprep.subr.mxu0 0.0
        %2183 = vmatpush1.msra.mxu0 0.0
        %2184 = vmatprep.subr.mxu0 0.0
        %2185 = vmatpush1.msra.mxu0 0.0
        %2186 = vmatprep.subr.mxu0 0.0
        %2187 = vmatpush1.msra.mxu0 0.0
        %2188 = vmatprep.subr.mxu0 0.0
        %2189 = vmatpush1.msra.mxu0 0.0
        %2190 = vmatprep.subr.mxu0 0.0
        %2191 = vmatpush1.msra.mxu0 0.0
        %2192 = vmatprep.subr.mxu0 0.0
        %2193 = vmatpush1.msra.mxu0 0.0
        %2194 = vmatprep.subr.mxu0 0.0
        %2195 = vmatpush1.msra.mxu0 0.0
        %2196 = vmatprep.subr.mxu0 0.0
        %2197 = vmatpush1.msra.mxu0 0.0
        %2198 = vmatprep.subr.mxu0 0.0
        %2199 = vmatpush1.msra.mxu0 0.0
        %2200 = vmatprep.subr.mxu0 0.0
        %2201 = vmatpush1.msra.mxu0 0.0
        %2202 = vmatprep.subr.mxu0 0.0
        %2203 = vmatpush1.msra.mxu0 0.0
        %2204 = vmatprep.subr.mxu0 0.0
        %2205 = vmatpush1.msra.mxu0 0.0
        %2206 = vmatprep.subr.mxu0 0.0
        %2207 = vmatpush1.msra.mxu0 0.0
        %2208 = vmatprep.subr.mxu0 0.0
        %2209 = vmatpush1.msra.mxu0 0.0
        %2210 = vmatprep.subr.mxu0 0.0
        %2211 = vmatpush1.msra.mxu0 0.0
        %2212 = vmatprep.subr.mxu0 0.0
        %2213 = vmatpush1.msra.mxu0 0.0
        %2214 = vmatprep.mubr.f32.mxu0 0.0
        %2215 = vmatmul.mubr.f32.gmra.mrb[0].mxu0 %v2139
        %v2216 = vpop.f32.mrb[0].mxu0
        %v2217 = vadd.f32 %v2136, %v2216
        %v2218 = vpop.f32.mrb[0].mxu0
        %2219 = vmatprep.mubr.f32.mxu0 0.0
        %2220 = vmatmul.mubr.f32.gmra.mrb[0].mxu0 %v2142
        %v2221 = vpop.f32.mrb[0].mxu0
        %v2222 = vadd.f32 %v2136, %v2221
        %v2223 = vpop.f32.mrb[0].mxu0
        %2224 = vmatprep.mubr.f32.mxu0 0.0
        %2225 = vmatmul.mubr.f32.gmra.mrb[0].mxu0 %v2145
        %v2226 = vpop.f32.mrb[0].mxu0
        %v2227 = vadd.f32 %v2136, %v2226
        %v2228 = vpop.f32.mrb[0].mxu0
        %2229 = vmatprep.mubr.f32.mxu0 0.0
        %2230 = vmatmul.mubr.f32.gmra.mrb[0].mxu0 %v2148
        %v2231 = vpop.f32.mrb[0].mxu0
        %v2232 = vadd.f32 %v2136, %v2231
        %v2233 = vpop.f32.mrb[0].mxu0
        %2234 = vdwg.mxu0
        %v2235 = vmax.f32 %v2217, 0.0
        %v2236 = vmax.f32 %v2222, 0.0
        %v2237 = vmax.f32 %v2227, 0.0
        %v2238 = vmax.f32 %v2232, 0.0
        %2239 = vst.msk [vmem:[#allocation2 + $0x3c0] sm:$0xff] %vm708, %v2235
        %2240 = vst.msk [vmem:[#allocation2 + $0x3c8] sm:$0xff] %vm708, %v2236
        %2241 = vst.msk [vmem:[#allocation2 + $0x3d0] sm:$0xff] %vm708, %v2237
        %2242 = vst.msk [vmem:[#allocation2 + $0x3d8] sm:$0xff] %vm708, %v2238
        %v2243 = vld [vmem:[#allocation2] ss:$4 sm:$0xff]
        %s2244 = scalar_lea.vmem [#allocation2], 32
        %v2245 = vld [vmem:[%s2244] ss:$4 sm:$0xff]
        %s2246 = scalar_lea.vmem [#allocation2], 64
        %v2247 = vld [vmem:[%s2246] ss:$4 sm:$0xff]
        %s2248 = scalar_lea.vmem [#allocation2], 96
        %v2249 = vld [vmem:[%s2248] ss:$4 sm:$0xff]
        %s2250 = scalar_lea.vmem [#allocation2], 128
        %v2251 = vld [vmem:[%s2250] ss:$4 sm:$0xff]
        %s2252 = scalar_lea.vmem [#allocation2], 160
        %v2253 = vld [vmem:[%s2252] ss:$4 sm:$0xff]
        %s2254 = scalar_lea.vmem [#allocation2], 192
        %v2255 = vld [vmem:[%s2254] ss:$4 sm:$0xff]
        %s2256 = scalar_lea.vmem [#allocation2], 224
        %v2257 = vld [vmem:[%s2256] ss:$4 sm:$0xff]
        %s2258 = scalar_lea.vmem [#allocation2], 256
        %v2259 = vld [vmem:[%s2258] ss:$4 sm:$0xff]
        %s2260 = scalar_lea.vmem [#allocation2], 288
        %v2261 = vld [vmem:[%s2260] ss:$4 sm:$0xff]
        %s2262 = scalar_lea.vmem [#allocation2], 320
        %v2263 = vld [vmem:[%s2262] ss:$4 sm:$0xff]
        %s2264 = scalar_lea.vmem [#allocation2], 352
        %v2265 = vld [vmem:[%s2264] ss:$4 sm:$0xff]
        %s2266 = scalar_lea.vmem [#allocation2], 384
        %v2267 = vld [vmem:[%s2266] ss:$4 sm:$0xff]
        %s2268 = scalar_lea.vmem [#allocation2], 416
        %v2269 = vld [vmem:[%s2268] ss:$4 sm:$0xff]
        %s2270 = scalar_lea.vmem [#allocation2], 448
        %v2271 = vld [vmem:[%s2270] ss:$4 sm:$0xff]
        %s2272 = scalar_lea.vmem [#allocation2], 480
        %v2273 = vld [vmem:[%s2272] ss:$4 sm:$0xff]
        %s2274 = scalar_lea.vmem [#allocation2], 512
        %v2275 = vld [vmem:[%s2274] ss:$4 sm:$0xff]
        %s2276 = scalar_lea.vmem [#allocation2], 544
        %v2277 = vld [vmem:[%s2276] ss:$4 sm:$0xff]
        %s2278 = scalar_lea.vmem [#allocation2], 576
        %v2279 = vld [vmem:[%s2278] ss:$4 sm:$0xff]
        %s2280 = scalar_lea.vmem [#allocation2], 608
        %v2281 = vld [vmem:[%s2280] ss:$4 sm:$0xff]
        %s2282 = scalar_lea.vmem [#allocation2], 640
        %v2283 = vld [vmem:[%s2282] ss:$4 sm:$0xff]
        %s2284 = scalar_lea.vmem [#allocation2], 672
        %v2285 = vld [vmem:[%s2284] ss:$4 sm:$0xff]
        %s2286 = scalar_lea.vmem [#allocation2], 704
        %v2287 = vld [vmem:[%s2286] ss:$4 sm:$0xff]
        %s2288 = scalar_lea.vmem [#allocation2], 736
        %v2289 = vld [vmem:[%s2288] ss:$4 sm:$0xff]
        %s2290 = scalar_lea.vmem [#allocation2], 1
        %v2291 = vld [vmem:[%s2290] ss:$4 sm:$0xff]
        %s2292 = scalar_lea.vmem [#allocation2], 33
        %v2293 = vld [vmem:[%s2292] ss:$4 sm:$0xff]
        %s2294 = scalar_lea.vmem [#allocation2], 65
        %v2295 = vld [vmem:[%s2294] ss:$4 sm:$0xff]
        %s2296 = scalar_lea.vmem [#allocation2], 97
        %v2297 = vld [vmem:[%s2296] ss:$4 sm:$0xff]
        %s2298 = scalar_lea.vmem [#allocation2], 129
        %v2299 = vld [vmem:[%s2298] ss:$4 sm:$0xff]
        %s2300 = scalar_lea.vmem [#allocation2], 161
        %v2301 = vld [vmem:[%s2300] ss:$4 sm:$0xff]
        %s2302 = scalar_lea.vmem [#allocation2], 193
        %v2303 = vld [vmem:[%s2302] ss:$4 sm:$0xff]
        %s2304 = scalar_lea.vmem [#allocation2], 225
        %v2305 = vld [vmem:[%s2304] ss:$4 sm:$0xff]
        %s2306 = scalar_lea.vmem [#allocation2], 257
        %v2307 = vld [vmem:[%s2306] ss:$4 sm:$0xff]
        %s2308 = scalar_lea.vmem [#allocation2], 289
        %v2309 = vld [vmem:[%s2308] ss:$4 sm:$0xff]
        %s2310 = scalar_lea.vmem [#allocation2], 321
        %v2311 = vld [vmem:[%s2310] ss:$4 sm:$0xff]
        %s2312 = scalar_lea.vmem [#allocation2], 353
        %v2313 = vld [vmem:[%s2312] ss:$4 sm:$0xff]
        %s2314 = scalar_lea.vmem [#allocation2], 385
        %v2315 = vld [vmem:[%s2314] ss:$4 sm:$0xff]
        %s2316 = scalar_lea.vmem [#allocation2], 417
        %v2317 = vld [vmem:[%s2316] ss:$4 sm:$0xff]
        %s2318 = scalar_lea.vmem [#allocation2], 449
        %v2319 = vld [vmem:[%s2318] ss:$4 sm:$0xff]
        %s2320 = scalar_lea.vmem [#allocation2], 481
        %v2321 = vld [vmem:[%s2320] ss:$4 sm:$0xff]
        %s2322 = scalar_lea.vmem [#allocation2], 513
        %v2323 = vld [vmem:[%s2322] ss:$4 sm:$0xff]
        %s2324 = scalar_lea.vmem [#allocation2], 545
        %v2325 = vld [vmem:[%s2324] ss:$4 sm:$0xff]
        %s2326 = scalar_lea.vmem [#allocation2], 577
        %v2327 = vld [vmem:[%s2326] ss:$4 sm:$0xff]
        %s2328 = scalar_lea.vmem [#allocation2], 609
        %v2329 = vld [vmem:[%s2328] ss:$4 sm:$0xff]
        %s2330 = scalar_lea.vmem [#allocation2], 641
        %v2331 = vld [vmem:[%s2330] ss:$4 sm:$0xff]
        %s2332 = scalar_lea.vmem [#allocation2], 673
        %v2333 = vld [vmem:[%s2332] ss:$4 sm:$0xff]
        %s2334 = scalar_lea.vmem [#allocation2], 705
        %v2335 = vld [vmem:[%s2334] ss:$4 sm:$0xff]
        %s2336 = scalar_lea.vmem [#allocation2], 737
        %v2337 = vld [vmem:[%s2336] ss:$4 sm:$0xff]
        %v2338 = vmax.f32 %v2243, %v2291
        %v2339 = vmax.f32 %v2245, %v2293
        %v2340 = vmax.f32 %v2247, %v2295
        %v2341 = vmax.f32 %v2249, %v2297
        %v2342 = vmax.f32 %v2251, %v2299
        %v2343 = vmax.f32 %v2253, %v2301
        %v2344 = vmax.f32 %v2255, %v2303
        %v2345 = vmax.f32 %v2257, %v2305
        %v2346 = vmax.f32 %v2259, %v2307
        %v2347 = vmax.f32 %v2261, %v2309
        %v2348 = vmax.f32 %v2263, %v2311
        %v2349 = vmax.f32 %v2265, %v2313
        %v2350 = vmax.f32 %v2267, %v2315
        %v2351 = vmax.f32 %v2269, %v2317
        %v2352 = vmax.f32 %v2271, %v2319
        %v2353 = vmax.f32 %v2273, %v2321
        %v2354 = vmax.f32 %v2275, %v2323
        %v2355 = vmax.f32 %v2277, %v2325
        %v2356 = vmax.f32 %v2279, %v2327
        %v2357 = vmax.f32 %v2281, %v2329
        %v2358 = vmax.f32 %v2283, %v2331
        %v2359 = vmax.f32 %v2285, %v2333
        %v2360 = vmax.f32 %v2287, %v2335
        %v2361 = vmax.f32 %v2289, %v2337
        %s2362 = scalar_lea.vmem [#allocation2], 2
        %v2363 = vld [vmem:[%s2362] ss:$4 sm:$0xff]
        %s2364 = scalar_lea.vmem [#allocation2], 34
        %v2365 = vld [vmem:[%s2364] ss:$4 sm:$0xff]
        %s2366 = scalar_lea.vmem [#allocation2], 66
        %v2367 = vld [vmem:[%s2366] ss:$4 sm:$0xff]
        %s2368 = scalar_lea.vmem [#allocation2], 98
        %v2369 = vld [vmem:[%s2368] ss:$4 sm:$0xff]
        %s2370 = scalar_lea.vmem [#allocation2], 130
        %v2371 = vld [vmem:[%s2370] ss:$4 sm:$0xff]
        %s2372 = scalar_lea.vmem [#allocation2], 162
        %v2373 = vld [vmem:[%s2372] ss:$4 sm:$0xff]
        %s2374 = scalar_lea.vmem [#allocation2], 194
        %v2375 = vld [vmem:[%s2374] ss:$4 sm:$0xff]
        %s2376 = scalar_lea.vmem [#allocation2], 226
        %v2377 = vld [vmem:[%s2376] ss:$4 sm:$0xff]
        %s2378 = scalar_lea.vmem [#allocation2], 258
        %v2379 = vld [vmem:[%s2378] ss:$4 sm:$0xff]
        %s2380 = scalar_lea.vmem [#allocation2], 290
        %v2381 = vld [vmem:[%s2380] ss:$4 sm:$0xff]
        %s2382 = scalar_lea.vmem [#allocation2], 322
        %v2383 = vld [vmem:[%s2382] ss:$4 sm:$0xff]
        %s2384 = scalar_lea.vmem [#allocation2], 354
        %v2385 = vld [vmem:[%s2384] ss:$4 sm:$0xff]
        %s2386 = scalar_lea.vmem [#allocation2], 386
        %v2387 = vld [vmem:[%s2386] ss:$4 sm:$0xff]
        %s2388 = scalar_lea.vmem [#allocation2], 418
        %v2389 = vld [vmem:[%s2388] ss:$4 sm:$0xff]
        %s2390 = scalar_lea.vmem [#allocation2], 450
        %v2391 = vld [vmem:[%s2390] ss:$4 sm:$0xff]
        %s2392 = scalar_lea.vmem [#allocation2], 482
        %v2393 = vld [vmem:[%s2392] ss:$4 sm:$0xff]
        %s2394 = scalar_lea.vmem [#allocation2], 514
        %v2395 = vld [vmem:[%s2394] ss:$4 sm:$0xff]
        %s2396 = scalar_lea.vmem [#allocation2], 546
        %v2397 = vld [vmem:[%s2396] ss:$4 sm:$0xff]
        %s2398 = scalar_lea.vmem [#allocation2], 578
        %v2399 = vld [vmem:[%s2398] ss:$4 sm:$0xff]
        %s2400 = scalar_lea.vmem [#allocation2], 610
        %v2401 = vld [vmem:[%s2400] ss:$4 sm:$0xff]
        %s2402 = scalar_lea.vmem [#allocation2], 642
        %v2403 = vld [vmem:[%s2402] ss:$4 sm:$0xff]
        %s2404 = scalar_lea.vmem [#allocation2], 674
        %v2405 = vld [vmem:[%s2404] ss:$4 sm:$0xff]
        %s2406 = scalar_lea.vmem [#allocation2], 706
        %v2407 = vld [vmem:[%s2406] ss:$4 sm:$0xff]
        %s2408 = scalar_lea.vmem [#allocation2], 738
        %v2409 = vld [vmem:[%s2408] ss:$4 sm:$0xff]
        %v2410 = vmax.f32 %v2338, %v2363
        %v2411 = vmax.f32 %v2339, %v2365
        %v2412 = vmax.f32 %v2340, %v2367
        %v2413 = vmax.f32 %v2341, %v2369
        %v2414 = vmax.f32 %v2342, %v2371
        %v2415 = vmax.f32 %v2343, %v2373
        %v2416 = vmax.f32 %v2344, %v2375
        %v2417 = vmax.f32 %v2345, %v2377
        %v2418 = vmax.f32 %v2346, %v2379
        %v2419 = vmax.f32 %v2347, %v2381
        %v2420 = vmax.f32 %v2348, %v2383
        %v2421 = vmax.f32 %v2349, %v2385
        %v2422 = vmax.f32 %v2350, %v2387
        %v2423 = vmax.f32 %v2351, %v2389
        %v2424 = vmax.f32 %v2352, %v2391
        %v2425 = vmax.f32 %v2353, %v2393
        %v2426 = vmax.f32 %v2354, %v2395
        %v2427 = vmax.f32 %v2355, %v2397
        %v2428 = vmax.f32 %v2356, %v2399
        %v2429 = vmax.f32 %v2357, %v2401
        %v2430 = vmax.f32 %v2358, %v2403
        %v2431 = vmax.f32 %v2359, %v2405
        %v2432 = vmax.f32 %v2360, %v2407
        %v2433 = vmax.f32 %v2361, %v2409
        %s2434 = scalar_lea.vmem [#allocation2], 3
        %v2435 = vld [vmem:[%s2434] ss:$4 sm:$0xff]
        %s2436 = scalar_lea.vmem [#allocation2], 35
        %v2437 = vld [vmem:[%s2436] ss:$4 sm:$0xff]
        %s2438 = scalar_lea.vmem [#allocation2], 67
        %v2439 = vld [vmem:[%s2438] ss:$4 sm:$0xff]
        %s2440 = scalar_lea.vmem [#allocation2], 99
        %v2441 = vld [vmem:[%s2440] ss:$4 sm:$0xff]
        %s2442 = scalar_lea.vmem [#allocation2], 131
        %v2443 = vld [vmem:[%s2442] ss:$4 sm:$0xff]
        %s2444 = scalar_lea.vmem [#allocation2], 163
        %v2445 = vld [vmem:[%s2444] ss:$4 sm:$0xff]
        %s2446 = scalar_lea.vmem [#allocation2], 195
        %v2447 = vld [vmem:[%s2446] ss:$4 sm:$0xff]
        %s2448 = scalar_lea.vmem [#allocation2], 227
        %v2449 = vld [vmem:[%s2448] ss:$4 sm:$0xff]
        %s2450 = scalar_lea.vmem [#allocation2], 259
        %v2451 = vld [vmem:[%s2450] ss:$4 sm:$0xff]
        %s2452 = scalar_lea.vmem [#allocation2], 291
        %v2453 = vld [vmem:[%s2452] ss:$4 sm:$0xff]
        %s2454 = scalar_lea.vmem [#allocation2], 323
        %v2455 = vld [vmem:[%s2454] ss:$4 sm:$0xff]
        %s2456 = scalar_lea.vmem [#allocation2], 355
        %v2457 = vld [vmem:[%s2456] ss:$4 sm:$0xff]
        %s2458 = scalar_lea.vmem [#allocation2], 387
        %v2459 = vld [vmem:[%s2458] ss:$4 sm:$0xff]
        %s2460 = scalar_lea.vmem [#allocation2], 419
        %v2461 = vld [vmem:[%s2460] ss:$4 sm:$0xff]
        %s2462 = scalar_lea.vmem [#allocation2], 451
        %v2463 = vld [vmem:[%s2462] ss:$4 sm:$0xff]
        %s2464 = scalar_lea.vmem [#allocation2], 483
        %v2465 = vld [vmem:[%s2464] ss:$4 sm:$0xff]
        %s2466 = scalar_lea.vmem [#allocation2], 515
        %v2467 = vld [vmem:[%s2466] ss:$4 sm:$0xff]
        %s2468 = scalar_lea.vmem [#allocation2], 547
        %v2469 = vld [vmem:[%s2468] ss:$4 sm:$0xff]
        %s2470 = scalar_lea.vmem [#allocation2], 579
        %v2471 = vld [vmem:[%s2470] ss:$4 sm:$0xff]
        %s2472 = scalar_lea.vmem [#allocation2], 611
        %v2473 = vld [vmem:[%s2472] ss:$4 sm:$0xff]
        %s2474 = scalar_lea.vmem [#allocation2], 643
        %v2475 = vld [vmem:[%s2474] ss:$4 sm:$0xff]
        %s2476 = scalar_lea.vmem [#allocation2], 675
        %v2477 = vld [vmem:[%s2476] ss:$4 sm:$0xff]
        %s2478 = scalar_lea.vmem [#allocation2], 707
        %v2479 = vld [vmem:[%s2478] ss:$4 sm:$0xff]
        %s2480 = scalar_lea.vmem [#allocation2], 739
        %v2481 = vld [vmem:[%s2480] ss:$4 sm:$0xff]
        %v2482 = vmax.f32 %v2410, %v2435
        %v2483 = vmax.f32 %v2411, %v2437
        %v2484 = vmax.f32 %v2412, %v2439
        %v2485 = vmax.f32 %v2413, %v2441
        %v2486 = vmax.f32 %v2414, %v2443
        %v2487 = vmax.f32 %v2415, %v2445
        %v2488 = vmax.f32 %v2416, %v2447
        %v2489 = vmax.f32 %v2417, %v2449
        %v2490 = vmax.f32 %v2418, %v2451
        %v2491 = vmax.f32 %v2419, %v2453
        %v2492 = vmax.f32 %v2420, %v2455
        %v2493 = vmax.f32 %v2421, %v2457
        %v2494 = vmax.f32 %v2422, %v2459
        %v2495 = vmax.f32 %v2423, %v2461
        %v2496 = vmax.f32 %v2424, %v2463
        %v2497 = vmax.f32 %v2425, %v2465
        %v2498 = vmax.f32 %v2426, %v2467
        %v2499 = vmax.f32 %v2427, %v2469
        %v2500 = vmax.f32 %v2428, %v2471
        %v2501 = vmax.f32 %v2429, %v2473
        %v2502 = vmax.f32 %v2430, %v2475
        %v2503 = vmax.f32 %v2431, %v2477
        %v2504 = vmax.f32 %v2432, %v2479
        %v2505 = vmax.f32 %v2433, %v2481
        %2506 = vst.msk [vmem:[#allocation3] sm:$0xff] %vm708, %v2482
        %2507 = vst.msk [vmem:[#allocation3 + $0x8] sm:$0xff] %vm708, %v2483
        %2508 = vst.msk [vmem:[#allocation3 + $0x10] sm:$0xff] %vm708, %v2484
        %2509 = vst.msk [vmem:[#allocation3 + $0x18] sm:$0xff] %vm708, %v2485
        %2510 = vst.msk [vmem:[#allocation3 + $0x20] sm:$0xff] %vm708, %v2486
        %2511 = vst.msk [vmem:[#allocation3 + $0x28] sm:$0xff] %vm708, %v2487
        %2512 = vst.msk [vmem:[#allocation3 + $0x30] sm:$0xff] %vm708, %v2488
        %2513 = vst.msk [vmem:[#allocation3 + $0x38] sm:$0xff] %vm708, %v2489
        %2514 = vst.msk [vmem:[#allocation3 + $0x40] sm:$0xff] %vm708, %v2490
        %2515 = vst.msk [vmem:[#allocation3 + $0x48] sm:$0xff] %vm708, %v2491
        %2516 = vst.msk [vmem:[#allocation3 + $0x50] sm:$0xff] %vm708, %v2492
        %2517 = vst.msk [vmem:[#allocation3 + $0x58] sm:$0xff] %vm708, %v2493
        %2518 = vst.msk [vmem:[#allocation3 + $0x60] sm:$0xff] %vm708, %v2494
        %2519 = vst.msk [vmem:[#allocation3 + $0x68] sm:$0xff] %vm708, %v2495
        %2520 = vst.msk [vmem:[#allocation3 + $0x70] sm:$0xff] %vm708, %v2496
        %2521 = vst.msk [vmem:[#allocation3 + $0x78] sm:$0xff] %vm708, %v2497
        %2522 = vst.msk [vmem:[#allocation3 + $0x80] sm:$0xff] %vm708, %v2498
        %2523 = vst.msk [vmem:[#allocation3 + $0x88] sm:$0xff] %vm708, %v2499
        %2524 = vst.msk [vmem:[#allocation3 + $0x90] sm:$0xff] %vm708, %v2500
        %2525 = vst.msk [vmem:[#allocation3 + $0x98] sm:$0xff] %vm708, %v2501
        %2526 = vst.msk [vmem:[#allocation3 + $0xa0] sm:$0xff] %vm708, %v2502
        %2527 = vst.msk [vmem:[#allocation3 + $0xa8] sm:$0xff] %vm708, %v2503
        %2528 = vst.msk [vmem:[#allocation3 + $0xb0] sm:$0xff] %vm708, %v2504
        %2529 = vst.msk [vmem:[#allocation3 + $0xb8] sm:$0xff] %vm708, %v2505
        %s2530 = scalar_lea.vmem [#allocation2], 768
        %v2531 = vld [vmem:[%s2530] ss:$4 sm:$0xff]
        %s2532 = scalar_lea.vmem [#allocation2], 800
        %v2533 = vld [vmem:[%s2532] ss:$4 sm:$0xff]
        %s2534 = scalar_lea.vmem [#allocation2], 832
        %v2535 = vld [vmem:[%s2534] ss:$4 sm:$0xff]
        %s2536 = scalar_lea.vmem [#allocation2], 864
        %v2537 = vld [vmem:[%s2536] ss:$4 sm:$0xff]
        %s2538 = scalar_lea.vmem [#allocation2], 896
        %v2539 = vld [vmem:[%s2538] ss:$4 sm:$0xff]
        %s2540 = scalar_lea.vmem [#allocation2], 928
        %v2541 = vld [vmem:[%s2540] ss:$4 sm:$0xff]
        %s2542 = scalar_lea.vmem [#allocation2], 960
        %v2543 = vld [vmem:[%s2542] ss:$4 sm:$0xff]
        %s2544 = scalar_lea.vmem [#allocation2], 769
        %v2545 = vld [vmem:[%s2544] ss:$4 sm:$0xff]
        %s2546 = scalar_lea.vmem [#allocation2], 801
        %v2547 = vld [vmem:[%s2546] ss:$4 sm:$0xff]
        %s2548 = scalar_lea.vmem [#allocation2], 833
        %v2549 = vld [vmem:[%s2548] ss:$4 sm:$0xff]
        %s2550 = scalar_lea.vmem [#allocation2], 865
        %v2551 = vld [vmem:[%s2550] ss:$4 sm:$0xff]
        %s2552 = scalar_lea.vmem [#allocation2], 897
        %v2553 = vld [vmem:[%s2552] ss:$4 sm:$0xff]
        %s2554 = scalar_lea.vmem [#allocation2], 929
        %v2555 = vld [vmem:[%s2554] ss:$4 sm:$0xff]
        %s2556 = scalar_lea.vmem [#allocation2], 961
        %v2557 = vld [vmem:[%s2556] ss:$4 sm:$0xff]
        %v2558 = vmax.f32 %v2531, %v2545
        %v2559 = vmax.f32 %v2533, %v2547
        %v2560 = vmax.f32 %v2535, %v2549
        %v2561 = vmax.f32 %v2537, %v2551
        %v2562 = vmax.f32 %v2539, %v2553
        %v2563 = vmax.f32 %v2541, %v2555
        %v2564 = vmax.f32 %v2543, %v2557
        %s2565 = scalar_lea.vmem [#allocation2], 770
        %v2566 = vld [vmem:[%s2565] ss:$4 sm:$0xff]
        %s2567 = scalar_lea.vmem [#allocation2], 802
        %v2568 = vld [vmem:[%s2567] ss:$4 sm:$0xff]
        %s2569 = scalar_lea.vmem [#allocation2], 834
        %v2570 = vld [vmem:[%s2569] ss:$4 sm:$0xff]
        %s2571 = scalar_lea.vmem [#allocation2], 866
        %v2572 = vld [vmem:[%s2571] ss:$4 sm:$0xff]
        %s2573 = scalar_lea.vmem [#allocation2], 898
        %v2574 = vld [vmem:[%s2573] ss:$4 sm:$0xff]
        %s2575 = scalar_lea.vmem [#allocation2], 930
        %v2576 = vld [vmem:[%s2575] ss:$4 sm:$0xff]
        %s2577 = scalar_lea.vmem [#allocation2], 962
        %v2578 = vld [vmem:[%s2577] ss:$4 sm:$0xff]
        %v2579 = vmax.f32 %v2558, %v2566
        %v2580 = vmax.f32 %v2559, %v2568
        %v2581 = vmax.f32 %v2560, %v2570
        %v2582 = vmax.f32 %v2561, %v2572
        %v2583 = vmax.f32 %v2562, %v2574
        %v2584 = vmax.f32 %v2563, %v2576
        %v2585 = vmax.f32 %v2564, %v2578
        %s2586 = scalar_lea.vmem [#allocation2], 771
        %v2587 = vld [vmem:[%s2586] ss:$4 sm:$0xff]
        %s2588 = scalar_lea.vmem [#allocation2], 803
        %v2589 = vld [vmem:[%s2588] ss:$4 sm:$0xff]
        %s2590 = scalar_lea.vmem [#allocation2], 835
        %v2591 = vld [vmem:[%s2590] ss:$4 sm:$0xff]
        %s2592 = scalar_lea.vmem [#allocation2], 867
        %v2593 = vld [vmem:[%s2592] ss:$4 sm:$0xff]
        %s2594 = scalar_lea.vmem [#allocation2], 899
        %v2595 = vld [vmem:[%s2594] ss:$4 sm:$0xff]
        %s2596 = scalar_lea.vmem [#allocation2], 931
        %v2597 = vld [vmem:[%s2596] ss:$4 sm:$0xff]
        %s2598 = scalar_lea.vmem [#allocation2], 963
        %v2599 = vld [vmem:[%s2598] ss:$4 sm:$0xff]
        %v2600 = vmax.f32 %v2579, %v2587
        %v2601 = vmax.f32 %v2580, %v2589
        %v2602 = vmax.f32 %v2581, %v2591
        %v2603 = vmax.f32 %v2582, %v2593
        %v2604 = vmax.f32 %v2583, %v2595
        %v2605 = vmax.f32 %v2584, %v2597
        %v2606 = vmax.f32 %v2585, %v2599
        %2607 = vst.msk [vmem:[#allocation3 + $0xc0] sm:$0xff] %vm708, %v2600
        %2608 = vst.msk [vmem:[#allocation3 + $0xc8] sm:$0xff] %vm708, %v2601
        %2609 = vst.msk [vmem:[#allocation3 + $0xd0] sm:$0xff] %vm708, %v2602
        %2610 = vst.msk [vmem:[#allocation3 + $0xd8] sm:$0xff] %vm708, %v2603
        %2611 = vst.msk [vmem:[#allocation3 + $0xe0] sm:$0xff] %vm708, %v2604
        %2612 = vst.msk [vmem:[#allocation3 + $0xe8] sm:$0xff] %vm708, %v2605
        %2613 = vst.msk [vmem:[#allocation3 + $0xf0] sm:$0xff] %vm708, %v2606
        %v2614 = vld [vmem:[#allocation3] sm:$0xff]
        %v2615 = vld [vmem:[#allocation3 + $0x8] sm:$0xff]
        %v2616 = vld [vmem:[#allocation3 + $0x10] sm:$0xff]
        %v2617 = vld [vmem:[#allocation3 + $0x18] sm:$0xff]
        %v2618 = vld [vmem:[#allocation3 + $0x20] sm:$0xff]
        %v2619 = vld [vmem:[#allocation3 + $0x28] sm:$0xff]
        %v2620 = vld [vmem:[#allocation3 + $0x30] sm:$0xff]
        %v2621 = vld [vmem:[#allocation3 + $0x38] sm:$0xff]
        %v2622 = vld [vmem:[#allocation3 + $0x40] sm:$0xff]
        %v2623 = vld [vmem:[#allocation3 + $0x48] sm:$0xff]
        %v2624 = vld [vmem:[#allocation3 + $0x50] sm:$0xff]
        %v2625 = vld [vmem:[#allocation3 + $0x58] sm:$0xff]
        %v2626 = vld [vmem:[#allocation3 + $0x60] sm:$0xff]
        %v2627 = vld [vmem:[#allocation3 + $0x68] sm:$0xff]
        %v2628 = vld [vmem:[#allocation3 + $0x70] sm:$0xff]
        %v2629 = vld [vmem:[#allocation3 + $0x78] sm:$0xff]
        %v2630 = vld [vmem:[#allocation3 + $0x80] sm:$0xff]
        %v2631 = vld [vmem:[#allocation3 + $0x88] sm:$0xff]
        %v2632 = vld [vmem:[#allocation3 + $0x90] sm:$0xff]
        %v2633 = vld [vmem:[#allocation3 + $0x98] sm:$0xff]
        %v2634 = vld [vmem:[#allocation3 + $0xa0] sm:$0xff]
        %v2635 = vld [vmem:[#allocation3 + $0xa8] sm:$0xff]
        %v2636 = vld [vmem:[#allocation3 + $0xb0] sm:$0xff]
        %v2637 = vld [vmem:[#allocation3 + $0xb8] sm:$0xff]
        %v2638 = vld [vmem:[%s2] sm:$0xff]
        %v2639 = vld [vmem:[%s2 + $0x8] sm:$0xff]
        %v2640 = vld [vmem:[%s2 + $0x10] sm:$0x1]
        %v2641 = vld [vmem:[#allocation3 + $0x1] sm:$0xff]
        %v2642 = vld [vmem:[#allocation3 + $0x9] sm:$0xff]
        %v2643 = vld [vmem:[#allocation3 + $0x11] sm:$0xff]
        %v2644 = vld [vmem:[#allocation3 + $0x19] sm:$0xff]
        %v2645 = vld [vmem:[#allocation3 + $0x21] sm:$0xff]
        %v2646 = vld [vmem:[#allocation3 + $0x29] sm:$0xff]
        %v2647 = vld [vmem:[#allocation3 + $0x31] sm:$0xff]
        %v2648 = vld [vmem:[#allocation3 + $0x39] sm:$0xff]
        %v2649 = vld [vmem:[#allocation3 + $0x41] sm:$0xff]
        %v2650 = vld [vmem:[#allocation3 + $0x49] sm:$0xff]
        %v2651 = vld [vmem:[#allocation3 + $0x51] sm:$0xff]
        %v2652 = vld [vmem:[#allocation3 + $0x59] sm:$0xff]
        %v2653 = vld [vmem:[#allocation3 + $0x61] sm:$0xff]
        %v2654 = vld [vmem:[#allocation3 + $0x69] sm:$0xff]
        %v2655 = vld [vmem:[#allocation3 + $0x71] sm:$0xff]
        %v2656 = vld [vmem:[#allocation3 + $0x79] sm:$0xff]
        %v2657 = vld [vmem:[#allocation3 + $0x81] sm:$0xff]
        %v2658 = vld [vmem:[#allocation3 + $0x89] sm:$0xff]
        %v2659 = vld [vmem:[#allocation3 + $0x91] sm:$0xff]
        %v2660 = vld [vmem:[#allocation3 + $0x99] sm:$0xff]
        %v2661 = vld [vmem:[#allocation3 + $0xa1] sm:$0xff]
        %v2662 = vld [vmem:[#allocation3 + $0xa9] sm:$0xff]
        %v2663 = vld [vmem:[#allocation3 + $0xb1] sm:$0xff]
        %v2664 = vld [vmem:[#allocation3 + $0xb9] sm:$0xff]
        %s2665 = scalar_lea.vmem %s2, 24
        %v2666 = vld [vmem:[%s2665] sm:$0xff]
        %v2667 = vld [vmem:[%s2665 + $0x8] sm:$0xff]
        %v2668 = vld [vmem:[%s2665 + $0x10] sm:$0x1]
        %v2670 = vsel %vm708, %v2641, 0
        %v2673 = vsel %vm708, %v2642, 0
        %v2676 = vsel %vm708, %v2643, 0
        %v2679 = vsel %vm708, %v2644, 0
        %v2682 = vsel %vm708, %v2645, 0
        %v2685 = vsel %vm708, %v2646, 0
        %v2688 = vsel %vm708, %v2647, 0
        %v2691 = vsel %vm708, %v2648, 0
        %v2694 = vsel %vm708, %v2649, 0
        %v2697 = vsel %vm708, %v2650, 0
        %v2700 = vsel %vm708, %v2651, 0
        %v2703 = vsel %vm708, %v2652, 0
        %v2706 = vsel %vm708, %v2653, 0
        %v2709 = vsel %vm708, %v2654, 0
        %v2712 = vsel %vm708, %v2655, 0
        %v2715 = vsel %vm708, %v2656, 0
        %v2718 = vsel %vm708, %v2657, 0
        %v2721 = vsel %vm708, %v2658, 0
        %v2724 = vsel %vm708, %v2659, 0
        %v2727 = vsel %vm708, %v2660, 0
        %v2730 = vsel %vm708, %v2661, 0
        %v2733 = vsel %vm708, %v2662, 0
        %v2736 = vsel %vm708, %v2663, 0
        %v2739 = vsel %vm708, %v2664, 0
        %vm2741 = vcmask 1040384
        %v2743 = vsel %vm2741, %v2668, 0
        %2745 = vmatprep.subr.mxu0 0.0
        %2746 = vmatpush1.msra.mxu0 %v2666
        %2747 = vmatprep.subr.mxu0 0.0
        %2748 = vmatpush1.msra.mxu0 %v2667
        %2749 = vmatprep.subr.mxu0 0.0
        %2750 = vmatpush1.msra.mxu0 %v2743
        %2751 = vmatprep.subr.mxu0 0.0
        %2752 = vmatpush1.msra.mxu0 0.0
        %2753 = vmatprep.subr.mxu0 0.0
        %2754 = vmatpush1.msra.mxu0 0.0
        %2755 = vmatprep.subr.mxu0 0.0
        %2756 = vmatpush1.msra.mxu0 0.0
        %2757 = vmatprep.subr.mxu0 0.0
        %2758 = vmatpush1.msra.mxu0 0.0
        %2759 = vmatprep.subr.mxu0 0.0
        %2760 = vmatpush1.msra.mxu0 0.0
        %2761 = vmatprep.subr.mxu0 0.0
        %2762 = vmatpush1.msra.mxu0 0.0
        %2763 = vmatprep.subr.mxu0 0.0
        %2764 = vmatpush1.msra.mxu0 0.0
        %2765 = vmatprep.subr.mxu0 0.0
        %2766 = vmatpush1.msra.mxu0 0.0
        %2767 = vmatprep.subr.mxu0 0.0
        %2768 = vmatpush1.msra.mxu0 0.0
        %2769 = vmatprep.subr.mxu0 0.0
        %2770 = vmatpush1.msra.mxu0 0.0
        %2771 = vmatprep.subr.mxu0 0.0
        %2772 = vmatpush1.msra.mxu0 0.0
        %2773 = vmatprep.subr.mxu0 0.0
        %2774 = vmatpush1.msra.mxu0 0.0
        %2775 = vmatprep.subr.mxu0 0.0
        %2776 = vmatpush1.msra.mxu0 0.0
        %2777 = vmatprep.subr.mxu0 0.0
        %2778 = vmatpush1.msra.mxu0 0.0
        %2779 = vmatprep.subr.mxu0 0.0
        %2780 = vmatpush1.msra.mxu0 0.0
        %2781 = vmatprep.subr.mxu0 0.0
        %2782 = vmatpush1.msra.mxu0 0.0
        %2783 = vmatprep.subr.mxu0 0.0
        %2784 = vmatpush1.msra.mxu0 0.0
        %2785 = vmatprep.subr.mxu0 0.0
        %2786 = vmatpush1.msra.mxu0 0.0
        %2787 = vmatprep.subr.mxu0 0.0
        %2788 = vmatpush1.msra.mxu0 0.0
        %2789 = vmatprep.subr.mxu0 0.0
        %2790 = vmatpush1.msra.mxu0 0.0
        %2791 = vmatprep.subr.mxu0 0.0
        %2792 = vmatpush1.msra.mxu0 0.0
        %2793 = vmatprep.subr.mxu0 0.0
        %2794 = vmatpush1.msra.mxu0 0.0
        %2795 = vmatprep.subr.mxu0 0.0
        %2796 = vmatpush1.msra.mxu0 0.0
        %2797 = vmatprep.subr.mxu0 0.0
        %2798 = vmatpush1.msra.mxu0 0.0
        %2799 = vmatprep.subr.mxu0 0.0
        %2800 = vmatpush1.msra.mxu0 0.0
        %2801 = vmatprep.subr.mxu0 0.0
        %2802 = vmatpush1.msra.mxu0 0.0
        %2803 = vmatprep.subr.mxu0 0.0
        %2804 = vmatpush1.msra.mxu0 0.0
        %2805 = vmatprep.subr.mxu0 0.0
        %2806 = vmatpush1.msra.mxu0 0.0
        %2807 = vmatprep.subr.mxu0 0.0
        %2808 = vmatpush1.msra.mxu0 0.0
        %2809 = vmatprep.mubr.f32.mxu0 0.0
        %2810 = vmatmul.mubr.f32.gmra.mrb[0].mxu0 %v2670
        %v2811 = vpop.f32.mrb[0].mxu0
        %v2812 = vadd.f32 0.0, %v2811
        %v2813 = vpop.f32.mrb[0].mxu0
        %2814 = vmatprep.mubr.f32.mxu0 0.0
        %2815 = vmatmul.mubr.f32.gmra.mrb[0].mxu0 %v2673
        %v2816 = vpop.f32.mrb[0].mxu0
        %v2817 = vadd.f32 0.0, %v2816
        %v2818 = vpop.f32.mrb[0].mxu0
        %2819 = vmatprep.mubr.f32.mxu0 0.0
        %2820 = vmatmul.mubr.f32.gmra.mrb[0].mxu0 %v2676
        %v2821 = vpop.f32.mrb[0].mxu0
        %v2822 = vadd.f32 0.0, %v2821
        %v2823 = vpop.f32.mrb[0].mxu0
        %2824 = vmatprep.mubr.f32.mxu0 0.0
        %2825 = vmatmul.mubr.f32.gmra.mrb[0].mxu0 %v2679
        %v2826 = vpop.f32.mrb[0].mxu0
        %v2827 = vadd.f32 0.0, %v2826
        %v2828 = vpop.f32.mrb[0].mxu0
        %2829 = vmatprep.mubr.f32.mxu0 0.0
        %2830 = vmatmul.mubr.f32.gmra.mrb[0].mxu0 %v2682
        %v2831 = vpop.f32.mrb[0].mxu0
        %v2832 = vadd.f32 0.0, %v2831
        %v2833 = vpop.f32.mrb[0].mxu0
        %2834 = vmatprep.mubr.f32.mxu0 0.0
        %2835 = vmatmul.mubr.f32.gmra.mrb[0].mxu0 %v2685
        %v2836 = vpop.f32.mrb[0].mxu0
        %v2837 = vadd.f32 0.0, %v2836
        %v2838 = vpop.f32.mrb[0].mxu0
        %2839 = vmatprep.mubr.f32.mxu0 0.0
        %2840 = vmatmul.mubr.f32.gmra.mrb[0].mxu0 %v2688
        %v2841 = vpop.f32.mrb[0].mxu0
        %v2842 = vadd.f32 0.0, %v2841
        %v2843 = vpop.f32.mrb[0].mxu0
        %2844 = vmatprep.mubr.f32.mxu0 0.0
        %2845 = vmatmul.mubr.f32.gmra.mrb[0].mxu0 %v2691
        %v2846 = vpop.f32.mrb[0].mxu0
        %v2847 = vadd.f32 0.0, %v2846
        %v2848 = vpop.f32.mrb[0].mxu0
        %2849 = vmatprep.mubr.f32.mxu0 0.0
        %2850 = vmatmul.mubr.f32.gmra.mrb[0].mxu0 %v2694
        %v2851 = vpop.f32.mrb[0].mxu0
        %v2852 = vadd.f32 0.0, %v2851
        %v2853 = vpop.f32.mrb[0].mxu0
        %2854 = vmatprep.mubr.f32.mxu0 0.0
        %2855 = vmatmul.mubr.f32.gmra.mrb[0].mxu0 %v2697
        %v2856 = vpop.f32.mrb[0].mxu0
        %v2857 = vadd.f32 0.0, %v2856
        %v2858 = vpop.f32.mrb[0].mxu0
        %2859 = vmatprep.mubr.f32.mxu0 0.0
        %2860 = vmatmul.mubr.f32.gmra.mrb[0].mxu0 %v2700
        %v2861 = vpop.f32.mrb[0].mxu0
        %v2862 = vadd.f32 0.0, %v2861
        %v2863 = vpop.f32.mrb[0].mxu0
        %2864 = vmatprep.mubr.f32.mxu0 0.0
        %2865 = vmatmul.mubr.f32.gmra.mrb[0].mxu0 %v2703
        %v2866 = vpop.f32.mrb[0].mxu0
        %v2867 = vadd.f32 0.0, %v2866
        %v2868 = vpop.f32.mrb[0].mxu0
        %2869 = vmatprep.mubr.f32.mxu0 0.0
        %2870 = vmatmul.mubr.f32.gmra.mrb[0].mxu0 %v2706
        %v2871 = vpop.f32.mrb[0].mxu0
        %v2872 = vadd.f32 0.0, %v2871
        %v2873 = vpop.f32.mrb[0].mxu0
        %2874 = vmatprep.mubr.f32.mxu0 0.0
        %2875 = vmatmul.mubr.f32.gmra.mrb[0].mxu0 %v2709
        %v2876 = vpop.f32.mrb[0].mxu0
        %v2877 = vadd.f32 0.0, %v2876
        %v2878 = vpop.f32.mrb[0].mxu0
        %2879 = vmatprep.mubr.f32.mxu0 0.0
        %2880 = vmatmul.mubr.f32.gmra.mrb[0].mxu0 %v2712
        %v2881 = vpop.f32.mrb[0].mxu0
        %v2882 = vadd.f32 0.0, %v2881
        %v2883 = vpop.f32.mrb[0].mxu0
        %2884 = vmatprep.mubr.f32.mxu0 0.0
        %2885 = vmatmul.mubr.f32.gmra.mrb[0].mxu0 %v2715
        %v2886 = vpop.f32.mrb[0].mxu0
        %v2887 = vadd.f32 0.0, %v2886
        %v2888 = vpop.f32.mrb[0].mxu0
        %2889 = vmatprep.mubr.f32.mxu0 0.0
        %2890 = vmatmul.mubr.f32.gmra.mrb[0].mxu0 %v2718
        %v2891 = vpop.f32.mrb[0].mxu0
        %v2892 = vadd.f32 0.0, %v2891
        %v2893 = vpop.f32.mrb[0].mxu0
        %2894 = vmatprep.mubr.f32.mxu0 0.0
        %2895 = vmatmul.mubr.f32.gmra.mrb[0].mxu0 %v2721
        %v2896 = vpop.f32.mrb[0].mxu0
        %v2897 = vadd.f32 0.0, %v2896
        %v2898 = vpop.f32.mrb[0].mxu0
        %2899 = vmatprep.mubr.f32.mxu0 0.0
        %2900 = vmatmul.mubr.f32.gmra.mrb[0].mxu0 %v2724
        %v2901 = vpop.f32.mrb[0].mxu0
        %v2902 = vadd.f32 0.0, %v2901
        %v2903 = vpop.f32.mrb[0].mxu0
        %2904 = vmatprep.mubr.f32.mxu0 0.0
        %2905 = vmatmul.mubr.f32.gmra.mrb[0].mxu0 %v2727
        %v2906 = vpop.f32.mrb[0].mxu0
        %v2907 = vadd.f32 0.0, %v2906
        %v2908 = vpop.f32.mrb[0].mxu0
        %2909 = vmatprep.mubr.f32.mxu0 0.0
        %2910 = vmatmul.mubr.f32.gmra.mrb[0].mxu0 %v2730
        %v2911 = vpop.f32.mrb[0].mxu0
        %v2912 = vadd.f32 0.0, %v2911
        %v2913 = vpop.f32.mrb[0].mxu0
        %2914 = vmatprep.mubr.f32.mxu0 0.0
        %2915 = vmatmul.mubr.f32.gmra.mrb[0].mxu0 %v2733
        %v2916 = vpop.f32.mrb[0].mxu0
        %v2917 = vadd.f32 0.0, %v2916
        %v2918 = vpop.f32.mrb[0].mxu0
        %2919 = vmatprep.mubr.f32.mxu0 0.0
        %2920 = vmatmul.mubr.f32.gmra.mrb[0].mxu0 %v2736
        %v2921 = vpop.f32.mrb[0].mxu0
        %v2922 = vadd.f32 0.0, %v2921
        %v2923 = vpop.f32.mrb[0].mxu0
        %2924 = vmatprep.mubr.f32.mxu0 0.0
        %2925 = vmatmul.mubr.f32.gmra.mrb[0].mxu0 %v2739
        %v2926 = vpop.f32.mrb[0].mxu0
        %v2927 = vadd.f32 0.0, %v2926
        %v2928 = vpop.f32.mrb[0].mxu0
        %2929 = vdwg.mxu0
        %v2931 = vsel %vm708, %v2614, 0
        %v2934 = vsel %vm708, %v2615, 0
        %v2937 = vsel %vm708, %v2616, 0
        %v2940 = vsel %vm708, %v2617, 0
        %v2943 = vsel %vm708, %v2618, 0
        %v2946 = vsel %vm708, %v2619, 0
        %v2949 = vsel %vm708, %v2620, 0
        %v2952 = vsel %vm708, %v2621, 0
        %v2955 = vsel %vm708, %v2622, 0
        %v2958 = vsel %vm708, %v2623, 0
        %v2961 = vsel %vm708, %v2624, 0
        %v2964 = vsel %vm708, %v2625, 0
        %v2967 = vsel %vm708, %v2626, 0
        %v2970 = vsel %vm708, %v2627, 0
        %v2973 = vsel %vm708, %v2628, 0
        %v2976 = vsel %vm708, %v2629, 0
        %v2979 = vsel %vm708, %v2630, 0
        %v2982 = vsel %vm708, %v2631, 0
        %v2985 = vsel %vm708, %v2632, 0
        %v2988 = vsel %vm708, %v2633, 0
        %v2991 = vsel %vm708, %v2634, 0
        %v2994 = vsel %vm708, %v2635, 0
        %v2997 = vsel %vm708, %v2636, 0
        %v3000 = vsel %vm708, %v2637, 0
        %v3003 = vsel %vm2741, %v2640, 0
        %3005 = vmatprep.subr.mxu0 0.0
        %3006 = vmatpush1.msra.mxu0 %v2638
        %3007 = vmatprep.subr.mxu0 0.0
        %3008 = vmatpush1.msra.mxu0 %v2639
        %3009 = vmatprep.subr.mxu0 0.0
        %3010 = vmatpush1.msra.mxu0 %v3003
        %3011 = vmatprep.subr.mxu0 0.0
        %3012 = vmatpush1.msra.mxu0 0.0
        %3013 = vmatprep.subr.mxu0 0.0
        %3014 = vmatpush1.msra.mxu0 0.0
        %3015 = vmatprep.subr.mxu0 0.0
        %3016 = vmatpush1.msra.mxu0 0.0
        %3017 = vmatprep.subr.mxu0 0.0
        %3018 = vmatpush1.msra.mxu0 0.0
        %3019 = vmatprep.subr.mxu0 0.0
        %3020 = vmatpush1.msra.mxu0 0.0
        %3021 = vmatprep.subr.mxu0 0.0
        %3022 = vmatpush1.msra.mxu0 0.0
        %3023 = vmatprep.subr.mxu0 0.0
        %3024 = vmatpush1.msra.mxu0 0.0
        %3025 = vmatprep.subr.mxu0 0.0
        %3026 = vmatpush1.msra.mxu0 0.0
        %3027 = vmatprep.subr.mxu0 0.0
        %3028 = vmatpush1.msra.mxu0 0.0
        %3029 = vmatprep.subr.mxu0 0.0
        %3030 = vmatpush1.msra.mxu0 0.0
        %3031 = vmatprep.subr.mxu0 0.0
        %3032 = vmatpush1.msra.mxu0 0.0
        %3033 = vmatprep.subr.mxu0 0.0
        %3034 = vmatpush1.msra.mxu0 0.0
        %3035 = vmatprep.subr.mxu0 0.0
        %3036 = vmatpush1.msra.mxu0 0.0
        %3037 = vmatprep.subr.mxu0 0.0
        %3038 = vmatpush1.msra.mxu0 0.0
        %3039 = vmatprep.subr.mxu0 0.0
        %3040 = vmatpush1.msra.mxu0 0.0
        %3041 = vmatprep.subr.mxu0 0.0
        %3042 = vmatpush1.msra.mxu0 0.0
        %3043 = vmatprep.subr.mxu0 0.0
        %3044 = vmatpush1.msra.mxu0 0.0
        %3045 = vmatprep.subr.mxu0 0.0
        %3046 = vmatpush1.msra.mxu0 0.0
        %3047 = vmatprep.subr.mxu0 0.0
        %3048 = vmatpush1.msra.mxu0 0.0
        %3049 = vmatprep.subr.mxu0 0.0
        %3050 = vmatpush1.msra.mxu0 0.0
        %3051 = vmatprep.subr.mxu0 0.0
        %3052 = vmatpush1.msra.mxu0 0.0
        %3053 = vmatprep.subr.mxu0 0.0
        %3054 = vmatpush1.msra.mxu0 0.0
        %3055 = vmatprep.subr.mxu0 0.0
        %3056 = vmatpush1.msra.mxu0 0.0
        %3057 = vmatprep.subr.mxu0 0.0
        %3058 = vmatpush1.msra.mxu0 0.0
        %3059 = vmatprep.subr.mxu0 0.0
        %3060 = vmatpush1.msra.mxu0 0.0
        %3061 = vmatprep.subr.mxu0 0.0
        %3062 = vmatpush1.msra.mxu0 0.0
        %3063 = vmatprep.subr.mxu0 0.0
        %3064 = vmatpush1.msra.mxu0 0.0
        %3065 = vmatprep.subr.mxu0 0.0
        %3066 = vmatpush1.msra.mxu0 0.0
        %3067 = vmatprep.subr.mxu0 0.0
        %3068 = vmatpush1.msra.mxu0 0.0
        %3069 = vmatprep.mubr.f32.mxu0 0.0
        %3070 = vmatmul.mubr.f32.gmra.mrb[0].mxu0 %v2931
        %v3071 = vpop.f32.mrb[0].mxu0
        %v3072 = vadd.f32 %v2812, %v3071
        %v3073 = vpop.f32.mrb[0].mxu0
        %3074 = vmatprep.mubr.f32.mxu0 0.0
        %3075 = vmatmul.mubr.f32.gmra.mrb[0].mxu0 %v2934
        %v3076 = vpop.f32.mrb[0].mxu0
        %v3077 = vadd.f32 %v2817, %v3076
        %v3078 = vpop.f32.mrb[0].mxu0
        %3079 = vmatprep.mubr.f32.mxu0 0.0
        %3080 = vmatmul.mubr.f32.gmra.mrb[0].mxu0 %v2937
        %v3081 = vpop.f32.mrb[0].mxu0
        %v3082 = vadd.f32 %v2822, %v3081
        %v3083 = vpop.f32.mrb[0].mxu0
        %3084 = vmatprep.mubr.f32.mxu0 0.0
        %3085 = vmatmul.mubr.f32.gmra.mrb[0].mxu0 %v2940
        %v3086 = vpop.f32.mrb[0].mxu0
        %v3087 = vadd.f32 %v2827, %v3086
        %v3088 = vpop.f32.mrb[0].mxu0
        %3089 = vmatprep.mubr.f32.mxu0 0.0
        %3090 = vmatmul.mubr.f32.gmra.mrb[0].mxu0 %v2943
        %v3091 = vpop.f32.mrb[0].mxu0
        %v3092 = vadd.f32 %v2832, %v3091
        %v3093 = vpop.f32.mrb[0].mxu0
        %3094 = vmatprep.mubr.f32.mxu0 0.0
        %3095 = vmatmul.mubr.f32.gmra.mrb[0].mxu0 %v2946
        %v3096 = vpop.f32.mrb[0].mxu0
        %v3097 = vadd.f32 %v2837, %v3096
        %v3098 = vpop.f32.mrb[0].mxu0
        %3099 = vmatprep.mubr.f32.mxu0 0.0
        %3100 = vmatmul.mubr.f32.gmra.mrb[0].mxu0 %v2949
        %v3101 = vpop.f32.mrb[0].mxu0
        %v3102 = vadd.f32 %v2842, %v3101
        %v3103 = vpop.f32.mrb[0].mxu0
        %3104 = vmatprep.mubr.f32.mxu0 0.0
        %3105 = vmatmul.mubr.f32.gmra.mrb[0].mxu0 %v2952
        %v3106 = vpop.f32.mrb[0].mxu0
        %v3107 = vadd.f32 %v2847, %v3106
        %v3108 = vpop.f32.mrb[0].mxu0
        %3109 = vmatprep.mubr.f32.mxu0 0.0
        %3110 = vmatmul.mubr.f32.gmra.mrb[0].mxu0 %v2955
        %v3111 = vpop.f32.mrb[0].mxu0
        %v3112 = vadd.f32 %v2852, %v3111
        %v3113 = vpop.f32.mrb[0].mxu0
        %3114 = vmatprep.mubr.f32.mxu0 0.0
        %3115 = vmatmul.mubr.f32.gmra.mrb[0].mxu0 %v2958
        %v3116 = vpop.f32.mrb[0].mxu0
        %v3117 = vadd.f32 %v2857, %v3116
        %v3118 = vpop.f32.mrb[0].mxu0
        %3119 = vmatprep.mubr.f32.mxu0 0.0
        %3120 = vmatmul.mubr.f32.gmra.mrb[0].mxu0 %v2961
        %v3121 = vpop.f32.mrb[0].mxu0
        %v3122 = vadd.f32 %v2862, %v3121
        %v3123 = vpop.f32.mrb[0].mxu0
        %3124 = vmatprep.mubr.f32.mxu0 0.0
        %3125 = vmatmul.mubr.f32.gmra.mrb[0].mxu0 %v2964
        %v3126 = vpop.f32.mrb[0].mxu0
        %v3127 = vadd.f32 %v2867, %v3126
        %v3128 = vpop.f32.mrb[0].mxu0
        %3129 = vmatprep.mubr.f32.mxu0 0.0
        %3130 = vmatmul.mubr.f32.gmra.mrb[0].mxu0 %v2967
        %v3131 = vpop.f32.mrb[0].mxu0
        %v3132 = vadd.f32 %v2872, %v3131
        %v3133 = vpop.f32.mrb[0].mxu0
        %3134 = vmatprep.mubr.f32.mxu0 0.0
        %3135 = vmatmul.mubr.f32.gmra.mrb[0].mxu0 %v2970
        %v3136 = vpop.f32.mrb[0].mxu0
        %v3137 = vadd.f32 %v2877, %v3136
        %v3138 = vpop.f32.mrb[0].mxu0
        %3139 = vmatprep.mubr.f32.mxu0 0.0
        %3140 = vmatmul.mubr.f32.gmra.mrb[0].mxu0 %v2973
        %v3141 = vpop.f32.mrb[0].mxu0
        %v3142 = vadd.f32 %v2882, %v3141
        %v3143 = vpop.f32.mrb[0].mxu0
        %3144 = vmatprep.mubr.f32.mxu0 0.0
        %3145 = vmatmul.mubr.f32.gmra.mrb[0].mxu0 %v2976
        %v3146 = vpop.f32.mrb[0].mxu0
        %v3147 = vadd.f32 %v2887, %v3146
        %v3148 = vpop.f32.mrb[0].mxu0
        %3149 = vmatprep.mubr.f32.mxu0 0.0
        %3150 = vmatmul.mubr.f32.gmra.mrb[0].mxu0 %v2979
        %v3151 = vpop.f32.mrb[0].mxu0
        %v3152 = vadd.f32 %v2892, %v3151
        %v3153 = vpop.f32.mrb[0].mxu0
        %3154 = vmatprep.mubr.f32.mxu0 0.0
        %3155 = vmatmul.mubr.f32.gmra.mrb[0].mxu0 %v2982
        %v3156 = vpop.f32.mrb[0].mxu0
        %v3157 = vadd.f32 %v2897, %v3156
        %v3158 = vpop.f32.mrb[0].mxu0
        %3159 = vmatprep.mubr.f32.mxu0 0.0
        %3160 = vmatmul.mubr.f32.gmra.mrb[0].mxu0 %v2985
        %v3161 = vpop.f32.mrb[0].mxu0
        %v3162 = vadd.f32 %v2902, %v3161
        %v3163 = vpop.f32.mrb[0].mxu0
        %3164 = vmatprep.mubr.f32.mxu0 0.0
        %3165 = vmatmul.mubr.f32.gmra.mrb[0].mxu0 %v2988
        %v3166 = vpop.f32.mrb[0].mxu0
        %v3167 = vadd.f32 %v2907, %v3166
        %v3168 = vpop.f32.mrb[0].mxu0
        %3169 = vmatprep.mubr.f32.mxu0 0.0
        %3170 = vmatmul.mubr.f32.gmra.mrb[0].mxu0 %v2991
        %v3171 = vpop.f32.mrb[0].mxu0
        %v3172 = vadd.f32 %v2912, %v3171
        %v3173 = vpop.f32.mrb[0].mxu0
        %3174 = vmatprep.mubr.f32.mxu0 0.0
        %3175 = vmatmul.mubr.f32.gmra.mrb[0].mxu0 %v2994
        %v3176 = vpop.f32.mrb[0].mxu0
        %v3177 = vadd.f32 %v2917, %v3176
        %v3178 = vpop.f32.mrb[0].mxu0
        %3179 = vmatprep.mubr.f32.mxu0 0.0
        %3180 = vmatmul.mubr.f32.gmra.mrb[0].mxu0 %v2997
        %v3181 = vpop.f32.mrb[0].mxu0
        %v3182 = vadd.f32 %v2922, %v3181
        %v3183 = vpop.f32.mrb[0].mxu0
        %3184 = vmatprep.mubr.f32.mxu0 0.0
        %3185 = vmatmul.mubr.f32.gmra.mrb[0].mxu0 %v3000
        %v3186 = vpop.f32.mrb[0].mxu0
        %v3187 = vadd.f32 %v2927, %v3186
        %v3188 = vpop.f32.mrb[0].mxu0
        %3189 = vdwg.mxu0
        %v3190 = vld [vmem:[#allocation3 + $0x2] sm:$0xff]
        %v3191 = vld [vmem:[#allocation3 + $0xa] sm:$0xff]
        %v3192 = vld [vmem:[#allocation3 + $0x12] sm:$0xff]
        %v3193 = vld [vmem:[#allocation3 + $0x1a] sm:$0xff]
        %v3194 = vld [vmem:[#allocation3 + $0x22] sm:$0xff]
        %v3195 = vld [vmem:[#allocation3 + $0x2a] sm:$0xff]
        %v3196 = vld [vmem:[#allocation3 + $0x32] sm:$0xff]
        %v3197 = vld [vmem:[#allocation3 + $0x3a] sm:$0xff]
        %v3198 = vld [vmem:[#allocation3 + $0x42] sm:$0xff]
        %v3199 = vld [vmem:[#allocation3 + $0x4a] sm:$0xff]
        %v3200 = vld [vmem:[#allocation3 + $0x52] sm:$0xff]
        %v3201 = vld [vmem:[#allocation3 + $0x5a] sm:$0xff]
        %v3202 = vld [vmem:[#allocation3 + $0x62] sm:$0xff]
        %v3203 = vld [vmem:[#allocation3 + $0x6a] sm:$0xff]
        %v3204 = vld [vmem:[#allocation3 + $0x72] sm:$0xff]
        %v3205 = vld [vmem:[#allocation3 + $0x7a] sm:$0xff]
        %v3206 = vld [vmem:[#allocation3 + $0x82] sm:$0xff]
        %v3207 = vld [vmem:[#allocation3 + $0x8a] sm:$0xff]
        %v3208 = vld [vmem:[#allocation3 + $0x92] sm:$0xff]
        %v3209 = vld [vmem:[#allocation3 + $0x9a] sm:$0xff]
        %v3210 = vld [vmem:[#allocation3 + $0xa2] sm:$0xff]
        %v3211 = vld [vmem:[#allocation3 + $0xaa] sm:$0xff]
        %v3212 = vld [vmem:[#allocation3 + $0xb2] sm:$0xff]
        %v3213 = vld [vmem:[#allocation3 + $0xba] sm:$0xff]
        %s3214 = scalar_lea.vmem %s2, 48
        %v3215 = vld [vmem:[%s3214] sm:$0xff]
        %v3216 = vld [vmem:[%s3214 + $0x8] sm:$0xff]
        %v3217 = vld [vmem:[%s3214 + $0x10] sm:$0x1]
        %v3219 = vsel %vm708, %v3190, 0
        %v3222 = vsel %vm708, %v3191, 0
        %v3225 = vsel %vm708, %v3192, 0
        %v3228 = vsel %vm708, %v3193, 0
        %v3231 = vsel %vm708, %v3194, 0
        %v3234 = vsel %vm708, %v3195, 0
        %v3237 = vsel %vm708, %v3196, 0
        %v3240 = vsel %vm708, %v3197, 0
        %v3243 = vsel %vm708, %v3198, 0
        %v3246 = vsel %vm708, %v3199, 0
        %v3249 = vsel %vm708, %v3200, 0
        %v3252 = vsel %vm708, %v3201, 0
        %v3255 = vsel %vm708, %v3202, 0
        %v3258 = vsel %vm708, %v3203, 0
        %v3261 = vsel %vm708, %v3204, 0
        %v3264 = vsel %vm708, %v3205, 0
        %v3267 = vsel %vm708, %v3206, 0
        %v3270 = vsel %vm708, %v3207, 0
        %v3273 = vsel %vm708, %v3208, 0
        %v3276 = vsel %vm708, %v3209, 0
        %v3279 = vsel %vm708, %v3210, 0
        %v3282 = vsel %vm708, %v3211, 0
        %v3285 = vsel %vm708, %v3212, 0
        %v3288 = vsel %vm708, %v3213, 0
        %v3291 = vsel %vm2741, %v3217, 0
        %3293 = vmatprep.subr.mxu0 0.0
        %3294 = vmatpush1.msra.mxu0 %v3215
        %3295 = vmatprep.subr.mxu0 0.0
        %3296 = vmatpush1.msra.mxu0 %v3216
        %3297 = vmatprep.subr.mxu0 0.0
        %3298 = vmatpush1.msra.mxu0 %v3291
        %3299 = vmatprep.subr.mxu0 0.0
        %3300 = vmatpush1.msra.mxu0 0.0
        %3301 = vmatprep.subr.mxu0 0.0
        %3302 = vmatpush1.msra.mxu0 0.0
        %3303 = vmatprep.subr.mxu0 0.0
        %3304 = vmatpush1.msra.mxu0 0.0
        %3305 = vmatprep.subr.mxu0 0.0
        %3306 = vmatpush1.msra.mxu0 0.0
        %3307 = vmatprep.subr.mxu0 0.0
        %3308 = vmatpush1.msra.mxu0 0.0
        %3309 = vmatprep.subr.mxu0 0.0
        %3310 = vmatpush1.msra.mxu0 0.0
        %3311 = vmatprep.subr.mxu0 0.0
        %3312 = vmatpush1.msra.mxu0 0.0
        %3313 = vmatprep.subr.mxu0 0.0
        %3314 = vmatpush1.msra.mxu0 0.0
        %3315 = vmatprep.subr.mxu0 0.0
        %3316 = vmatpush1.msra.mxu0 0.0
        %3317 = vmatprep.subr.mxu0 0.0
        %3318 = vmatpush1.msra.mxu0 0.0
        %3319 = vmatprep.subr.mxu0 0.0
        %3320 = vmatpush1.msra.mxu0 0.0
        %3321 = vmatprep.subr.mxu0 0.0
        %3322 = vmatpush1.msra.mxu0 0.0
        %3323 = vmatprep.subr.mxu0 0.0
        %3324 = vmatpush1.msra.mxu0 0.0
        %3325 = vmatprep.subr.mxu0 0.0
        %3326 = vmatpush1.msra.mxu0 0.0
        %3327 = vmatprep.subr.mxu0 0.0
        %3328 = vmatpush1.msra.mxu0 0.0
        %3329 = vmatprep.subr.mxu0 0.0
        %3330 = vmatpush1.msra.mxu0 0.0
        %3331 = vmatprep.subr.mxu0 0.0
        %3332 = vmatpush1.msra.mxu0 0.0
        %3333 = vmatprep.subr.mxu0 0.0
        %3334 = vmatpush1.msra.mxu0 0.0
        %3335 = vmatprep.subr.mxu0 0.0
        %3336 = vmatpush1.msra.mxu0 0.0
        %3337 = vmatprep.subr.mxu0 0.0
        %3338 = vmatpush1.msra.mxu0 0.0
        %3339 = vmatprep.subr.mxu0 0.0
        %3340 = vmatpush1.msra.mxu0 0.0
        %3341 = vmatprep.subr.mxu0 0.0
        %3342 = vmatpush1.msra.mxu0 0.0
        %3343 = vmatprep.subr.mxu0 0.0
        %3344 = vmatpush1.msra.mxu0 0.0
        %3345 = vmatprep.subr.mxu0 0.0
        %3346 = vmatpush1.msra.mxu0 0.0
        %3347 = vmatprep.subr.mxu0 0.0
        %3348 = vmatpush1.msra.mxu0 0.0
        %3349 = vmatprep.subr.mxu0 0.0
        %3350 = vmatpush1.msra.mxu0 0.0
        %3351 = vmatprep.subr.mxu0 0.0
        %3352 = vmatpush1.msra.mxu0 0.0
        %3353 = vmatprep.subr.mxu0 0.0
        %3354 = vmatpush1.msra.mxu0 0.0
        %3355 = vmatprep.subr.mxu0 0.0
        %3356 = vmatpush1.msra.mxu0 0.0
        %3357 = vmatprep.mubr.f32.mxu0 0.0
        %3358 = vmatmul.mubr.f32.gmra.mrb[0].mxu0 %v3219
        %v3359 = vpop.f32.mrb[0].mxu0
        %v3360 = vadd.f32 0.0, %v3359
        %v3361 = vpop.f32.mrb[0].mxu0
        %3362 = vmatprep.mubr.f32.mxu0 0.0
        %3363 = vmatmul.mubr.f32.gmra.mrb[0].mxu0 %v3222
        %v3364 = vpop.f32.mrb[0].mxu0
        %v3365 = vadd.f32 0.0, %v3364
        %v3366 = vpop.f32.mrb[0].mxu0
        %3367 = vmatprep.mubr.f32.mxu0 0.0
        %3368 = vmatmul.mubr.f32.gmra.mrb[0].mxu0 %v3225
        %v3369 = vpop.f32.mrb[0].mxu0
        %v3370 = vadd.f32 0.0, %v3369
        %v3371 = vpop.f32.mrb[0].mxu0
        %3372 = vmatprep.mubr.f32.mxu0 0.0
        %3373 = vmatmul.mubr.f32.gmra.mrb[0].mxu0 %v3228
        %v3374 = vpop.f32.mrb[0].mxu0
        %v3375 = vadd.f32 0.0, %v3374
        %v3376 = vpop.f32.mrb[0].mxu0
        %3377 = vmatprep.mubr.f32.mxu0 0.0
        %3378 = vmatmul.mubr.f32.gmra.mrb[0].mxu0 %v3231
        %v3379 = vpop.f32.mrb[0].mxu0
        %v3380 = vadd.f32 0.0, %v3379
        %v3381 = vpop.f32.mrb[0].mxu0
        %3382 = vmatprep.mubr.f32.mxu0 0.0
        %3383 = vmatmul.mubr.f32.gmra.mrb[0].mxu0 %v3234
        %v3384 = vpop.f32.mrb[0].mxu0
        %v3385 = vadd.f32 0.0, %v3384
        %v3386 = vpop.f32.mrb[0].mxu0
        %3387 = vmatprep.mubr.f32.mxu0 0.0
        %3388 = vmatmul.mubr.f32.gmra.mrb[0].mxu0 %v3237
        %v3389 = vpop.f32.mrb[0].mxu0
        %v3390 = vadd.f32 0.0, %v3389
        %v3391 = vpop.f32.mrb[0].mxu0
        %3392 = vmatprep.mubr.f32.mxu0 0.0
        %3393 = vmatmul.mubr.f32.gmra.mrb[0].mxu0 %v3240
        %v3394 = vpop.f32.mrb[0].mxu0
        %v3395 = vadd.f32 0.0, %v3394
        %v3396 = vpop.f32.mrb[0].mxu0
        %3397 = vmatprep.mubr.f32.mxu0 0.0
        %3398 = vmatmul.mubr.f32.gmra.mrb[0].mxu0 %v3243
        %v3399 = vpop.f32.mrb[0].mxu0
        %v3400 = vadd.f32 0.0, %v3399
        %v3401 = vpop.f32.mrb[0].mxu0
        %3402 = vmatprep.mubr.f32.mxu0 0.0
        %3403 = vmatmul.mubr.f32.gmra.mrb[0].mxu0 %v3246
        %v3404 = vpop.f32.mrb[0].mxu0
        %v3405 = vadd.f32 0.0, %v3404
        %v3406 = vpop.f32.mrb[0].mxu0
        %3407 = vmatprep.mubr.f32.mxu0 0.0
        %3408 = vmatmul.mubr.f32.gmra.mrb[0].mxu0 %v3249
        %v3409 = vpop.f32.mrb[0].mxu0
        %v3410 = vadd.f32 0.0, %v3409
        %v3411 = vpop.f32.mrb[0].mxu0
        %3412 = vmatprep.mubr.f32.mxu0 0.0
        %3413 = vmatmul.mubr.f32.gmra.mrb[0].mxu0 %v3252
        %v3414 = vpop.f32.mrb[0].mxu0
        %v3415 = vadd.f32 0.0, %v3414
        %v3416 = vpop.f32.mrb[0].mxu0
        %3417 = vmatprep.mubr.f32.mxu0 0.0
        %3418 = vmatmul.mubr.f32.gmra.mrb[0].mxu0 %v3255
        %v3419 = vpop.f32.mrb[0].mxu0
        %v3420 = vadd.f32 0.0, %v3419
        %v3421 = vpop.f32.mrb[0].mxu0
        %3422 = vmatprep.mubr.f32.mxu0 0.0
        %3423 = vmatmul.mubr.f32.gmra.mrb[0].mxu0 %v3258
        %v3424 = vpop.f32.mrb[0].mxu0
        %v3425 = vadd.f32 0.0, %v3424
        %v3426 = vpop.f32.mrb[0].mxu0
        %3427 = vmatprep.mubr.f32.mxu0 0.0
        %3428 = vmatmul.mubr.f32.gmra.mrb[0].mxu0 %v3261
        %v3429 = vpop.f32.mrb[0].mxu0
        %v3430 = vadd.f32 0.0, %v3429
        %v3431 = vpop.f32.mrb[0].mxu0
        %3432 = vmatprep.mubr.f32.mxu0 0.0
        %3433 = vmatmul.mubr.f32.gmra.mrb[0].mxu0 %v3264
        %v3434 = vpop.f32.mrb[0].mxu0
        %v3435 = vadd.f32 0.0, %v3434
        %v3436 = vpop.f32.mrb[0].mxu0
        %3437 = vmatprep.mubr.f32.mxu0 0.0
        %3438 = vmatmul.mubr.f32.gmra.mrb[0].mxu0 %v3267
        %v3439 = vpop.f32.mrb[0].mxu0
        %v3440 = vadd.f32 0.0, %v3439
        %v3441 = vpop.f32.mrb[0].mxu0
        %3442 = vmatprep.mubr.f32.mxu0 0.0
        %3443 = vmatmul.mubr.f32.gmra.mrb[0].mxu0 %v3270
        %v3444 = vpop.f32.mrb[0].mxu0
        %v3445 = vadd.f32 0.0, %v3444
        %v3446 = vpop.f32.mrb[0].mxu0
        %3447 = vmatprep.mubr.f32.mxu0 0.0
        %3448 = vmatmul.mubr.f32.gmra.mrb[0].mxu0 %v3273
        %v3449 = vpop.f32.mrb[0].mxu0
        %v3450 = vadd.f32 0.0, %v3449
        %v3451 = vpop.f32.mrb[0].mxu0
        %3452 = vmatprep.mubr.f32.mxu0 0.0
        %3453 = vmatmul.mubr.f32.gmra.mrb[0].mxu0 %v3276
        %v3454 = vpop.f32.mrb[0].mxu0
        %v3455 = vadd.f32 0.0, %v3454
        %v3456 = vpop.f32.mrb[0].mxu0
        %3457 = vmatprep.mubr.f32.mxu0 0.0
        %3458 = vmatmul.mubr.f32.gmra.mrb[0].mxu0 %v3279
        %v3459 = vpop.f32.mrb[0].mxu0
        %v3460 = vadd.f32 0.0, %v3459
        %v3461 = vpop.f32.mrb[0].mxu0
        %3462 = vmatprep.mubr.f32.mxu0 0.0
        %3463 = vmatmul.mubr.f32.gmra.mrb[0].mxu0 %v3282
        %v3464 = vpop.f32.mrb[0].mxu0
        %v3465 = vadd.f32 0.0, %v3464
        %v3466 = vpop.f32.mrb[0].mxu0
        %3467 = vmatprep.mubr.f32.mxu0 0.0
        %3468 = vmatmul.mubr.f32.gmra.mrb[0].mxu0 %v3285
        %v3469 = vpop.f32.mrb[0].mxu0
        %v3470 = vadd.f32 0.0, %v3469
        %v3471 = vpop.f32.mrb[0].mxu0
        %3472 = vmatprep.mubr.f32.mxu0 0.0
        %3473 = vmatmul.mubr.f32.gmra.mrb[0].mxu0 %v3288
        %v3474 = vpop.f32.mrb[0].mxu0
        %v3475 = vadd.f32 0.0, %v3474
        %v3476 = vpop.f32.mrb[0].mxu0
        %3477 = vdwg.mxu0
        %v3478 = vadd.f32 %v3072, %v3360
        %v3479 = vadd.f32 %v3077, %v3365
        %v3480 = vadd.f32 %v3082, %v3370
        %v3481 = vadd.f32 %v3087, %v3375
        %v3482 = vadd.f32 %v3092, %v3380
        %v3483 = vadd.f32 %v3097, %v3385
        %v3484 = vadd.f32 %v3102, %v3390
        %v3485 = vadd.f32 %v3107, %v3395
        %v3486 = vadd.f32 %v3112, %v3400
        %v3487 = vadd.f32 %v3117, %v3405
        %v3488 = vadd.f32 %v3122, %v3410
        %v3489 = vadd.f32 %v3127, %v3415
        %v3490 = vadd.f32 %v3132, %v3420
        %v3491 = vadd.f32 %v3137, %v3425
        %v3492 = vadd.f32 %v3142, %v3430
        %v3493 = vadd.f32 %v3147, %v3435
        %v3494 = vadd.f32 %v3152, %v3440
        %v3495 = vadd.f32 %v3157, %v3445
        %v3496 = vadd.f32 %v3162, %v3450
        %v3497 = vadd.f32 %v3167, %v3455
        %v3498 = vadd.f32 %v3172, %v3460
        %v3499 = vadd.f32 %v3177, %v3465
        %v3500 = vadd.f32 %v3182, %v3470
        %v3501 = vadd.f32 %v3187, %v3475
        %v3502 = vld [vmem:[%s8] sm:$0x1]
        %v3504 = vlaneseq
        %v3505 = vshrl.u32 %v3504, 7
        %v3506 = vsub.s32 0, %v3505
        %v3507 = vrot.slane %v3502, %v3506
        %v3509 = vadd.f32 %v3478, %v3507
        %v3510 = vadd.f32 %v3479, %v3507
        %v3511 = vadd.f32 %v3480, %v3507
        %v3512 = vadd.f32 %v3481, %v3507
        %v3513 = vadd.f32 %v3482, %v3507
        %v3514 = vadd.f32 %v3483, %v3507
        %v3515 = vadd.f32 %v3484, %v3507
        %v3516 = vadd.f32 %v3485, %v3507
        %v3517 = vadd.f32 %v3486, %v3507
        %v3518 = vadd.f32 %v3487, %v3507
        %v3519 = vadd.f32 %v3488, %v3507
        %v3520 = vadd.f32 %v3489, %v3507
        %v3521 = vadd.f32 %v3490, %v3507
        %v3522 = vadd.f32 %v3491, %v3507
        %v3523 = vadd.f32 %v3492, %v3507
        %v3524 = vadd.f32 %v3493, %v3507
        %v3525 = vadd.f32 %v3494, %v3507
        %v3526 = vadd.f32 %v3495, %v3507
        %v3527 = vadd.f32 %v3496, %v3507
        %v3528 = vadd.f32 %v3497, %v3507
        %v3529 = vadd.f32 %v3498, %v3507
        %v3530 = vadd.f32 %v3499, %v3507
        %v3531 = vadd.f32 %v3500, %v3507
        %v3532 = vadd.f32 %v3501, %v3507
        %v3533 = vmax.f32 %v3509, 0.0
        %v3534 = vmax.f32 %v3510, 0.0
        %v3535 = vmax.f32 %v3511, 0.0
        %v3536 = vmax.f32 %v3512, 0.0
        %v3537 = vmax.f32 %v3513, 0.0
        %v3538 = vmax.f32 %v3514, 0.0
        %v3539 = vmax.f32 %v3515, 0.0
        %v3540 = vmax.f32 %v3516, 0.0
        %v3541 = vmax.f32 %v3517, 0.0
        %v3542 = vmax.f32 %v3518, 0.0
        %v3543 = vmax.f32 %v3519, 0.0
        %v3544 = vmax.f32 %v3520, 0.0
        %v3545 = vmax.f32 %v3521, 0.0
        %v3546 = vmax.f32 %v3522, 0.0
        %v3547 = vmax.f32 %v3523, 0.0
        %v3548 = vmax.f32 %v3524, 0.0
        %v3549 = vmax.f32 %v3525, 0.0
        %v3550 = vmax.f32 %v3526, 0.0
        %v3551 = vmax.f32 %v3527, 0.0
        %v3552 = vmax.f32 %v3528, 0.0
        %v3553 = vmax.f32 %v3529, 0.0
        %v3554 = vmax.f32 %v3530, 0.0
        %v3555 = vmax.f32 %v3531, 0.0
        %v3556 = vmax.f32 %v3532, 0.0
        %3557 = vst.msk [vmem:[#allocation4] sm:$0xff] %vm708, %v3533
        %3558 = vst.msk [vmem:[#allocation4 + $0x8] sm:$0xff] %vm708, %v3534
        %3559 = vst.msk [vmem:[#allocation4 + $0x10] sm:$0xff] %vm708, %v3535
        %3560 = vst.msk [vmem:[#allocation4 + $0x18] sm:$0xff] %vm708, %v3536
        %3561 = vst.msk [vmem:[#allocation4 + $0x20] sm:$0xff] %vm708, %v3537
        %3562 = vst.msk [vmem:[#allocation4 + $0x28] sm:$0xff] %vm708, %v3538
        %3563 = vst.msk [vmem:[#allocation4 + $0x30] sm:$0xff] %vm708, %v3539
        %3564 = vst.msk [vmem:[#allocation4 + $0x38] sm:$0xff] %vm708, %v3540
        %3565 = vst.msk [vmem:[#allocation4 + $0x40] sm:$0xff] %vm708, %v3541
        %3566 = vst.msk [vmem:[#allocation4 + $0x48] sm:$0xff] %vm708, %v3542
        %3567 = vst.msk [vmem:[#allocation4 + $0x50] sm:$0xff] %vm708, %v3543
        %3568 = vst.msk [vmem:[#allocation4 + $0x58] sm:$0xff] %vm708, %v3544
        %3569 = vst.msk [vmem:[#allocation4 + $0x60] sm:$0xff] %vm708, %v3545
        %3570 = vst.msk [vmem:[#allocation4 + $0x68] sm:$0xff] %vm708, %v3546
        %3571 = vst.msk [vmem:[#allocation4 + $0x70] sm:$0xff] %vm708, %v3547
        %3572 = vst.msk [vmem:[#allocation4 + $0x78] sm:$0xff] %vm708, %v3548
        %3573 = vst.msk [vmem:[#allocation4 + $0x80] sm:$0xff] %vm708, %v3549
        %3574 = vst.msk [vmem:[#allocation4 + $0x88] sm:$0xff] %vm708, %v3550
        %3575 = vst.msk [vmem:[#allocation4 + $0x90] sm:$0xff] %vm708, %v3551
        %3576 = vst.msk [vmem:[#allocation4 + $0x98] sm:$0xff] %vm708, %v3552
        %3577 = vst.msk [vmem:[#allocation4 + $0xa0] sm:$0xff] %vm708, %v3553
        %3578 = vst.msk [vmem:[#allocation4 + $0xa8] sm:$0xff] %vm708, %v3554
        %3579 = vst.msk [vmem:[#allocation4 + $0xb0] sm:$0xff] %vm708, %v3555
        %3580 = vst.msk [vmem:[#allocation4 + $0xb8] sm:$0xff] %vm708, %v3556
        %v3581 = vld [vmem:[#allocation3 + $0xc0] sm:$0xff]
        %v3582 = vld [vmem:[#allocation3 + $0xc8] sm:$0xff]
        %v3583 = vld [vmem:[#allocation3 + $0xd0] sm:$0xff]
        %v3584 = vld [vmem:[#allocation3 + $0xd8] sm:$0xff]
        %v3585 = vld [vmem:[#allocation3 + $0xe0] sm:$0xff]
        %v3586 = vld [vmem:[#allocation3 + $0xe8] sm:$0xff]
        %v3587 = vld [vmem:[#allocation3 + $0xf0] sm:$0x3f]
        %v3588 = vld [vmem:[%s2] sm:$0xff]
        %v3589 = vld [vmem:[%s2 + $0x8] sm:$0xff]
        %v3590 = vld [vmem:[%s2 + $0x10] sm:$0x1]
        %v3591 = vld [vmem:[#allocation3 + $0xc1] sm:$0xff]
        %v3592 = vld [vmem:[#allocation3 + $0xc9] sm:$0xff]
        %v3593 = vld [vmem:[#allocation3 + $0xd1] sm:$0xff]
        %v3594 = vld [vmem:[#allocation3 + $0xd9] sm:$0xff]
        %v3595 = vld [vmem:[#allocation3 + $0xe1] sm:$0xff]
        %v3596 = vld [vmem:[#allocation3 + $0xe9] sm:$0xff]
        %v3597 = vld [vmem:[#allocation3 + $0xf1] sm:$0x3f]
        %v3598 = vld [vmem:[%s2665] sm:$0xff]
        %v3599 = vld [vmem:[%s2665 + $0x8] sm:$0xff]
        %v3600 = vld [vmem:[%s2665 + $0x10] sm:$0x1]
        %v3602 = vsel %vm708, %v3591, 0
        %v3605 = vsel %vm708, %v3592, 0
        %v3608 = vsel %vm708, %v3593, 0
        %v3611 = vsel %vm708, %v3594, 0
        %v3614 = vsel %vm708, %v3595, 0
        %v3617 = vsel %vm708, %v3596, 0
        %v3620 = vsel %vm708, %v3597, 0
        %v3623 = vsel %vm2741, %v3600, 0
        %3625 = vmatprep.subr.mxu0 0.0
        %3626 = vmatpush1.msra.mxu0 %v3598
        %3627 = vmatprep.subr.mxu0 0.0
        %3628 = vmatpush1.msra.mxu0 %v3599
        %3629 = vmatprep.subr.mxu0 0.0
        %3630 = vmatpush1.msra.mxu0 %v3623
        %3631 = vmatprep.subr.mxu0 0.0
        %3632 = vmatpush1.msra.mxu0 0.0
        %3633 = vmatprep.subr.mxu0 0.0
        %3634 = vmatpush1.msra.mxu0 0.0
        %3635 = vmatprep.subr.mxu0 0.0
        %3636 = vmatpush1.msra.mxu0 0.0
        %3637 = vmatprep.subr.mxu0 0.0
        %3638 = vmatpush1.msra.mxu0 0.0
        %3639 = vmatprep.subr.mxu0 0.0
        %3640 = vmatpush1.msra.mxu0 0.0
        %3641 = vmatprep.subr.mxu0 0.0
        %3642 = vmatpush1.msra.mxu0 0.0
        %3643 = vmatprep.subr.mxu0 0.0
        %3644 = vmatpush1.msra.mxu0 0.0
        %3645 = vmatprep.subr.mxu0 0.0
        %3646 = vmatpush1.msra.mxu0 0.0
        %3647 = vmatprep.subr.mxu0 0.0
        %3648 = vmatpush1.msra.mxu0 0.0
        %3649 = vmatprep.subr.mxu0 0.0
        %3650 = vmatpush1.msra.mxu0 0.0
        %3651 = vmatprep.subr.mxu0 0.0
        %3652 = vmatpush1.msra.mxu0 0.0
        %3653 = vmatprep.subr.mxu0 0.0
        %3654 = vmatpush1.msra.mxu0 0.0
        %3655 = vmatprep.subr.mxu0 0.0
        %3656 = vmatpush1.msra.mxu0 0.0
        %3657 = vmatprep.subr.mxu0 0.0
        %3658 = vmatpush1.msra.mxu0 0.0
        %3659 = vmatprep.subr.mxu0 0.0
        %3660 = vmatpush1.msra.mxu0 0.0
        %3661 = vmatprep.subr.mxu0 0.0
        %3662 = vmatpush1.msra.mxu0 0.0
        %3663 = vmatprep.subr.mxu0 0.0
        %3664 = vmatpush1.msra.mxu0 0.0
        %3665 = vmatprep.subr.mxu0 0.0
        %3666 = vmatpush1.msra.mxu0 0.0
        %3667 = vmatprep.subr.mxu0 0.0
        %3668 = vmatpush1.msra.mxu0 0.0
        %3669 = vmatprep.subr.mxu0 0.0
        %3670 = vmatpush1.msra.mxu0 0.0
        %3671 = vmatprep.subr.mxu0 0.0
        %3672 = vmatpush1.msra.mxu0 0.0
        %3673 = vmatprep.subr.mxu0 0.0
        %3674 = vmatpush1.msra.mxu0 0.0
        %3675 = vmatprep.subr.mxu0 0.0
        %3676 = vmatpush1.msra.mxu0 0.0
        %3677 = vmatprep.subr.mxu0 0.0
        %3678 = vmatpush1.msra.mxu0 0.0
        %3679 = vmatprep.subr.mxu0 0.0
        %3680 = vmatpush1.msra.mxu0 0.0
        %3681 = vmatprep.subr.mxu0 0.0
        %3682 = vmatpush1.msra.mxu0 0.0
        %3683 = vmatprep.subr.mxu0 0.0
        %3684 = vmatpush1.msra.mxu0 0.0
        %3685 = vmatprep.subr.mxu0 0.0
        %3686 = vmatpush1.msra.mxu0 0.0
        %3687 = vmatprep.subr.mxu0 0.0
        %3688 = vmatpush1.msra.mxu0 0.0
        %3689 = vmatprep.mubr.f32.mxu0 0.0
        %3690 = vmatmul.mubr.f32.gmra.mrb[0].mxu0 %v3602
        %v3691 = vpop.f32.mrb[0].mxu0
        %v3692 = vadd.f32 0.0, %v3691
        %v3693 = vpop.f32.mrb[0].mxu0
        %3694 = vmatprep.mubr.f32.mxu0 0.0
        %3695 = vmatmul.mubr.f32.gmra.mrb[0].mxu0 %v3605
        %v3696 = vpop.f32.mrb[0].mxu0
        %v3697 = vadd.f32 0.0, %v3696
        %v3698 = vpop.f32.mrb[0].mxu0
        %3699 = vmatprep.mubr.f32.mxu0 0.0
        %3700 = vmatmul.mubr.f32.gmra.mrb[0].mxu0 %v3608
        %v3701 = vpop.f32.mrb[0].mxu0
        %v3702 = vadd.f32 0.0, %v3701
        %v3703 = vpop.f32.mrb[0].mxu0
        %3704 = vmatprep.mubr.f32.mxu0 0.0
        %3705 = vmatmul.mubr.f32.gmra.mrb[0].mxu0 %v3611
        %v3706 = vpop.f32.mrb[0].mxu0
        %v3707 = vadd.f32 0.0, %v3706
        %v3708 = vpop.f32.mrb[0].mxu0
        %3709 = vmatprep.mubr.f32.mxu0 0.0
        %3710 = vmatmul.mubr.f32.gmra.mrb[0].mxu0 %v3614
        %v3711 = vpop.f32.mrb[0].mxu0
        %v3712 = vadd.f32 0.0, %v3711
        %v3713 = vpop.f32.mrb[0].mxu0
        %3714 = vmatprep.mubr.f32.mxu0 0.0
        %3715 = vmatmul.mubr.f32.gmra.mrb[0].mxu0 %v3617
        %v3716 = vpop.f32.mrb[0].mxu0
        %v3717 = vadd.f32 0.0, %v3716
        %v3718 = vpop.f32.mrb[0].mxu0
        %3719 = vmatprep.mubr.f32.mxu0 0.0
        %3720 = vmatmul.mubr.f32.gmra.mrb[0].mxu0 %v3620
        %v3721 = vpop.f32.mrb[0].mxu0
        %v3722 = vadd.f32 0.0, %v3721
        %v3723 = vpop.f32.mrb[0].mxu0
        %3724 = vdwg.mxu0
        %v3726 = vsel %vm708, %v3581, 0
        %v3729 = vsel %vm708, %v3582, 0
        %v3732 = vsel %vm708, %v3583, 0
        %v3735 = vsel %vm708, %v3584, 0
        %v3738 = vsel %vm708, %v3585, 0
        %v3741 = vsel %vm708, %v3586, 0
        %v3744 = vsel %vm708, %v3587, 0
        %v3747 = vsel %vm2741, %v3590, 0
        %3749 = vmatprep.subr.mxu0 0.0
        %3750 = vmatpush1.msra.mxu0 %v3588
        %3751 = vmatprep.subr.mxu0 0.0
        %3752 = vmatpush1.msra.mxu0 %v3589
        %3753 = vmatprep.subr.mxu0 0.0
        %3754 = vmatpush1.msra.mxu0 %v3747
        %3755 = vmatprep.subr.mxu0 0.0
        %3756 = vmatpush1.msra.mxu0 0.0
        %3757 = vmatprep.subr.mxu0 0.0
        %3758 = vmatpush1.msra.mxu0 0.0
        %3759 = vmatprep.subr.mxu0 0.0
        %3760 = vmatpush1.msra.mxu0 0.0
        %3761 = vmatprep.subr.mxu0 0.0
        %3762 = vmatpush1.msra.mxu0 0.0
        %3763 = vmatprep.subr.mxu0 0.0
        %3764 = vmatpush1.msra.mxu0 0.0
        %3765 = vmatprep.subr.mxu0 0.0
        %3766 = vmatpush1.msra.mxu0 0.0
        %3767 = vmatprep.subr.mxu0 0.0
        %3768 = vmatpush1.msra.mxu0 0.0
        %3769 = vmatprep.subr.mxu0 0.0
        %3770 = vmatpush1.msra.mxu0 0.0
        %3771 = vmatprep.subr.mxu0 0.0
        %3772 = vmatpush1.msra.mxu0 0.0
        %3773 = vmatprep.subr.mxu0 0.0
        %3774 = vmatpush1.msra.mxu0 0.0
        %3775 = vmatprep.subr.mxu0 0.0
        %3776 = vmatpush1.msra.mxu0 0.0
        %3777 = vmatprep.subr.mxu0 0.0
        %3778 = vmatpush1.msra.mxu0 0.0
        %3779 = vmatprep.subr.mxu0 0.0
        %3780 = vmatpush1.msra.mxu0 0.0
        %3781 = vmatprep.subr.mxu0 0.0
        %3782 = vmatpush1.msra.mxu0 0.0
        %3783 = vmatprep.subr.mxu0 0.0
        %3784 = vmatpush1.msra.mxu0 0.0
        %3785 = vmatprep.subr.mxu0 0.0
        %3786 = vmatpush1.msra.mxu0 0.0
        %3787 = vmatprep.subr.mxu0 0.0
        %3788 = vmatpush1.msra.mxu0 0.0
        %3789 = vmatprep.subr.mxu0 0.0
        %3790 = vmatpush1.msra.mxu0 0.0
        %3791 = vmatprep.subr.mxu0 0.0
        %3792 = vmatpush1.msra.mxu0 0.0
        %3793 = vmatprep.subr.mxu0 0.0
        %3794 = vmatpush1.msra.mxu0 0.0
        %3795 = vmatprep.subr.mxu0 0.0
        %3796 = vmatpush1.msra.mxu0 0.0
        %3797 = vmatprep.subr.mxu0 0.0
        %3798 = vmatpush1.msra.mxu0 0.0
        %3799 = vmatprep.subr.mxu0 0.0
        %3800 = vmatpush1.msra.mxu0 0.0
        %3801 = vmatprep.subr.mxu0 0.0
        %3802 = vmatpush1.msra.mxu0 0.0
        %3803 = vmatprep.subr.mxu0 0.0
        %3804 = vmatpush1.msra.mxu0 0.0
        %3805 = vmatprep.subr.mxu0 0.0
        %3806 = vmatpush1.msra.mxu0 0.0
        %3807 = vmatprep.subr.mxu0 0.0
        %3808 = vmatpush1.msra.mxu0 0.0
        %3809 = vmatprep.subr.mxu0 0.0
        %3810 = vmatpush1.msra.mxu0 0.0
        %3811 = vmatprep.subr.mxu0 0.0
        %3812 = vmatpush1.msra.mxu0 0.0
        %3813 = vmatprep.mubr.f32.mxu0 0.0
        %3814 = vmatmul.mubr.f32.gmra.mrb[0].mxu0 %v3726
        %v3815 = vpop.f32.mrb[0].mxu0
        %v3816 = vadd.f32 %v3692, %v3815
        %v3817 = vpop.f32.mrb[0].mxu0
        %3818 = vmatprep.mubr.f32.mxu0 0.0
        %3819 = vmatmul.mubr.f32.gmra.mrb[0].mxu0 %v3729
        %v3820 = vpop.f32.mrb[0].mxu0
        %v3821 = vadd.f32 %v3697, %v3820
        %v3822 = vpop.f32.mrb[0].mxu0
        %3823 = vmatprep.mubr.f32.mxu0 0.0
        %3824 = vmatmul.mubr.f32.gmra.mrb[0].mxu0 %v3732
        %v3825 = vpop.f32.mrb[0].mxu0
        %v3826 = vadd.f32 %v3702, %v3825
        %v3827 = vpop.f32.mrb[0].mxu0
        %3828 = vmatprep.mubr.f32.mxu0 0.0
        %3829 = vmatmul.mubr.f32.gmra.mrb[0].mxu0 %v3735
        %v3830 = vpop.f32.mrb[0].mxu0
        %v3831 = vadd.f32 %v3707, %v3830
        %v3832 = vpop.f32.mrb[0].mxu0
        %3833 = vmatprep.mubr.f32.mxu0 0.0
        %3834 = vmatmul.mubr.f32.gmra.mrb[0].mxu0 %v3738
        %v3835 = vpop.f32.mrb[0].mxu0
        %v3836 = vadd.f32 %v3712, %v3835
        %v3837 = vpop.f32.mrb[0].mxu0
        %3838 = vmatprep.mubr.f32.mxu0 0.0
        %3839 = vmatmul.mubr.f32.gmra.mrb[0].mxu0 %v3741
        %v3840 = vpop.f32.mrb[0].mxu0
        %v3841 = vadd.f32 %v3717, %v3840
        %v3842 = vpop.f32.mrb[0].mxu0
        %3843 = vmatprep.mubr.f32.mxu0 0.0
        %3844 = vmatmul.mubr.f32.gmra.mrb[0].mxu0 %v3744
        %v3845 = vpop.f32.mrb[0].mxu0
        %v3846 = vadd.f32 %v3722, %v3845
        %v3847 = vpop.f32.mrb[0].mxu0
        %3848 = vdwg.mxu0
        %v3849 = vld [vmem:[#allocation3 + $0xc2] sm:$0xff]
        %v3850 = vld [vmem:[#allocation3 + $0xca] sm:$0xff]
        %v3851 = vld [vmem:[#allocation3 + $0xd2] sm:$0xff]
        %v3852 = vld [vmem:[#allocation3 + $0xda] sm:$0xff]
        %v3853 = vld [vmem:[#allocation3 + $0xe2] sm:$0xff]
        %v3854 = vld [vmem:[#allocation3 + $0xea] sm:$0xff]
        %v3855 = vld [vmem:[#allocation3 + $0xf2] sm:$0x3f]
        %v3856 = vld [vmem:[%s3214] sm:$0xff]
        %v3857 = vld [vmem:[%s3214 + $0x8] sm:$0xff]
        %v3858 = vld [vmem:[%s3214 + $0x10] sm:$0x1]
        %v3860 = vsel %vm708, %v3849, 0
        %v3863 = vsel %vm708, %v3850, 0
        %v3866 = vsel %vm708, %v3851, 0
        %v3869 = vsel %vm708, %v3852, 0
        %v3872 = vsel %vm708, %v3853, 0
        %v3875 = vsel %vm708, %v3854, 0
        %v3878 = vsel %vm708, %v3855, 0
        %v3881 = vsel %vm2741, %v3858, 0
        %3883 = vmatprep.subr.mxu0 0.0
        %3884 = vmatpush1.msra.mxu0 %v3856
        %3885 = vmatprep.subr.mxu0 0.0
        %3886 = vmatpush1.msra.mxu0 %v3857
        %3887 = vmatprep.subr.mxu0 0.0
        %3888 = vmatpush1.msra.mxu0 %v3881
        %3889 = vmatprep.subr.mxu0 0.0
        %3890 = vmatpush1.msra.mxu0 0.0
        %3891 = vmatprep.subr.mxu0 0.0
        %3892 = vmatpush1.msra.mxu0 0.0
        %3893 = vmatprep.subr.mxu0 0.0
        %3894 = vmatpush1.msra.mxu0 0.0
        %3895 = vmatprep.subr.mxu0 0.0
        %3896 = vmatpush1.msra.mxu0 0.0
        %3897 = vmatprep.subr.mxu0 0.0
        %3898 = vmatpush1.msra.mxu0 0.0
        %3899 = vmatprep.subr.mxu0 0.0
        %3900 = vmatpush1.msra.mxu0 0.0
        %3901 = vmatprep.subr.mxu0 0.0
        %3902 = vmatpush1.msra.mxu0 0.0
        %3903 = vmatprep.subr.mxu0 0.0
        %3904 = vmatpush1.msra.mxu0 0.0
        %3905 = vmatprep.subr.mxu0 0.0
        %3906 = vmatpush1.msra.mxu0 0.0
        %3907 = vmatprep.subr.mxu0 0.0
        %3908 = vmatpush1.msra.mxu0 0.0
        %3909 = vmatprep.subr.mxu0 0.0
        %3910 = vmatpush1.msra.mxu0 0.0
        %3911 = vmatprep.subr.mxu0 0.0
        %3912 = vmatpush1.msra.mxu0 0.0
        %3913 = vmatprep.subr.mxu0 0.0
        %3914 = vmatpush1.msra.mxu0 0.0
        %3915 = vmatprep.subr.mxu0 0.0
        %3916 = vmatpush1.msra.mxu0 0.0
        %3917 = vmatprep.subr.mxu0 0.0
        %3918 = vmatpush1.msra.mxu0 0.0
        %3919 = vmatprep.subr.mxu0 0.0
        %3920 = vmatpush1.msra.mxu0 0.0
        %3921 = vmatprep.subr.mxu0 0.0
        %3922 = vmatpush1.msra.mxu0 0.0
        %3923 = vmatprep.subr.mxu0 0.0
        %3924 = vmatpush1.msra.mxu0 0.0
        %3925 = vmatprep.subr.mxu0 0.0
        %3926 = vmatpush1.msra.mxu0 0.0
        %3927 = vmatprep.subr.mxu0 0.0
        %3928 = vmatpush1.msra.mxu0 0.0
        %3929 = vmatprep.subr.mxu0 0.0
        %3930 = vmatpush1.msra.mxu0 0.0
        %3931 = vmatprep.subr.mxu0 0.0
        %3932 = vmatpush1.msra.mxu0 0.0
        %3933 = vmatprep.subr.mxu0 0.0
        %3934 = vmatpush1.msra.mxu0 0.0
        %3935 = vmatprep.subr.mxu0 0.0
        %3936 = vmatpush1.msra.mxu0 0.0
        %3937 = vmatprep.subr.mxu0 0.0
        %3938 = vmatpush1.msra.mxu0 0.0
        %3939 = vmatprep.subr.mxu0 0.0
        %3940 = vmatpush1.msra.mxu0 0.0
        %3941 = vmatprep.subr.mxu0 0.0
        %3942 = vmatpush1.msra.mxu0 0.0
        %3943 = vmatprep.subr.mxu0 0.0
        %3944 = vmatpush1.msra.mxu0 0.0
        %3945 = vmatprep.subr.mxu0 0.0
        %3946 = vmatpush1.msra.mxu0 0.0
        %3947 = vmatprep.mubr.f32.mxu0 0.0
        %3948 = vmatmul.mubr.f32.gmra.mrb[0].mxu0 %v3860
        %v3949 = vpop.f32.mrb[0].mxu0
        %v3950 = vadd.f32 0.0, %v3949
        %v3951 = vpop.f32.mrb[0].mxu0
        %3952 = vmatprep.mubr.f32.mxu0 0.0
        %3953 = vmatmul.mubr.f32.gmra.mrb[0].mxu0 %v3863
        %v3954 = vpop.f32.mrb[0].mxu0
        %v3955 = vadd.f32 0.0, %v3954
        %v3956 = vpop.f32.mrb[0].mxu0
        %3957 = vmatprep.mubr.f32.mxu0 0.0
        %3958 = vmatmul.mubr.f32.gmra.mrb[0].mxu0 %v3866
        %v3959 = vpop.f32.mrb[0].mxu0
        %v3960 = vadd.f32 0.0, %v3959
        %v3961 = vpop.f32.mrb[0].mxu0
        %3962 = vmatprep.mubr.f32.mxu0 0.0
        %3963 = vmatmul.mubr.f32.gmra.mrb[0].mxu0 %v3869
        %v3964 = vpop.f32.mrb[0].mxu0
        %v3965 = vadd.f32 0.0, %v3964
        %v3966 = vpop.f32.mrb[0].mxu0
        %3967 = vmatprep.mubr.f32.mxu0 0.0
        %3968 = vmatmul.mubr.f32.gmra.mrb[0].mxu0 %v3872
        %v3969 = vpop.f32.mrb[0].mxu0
        %v3970 = vadd.f32 0.0, %v3969
        %v3971 = vpop.f32.mrb[0].mxu0
        %3972 = vmatprep.mubr.f32.mxu0 0.0
        %3973 = vmatmul.mubr.f32.gmra.mrb[0].mxu0 %v3875
        %v3974 = vpop.f32.mrb[0].mxu0
        %v3975 = vadd.f32 0.0, %v3974
        %v3976 = vpop.f32.mrb[0].mxu0
        %3977 = vmatprep.mubr.f32.mxu0 0.0
        %3978 = vmatmul.mubr.f32.gmra.mrb[0].mxu0 %v3878
        %v3979 = vpop.f32.mrb[0].mxu0
        %v3980 = vadd.f32 0.0, %v3979
        %v3981 = vpop.f32.mrb[0].mxu0
        %3982 = vdwg.mxu0
        %v3983 = vadd.f32 %v3816, %v3950
        %v3984 = vadd.f32 %v3821, %v3955
        %v3985 = vadd.f32 %v3826, %v3960
        %v3986 = vadd.f32 %v3831, %v3965
        %v3987 = vadd.f32 %v3836, %v3970
        %v3988 = vadd.f32 %v3841, %v3975
        %v3989 = vadd.f32 %v3846, %v3980
        %v3990 = vld [vmem:[%s8] sm:$0x1]
        %v3992 = vlaneseq
        %v3993 = vshrl.u32 %v3992, 7
        %v3994 = vsub.s32 0, %v3993
        %v3995 = vrot.slane %v3990, %v3994
        %v3997 = vadd.f32 %v3983, %v3995
        %v3998 = vadd.f32 %v3984, %v3995
        %v3999 = vadd.f32 %v3985, %v3995
        %v4000 = vadd.f32 %v3986, %v3995
        %v4001 = vadd.f32 %v3987, %v3995
        %v4002 = vadd.f32 %v3988, %v3995
        %v4003 = vadd.f32 %v3989, %v3995
        %v4004 = vmax.f32 %v3997, 0.0
        %v4005 = vmax.f32 %v3998, 0.0
        %v4006 = vmax.f32 %v3999, 0.0
        %v4007 = vmax.f32 %v4000, 0.0
        %v4008 = vmax.f32 %v4001, 0.0
        %v4009 = vmax.f32 %v4002, 0.0
        %v4010 = vmax.f32 %v4003, 0.0
        %4011 = vst.msk [vmem:[#allocation4 + $0xc0] sm:$0xff] %vm708, %v4004
        %4012 = vst.msk [vmem:[#allocation4 + $0xc8] sm:$0xff] %vm708, %v4005
        %4013 = vst.msk [vmem:[#allocation4 + $0xd0] sm:$0xff] %vm708, %v4006
        %4014 = vst.msk [vmem:[#allocation4 + $0xd8] sm:$0xff] %vm708, %v4007
        %4015 = vst.msk [vmem:[#allocation4 + $0xe0] sm:$0xff] %vm708, %v4008
        %4016 = vst.msk [vmem:[#allocation4 + $0xe8] sm:$0xff] %vm708, %v4009
        %vm4017 = vcmask 136192
        %4018 = vst.msk [vmem:[#allocation4 + $0xf0] sm:$0x3f] %vm4017, %v4010
        %v4019 = vld [vmem:[#allocation4] ss:$4 sm:$0xff]
        %s4020 = scalar_lea.vmem [#allocation4], 32
        %v4021 = vld [vmem:[%s4020] ss:$4 sm:$0xff]
        %s4022 = scalar_lea.vmem [#allocation4], 64
        %v4023 = vld [vmem:[%s4022] ss:$4 sm:$0xff]
        %s4024 = scalar_lea.vmem [#allocation4], 96
        %v4025 = vld [vmem:[%s4024] ss:$4 sm:$0x3f]
        %s4026 = scalar_lea.vmem [#allocation4], 1
        %v4027 = vld [vmem:[%s4026] ss:$4 sm:$0xff]
        %s4028 = scalar_lea.vmem [#allocation4], 33
        %v4029 = vld [vmem:[%s4028] ss:$4 sm:$0xff]
        %s4030 = scalar_lea.vmem [#allocation4], 65
        %v4031 = vld [vmem:[%s4030] ss:$4 sm:$0xff]
        %s4032 = scalar_lea.vmem [#allocation4], 97
        %v4033 = vld [vmem:[%s4032] ss:$4 sm:$0x3f]
        %v4034 = vmax.f32 %v4019, %v4027
        %v4035 = vmax.f32 %v4021, %v4029
        %v4036 = vmax.f32 %v4023, %v4031
        %v4037 = vmax.f32 %v4025, %v4033
        %s4038 = scalar_lea.vmem [#allocation4], 2
        %v4039 = vld [vmem:[%s4038] ss:$4 sm:$0xff]
        %s4040 = scalar_lea.vmem [#allocation4], 34
        %v4041 = vld [vmem:[%s4040] ss:$4 sm:$0xff]
        %s4042 = scalar_lea.vmem [#allocation4], 66
        %v4043 = vld [vmem:[%s4042] ss:$4 sm:$0xff]
        %s4044 = scalar_lea.vmem [#allocation4], 98
        %v4045 = vld [vmem:[%s4044] ss:$4 sm:$0x3f]
        %v4046 = vmax.f32 %v4034, %v4039
        %v4047 = vmax.f32 %v4035, %v4041
        %v4048 = vmax.f32 %v4036, %v4043
        %v4049 = vmax.f32 %v4037, %v4045
        %s4050 = scalar_lea.vmem [#allocation4], 3
        %v4051 = vld [vmem:[%s4050] ss:$4 sm:$0xff]
        %s4052 = scalar_lea.vmem [#allocation4], 35
        %v4053 = vld [vmem:[%s4052] ss:$4 sm:$0xff]
        %s4054 = scalar_lea.vmem [#allocation4], 67
        %v4055 = vld [vmem:[%s4054] ss:$4 sm:$0xff]
        %s4056 = scalar_lea.vmem [#allocation4], 99
        %v4057 = vld [vmem:[%s4056] ss:$4 sm:$0x3f]
        %v4058 = vmax.f32 %v4046, %v4051
        %v4059 = vmax.f32 %v4047, %v4053
        %v4060 = vmax.f32 %v4048, %v4055
        %v4061 = vmax.f32 %v4049, %v4057
        %4062 = vst.msk [vmem:[#allocation5] sm:$0xff] %vm708, %v4058
        %4063 = vst.msk [vmem:[#allocation5 + $0x8] sm:$0xff] %vm708, %v4059
        %4064 = vst.msk [vmem:[#allocation5 + $0x10] sm:$0xff] %vm708, %v4060
        %4065 = vst.msk [vmem:[#allocation5 + $0x18] sm:$0x3f] %vm4017, %v4061
        %s4066 = scalar_lea.vmem [#allocation4], 124
        %v4067 = vld [vmem:[%s4066] ss:$4 sm:$0xff]
        %s4068 = scalar_lea.vmem [#allocation4], 156
        %v4069 = vld [vmem:[%s4068] ss:$4 sm:$0xff]
        %s4070 = scalar_lea.vmem [#allocation4], 188
        %v4071 = vld [vmem:[%s4070] ss:$4 sm:$0xff]
        %s4072 = scalar_lea.vmem [#allocation4], 220
        %v4073 = vld [vmem:[%s4072] ss:$4 sm:$0x3f]
        %s4074 = scalar_lea.vmem [#allocation4], 125
        %v4075 = vld [vmem:[%s4074] ss:$4 sm:$0xff]
        %s4076 = scalar_lea.vmem [#allocation4], 157
        %v4077 = vld [vmem:[%s4076] ss:$4 sm:$0xff]
        %s4078 = scalar_lea.vmem [#allocation4], 189
        %v4079 = vld [vmem:[%s4078] ss:$4 sm:$0xff]
        %s4080 = scalar_lea.vmem [#allocation4], 221
        %v4081 = vld [vmem:[%s4080] ss:$4 sm:$0x3f]
        %v4082 = vmax.f32 %v4067, %v4075
        %v4083 = vmax.f32 %v4069, %v4077
        %v4084 = vmax.f32 %v4071, %v4079
        %v4085 = vmax.f32 %v4073, %v4081
        %s4086 = scalar_lea.vmem [#allocation4], 126
        %v4087 = vld [vmem:[%s4086] ss:$4 sm:$0xff]
        %s4088 = scalar_lea.vmem [#allocation4], 158
        %v4089 = vld [vmem:[%s4088] ss:$4 sm:$0xff]
        %s4090 = scalar_lea.vmem [#allocation4], 190
        %v4091 = vld [vmem:[%s4090] ss:$4 sm:$0xff]
        %s4092 = scalar_lea.vmem [#allocation4], 222
        %v4093 = vld [vmem:[%s4092] ss:$4 sm:$0x3f]
        %v4094 = vmax.f32 %v4082, %v4087
        %v4095 = vmax.f32 %v4083, %v4089
        %v4096 = vmax.f32 %v4084, %v4091
        %v4097 = vmax.f32 %v4085, %v4093
        %s4098 = scalar_lea.vmem [#allocation4], 127
        %v4099 = vld [vmem:[%s4098] ss:$4 sm:$0xff]
        %s4100 = scalar_lea.vmem [#allocation4], 159
        %v4101 = vld [vmem:[%s4100] ss:$4 sm:$0xff]
        %s4102 = scalar_lea.vmem [#allocation4], 191
        %v4103 = vld [vmem:[%s4102] ss:$4 sm:$0xff]
        %s4104 = scalar_lea.vmem [#allocation4], 223
        %v4105 = vld [vmem:[%s4104] ss:$4 sm:$0x3f]
        %v4106 = vmax.f32 %v4094, %v4099
        %v4107 = vmax.f32 %v4095, %v4101
        %v4108 = vmax.f32 %v4096, %v4103
        %v4109 = vmax.f32 %v4097, %v4105
        %4110 = vst.msk [vmem:[#allocation5 + $0x1e] sm:$0xff] %vm708, %v4106
        %4111 = vst.msk [vmem:[#allocation5 + $0x26] sm:$0xff] %vm708, %v4107
        %4112 = vst.msk [vmem:[#allocation5 + $0x2e] sm:$0xff] %vm708, %v4108
        %4113 = vst.msk [vmem:[#allocation5 + $0x36] sm:$0x3f] %vm4017, %v4109
        %v4114 = vld [vmem:[#allocation5] sm:$0xff]
        %v4115 = vld [vmem:[#allocation5 + $0x8] sm:$0xff]
        %v4116 = vld [vmem:[#allocation5 + $0x10] sm:$0xff]
        %v4117 = vld [vmem:[#allocation5 + $0x18] sm:$0xff]
        %v4118 = vld [vmem:[#allocation5 + $0x20] sm:$0xff]
        %v4119 = vld [vmem:[#allocation5 + $0x28] sm:$0xff]
        %v4120 = vld [vmem:[#allocation5 + $0x30] sm:$0xff]
        %v4121 = vld [vmem:[#allocation5 + $0x38] sm:$0x3]
        %v4122 = vld [vmem:[%s3] sm:$0xff]
        %v4123 = vld [vmem:[%s3 + $0x8] sm:$0xff]
        %v4124 = vld [vmem:[%s3 + $0x10] sm:$0x1]
        %v4125 = vld [vmem:[#allocation5 + $0x1] sm:$0xff]
        %v4126 = vld [vmem:[#allocation5 + $0x9] sm:$0xff]
        %v4127 = vld [vmem:[#allocation5 + $0x11] sm:$0xff]
        %v4128 = vld [vmem:[#allocation5 + $0x19] sm:$0xff]
        %v4129 = vld [vmem:[#allocation5 + $0x21] sm:$0xff]
        %v4130 = vld [vmem:[#allocation5 + $0x29] sm:$0xff]
        %v4131 = vld [vmem:[#allocation5 + $0x31] sm:$0xff]
        %v4132 = vld [vmem:[#allocation5 + $0x39] sm:$0x3]
        %s4133 = scalar_lea.vmem %s3, 24
        %v4134 = vld [vmem:[%s4133] sm:$0xff]
        %v4135 = vld [vmem:[%s4133 + $0x8] sm:$0xff]
        %v4136 = vld [vmem:[%s4133 + $0x10] sm:$0x1]
        %v4138 = vsel %vm708, %v4125, 0
        %v4141 = vsel %vm708, %v4126, 0
        %v4144 = vsel %vm708, %v4127, 0
        %v4147 = vsel %vm708, %v4128, 0
        %v4150 = vsel %vm708, %v4129, 0
        %v4153 = vsel %vm708, %v4130, 0
        %v4156 = vsel %vm708, %v4131, 0
        %v4159 = vsel %vm708, %v4132, 0
        %v4162 = vsel %vm2741, %v4136, 0
        %4164 = vmatprep.subr.mxu0 0.0
        %4165 = vmatpush1.msra.mxu0 %v4134
        %4166 = vmatprep.subr.mxu0 0.0
        %4167 = vmatpush1.msra.mxu0 %v4135
        %4168 = vmatprep.subr.mxu0 0.0
        %4169 = vmatpush1.msra.mxu0 %v4162
        %4170 = vmatprep.subr.mxu0 0.0
        %4171 = vmatpush1.msra.mxu0 0.0
        %4172 = vmatprep.subr.mxu0 0.0
        %4173 = vmatpush1.msra.mxu0 0.0
        %4174 = vmatprep.subr.mxu0 0.0
        %4175 = vmatpush1.msra.mxu0 0.0
        %4176 = vmatprep.subr.mxu0 0.0
        %4177 = vmatpush1.msra.mxu0 0.0
        %4178 = vmatprep.subr.mxu0 0.0
        %4179 = vmatpush1.msra.mxu0 0.0
        %4180 = vmatprep.subr.mxu0 0.0
        %4181 = vmatpush1.msra.mxu0 0.0
        %4182 = vmatprep.subr.mxu0 0.0
        %4183 = vmatpush1.msra.mxu0 0.0
        %4184 = vmatprep.subr.mxu0 0.0
        %4185 = vmatpush1.msra.mxu0 0.0
        %4186 = vmatprep.subr.mxu0 0.0
        %4187 = vmatpush1.msra.mxu0 0.0
        %4188 = vmatprep.subr.mxu0 0.0
        %4189 = vmatpush1.msra.mxu0 0.0
        %4190 = vmatprep.subr.mxu0 0.0
        %4191 = vmatpush1.msra.mxu0 0.0
        %4192 = vmatprep.subr.mxu0 0.0
        %4193 = vmatpush1.msra.mxu0 0.0
        %4194 = vmatprep.subr.mxu0 0.0
        %4195 = vmatpush1.msra.mxu0 0.0
        %4196 = vmatprep.subr.mxu0 0.0
        %4197 = vmatpush1.msra.mxu0 0.0
        %4198 = vmatprep.subr.mxu0 0.0
        %4199 = vmatpush1.msra.mxu0 0.0
        %4200 = vmatprep.subr.mxu0 0.0
        %4201 = vmatpush1.msra.mxu0 0.0
        %4202 = vmatprep.subr.mxu0 0.0
        %4203 = vmatpush1.msra.mxu0 0.0
        %4204 = vmatprep.subr.mxu0 0.0
        %4205 = vmatpush1.msra.mxu0 0.0
        %4206 = vmatprep.subr.mxu0 0.0
        %4207 = vmatpush1.msra.mxu0 0.0
        %4208 = vmatprep.subr.mxu0 0.0
        %4209 = vmatpush1.msra.mxu0 0.0
        %4210 = vmatprep.subr.mxu0 0.0
        %4211 = vmatpush1.msra.mxu0 0.0
        %4212 = vmatprep.subr.mxu0 0.0
        %4213 = vmatpush1.msra.mxu0 0.0
        %4214 = vmatprep.subr.mxu0 0.0
        %4215 = vmatpush1.msra.mxu0 0.0
        %4216 = vmatprep.subr.mxu0 0.0
        %4217 = vmatpush1.msra.mxu0 0.0
        %4218 = vmatprep.subr.mxu0 0.0
        %4219 = vmatpush1.msra.mxu0 0.0
        %4220 = vmatprep.subr.mxu0 0.0
        %4221 = vmatpush1.msra.mxu0 0.0
        %4222 = vmatprep.subr.mxu0 0.0
        %4223 = vmatpush1.msra.mxu0 0.0
        %4224 = vmatprep.subr.mxu0 0.0
        %4225 = vmatpush1.msra.mxu0 0.0
        %4226 = vmatprep.subr.mxu0 0.0
        %4227 = vmatpush1.msra.mxu0 0.0
        %4228 = vmatprep.mubr.f32.mxu0 0.0
        %4229 = vmatmul.mubr.f32.gmra.mrb[0].mxu0 %v4138
        %v4230 = vpop.f32.mrb[0].mxu0
        %v4231 = vadd.f32 0.0, %v4230
        %v4232 = vpop.f32.mrb[0].mxu0
        %4233 = vmatprep.mubr.f32.mxu0 0.0
        %4234 = vmatmul.mubr.f32.gmra.mrb[0].mxu0 %v4141
        %v4235 = vpop.f32.mrb[0].mxu0
        %v4236 = vadd.f32 0.0, %v4235
        %v4237 = vpop.f32.mrb[0].mxu0
        %4238 = vmatprep.mubr.f32.mxu0 0.0
        %4239 = vmatmul.mubr.f32.gmra.mrb[0].mxu0 %v4144
        %v4240 = vpop.f32.mrb[0].mxu0
        %v4241 = vadd.f32 0.0, %v4240
        %v4242 = vpop.f32.mrb[0].mxu0
        %4243 = vmatprep.mubr.f32.mxu0 0.0
        %4244 = vmatmul.mubr.f32.gmra.mrb[0].mxu0 %v4147
        %v4245 = vpop.f32.mrb[0].mxu0
        %v4246 = vadd.f32 0.0, %v4245
        %v4247 = vpop.f32.mrb[0].mxu0
        %4248 = vmatprep.mubr.f32.mxu0 0.0
        %4249 = vmatmul.mubr.f32.gmra.mrb[0].mxu0 %v4150
        %v4250 = vpop.f32.mrb[0].mxu0
        %v4251 = vadd.f32 0.0, %v4250
        %v4252 = vpop.f32.mrb[0].mxu0
        %4253 = vmatprep.mubr.f32.mxu0 0.0
        %4254 = vmatmul.mubr.f32.gmra.mrb[0].mxu0 %v4153
        %v4255 = vpop.f32.mrb[0].mxu0
        %v4256 = vadd.f32 0.0, %v4255
        %v4257 = vpop.f32.mrb[0].mxu0
        %4258 = vmatprep.mubr.f32.mxu0 0.0
        %4259 = vmatmul.mubr.f32.gmra.mrb[0].mxu0 %v4156
        %v4260 = vpop.f32.mrb[0].mxu0
        %v4261 = vadd.f32 0.0, %v4260
        %v4262 = vpop.f32.mrb[0].mxu0
        %4263 = vmatprep.mubr.f32.mxu0 0.0
        %4264 = vmatmul.mubr.f32.gmra.mrb[0].mxu0 %v4159
        %v4265 = vpop.f32.mrb[0].mxu0
        %v4266 = vadd.f32 0.0, %v4265
        %v4267 = vpop.f32.mrb[0].mxu0
        %4268 = vdwg.mxu0
        %v4270 = vsel %vm708, %v4114, 0
        %v4273 = vsel %vm708, %v4115, 0
        %v4276 = vsel %vm708, %v4116, 0
        %v4279 = vsel %vm708, %v4117, 0
        %v4282 = vsel %vm708, %v4118, 0
        %v4285 = vsel %vm708, %v4119, 0
        %v4288 = vsel %vm708, %v4120, 0
        %v4291 = vsel %vm708, %v4121, 0
        %v4294 = vsel %vm2741, %v4124, 0
        %4296 = vmatprep.subr.mxu0 0.0
        %4297 = vmatpush1.msra.mxu0 %v4122
        %4298 = vmatprep.subr.mxu0 0.0
        %4299 = vmatpush1.msra.mxu0 %v4123
        %4300 = vmatprep.subr.mxu0 0.0
        %4301 = vmatpush1.msra.mxu0 %v4294
        %4302 = vmatprep.subr.mxu0 0.0
        %4303 = vmatpush1.msra.mxu0 0.0
        %4304 = vmatprep.subr.mxu0 0.0
        %4305 = vmatpush1.msra.mxu0 0.0
        %4306 = vmatprep.subr.mxu0 0.0
        %4307 = vmatpush1.msra.mxu0 0.0
        %4308 = vmatprep.subr.mxu0 0.0
        %4309 = vmatpush1.msra.mxu0 0.0
        %4310 = vmatprep.subr.mxu0 0.0
        %4311 = vmatpush1.msra.mxu0 0.0
        %4312 = vmatprep.subr.mxu0 0.0
        %4313 = vmatpush1.msra.mxu0 0.0
        %4314 = vmatprep.subr.mxu0 0.0
        %4315 = vmatpush1.msra.mxu0 0.0
        %4316 = vmatprep.subr.mxu0 0.0
        %4317 = vmatpush1.msra.mxu0 0.0
        %4318 = vmatprep.subr.mxu0 0.0
        %4319 = vmatpush1.msra.mxu0 0.0
        %4320 = vmatprep.subr.mxu0 0.0
        %4321 = vmatpush1.msra.mxu0 0.0
        %4322 = vmatprep.subr.mxu0 0.0
        %4323 = vmatpush1.msra.mxu0 0.0
        %4324 = vmatprep.subr.mxu0 0.0
        %4325 = vmatpush1.msra.mxu0 0.0
        %4326 = vmatprep.subr.mxu0 0.0
        %4327 = vmatpush1.msra.mxu0 0.0
        %4328 = vmatprep.subr.mxu0 0.0
        %4329 = vmatpush1.msra.mxu0 0.0
        %4330 = vmatprep.subr.mxu0 0.0
        %4331 = vmatpush1.msra.mxu0 0.0
        %4332 = vmatprep.subr.mxu0 0.0
        %4333 = vmatpush1.msra.mxu0 0.0
        %4334 = vmatprep.subr.mxu0 0.0
        %4335 = vmatpush1.msra.mxu0 0.0
        %4336 = vmatprep.subr.mxu0 0.0
        %4337 = vmatpush1.msra.mxu0 0.0
        %4338 = vmatprep.subr.mxu0 0.0
        %4339 = vmatpush1.msra.mxu0 0.0
        %4340 = vmatprep.subr.mxu0 0.0
        %4341 = vmatpush1.msra.mxu0 0.0
        %4342 = vmatprep.subr.mxu0 0.0
        %4343 = vmatpush1.msra.mxu0 0.0
        %4344 = vmatprep.subr.mxu0 0.0
        %4345 = vmatpush1.msra.mxu0 0.0
        %4346 = vmatprep.subr.mxu0 0.0
        %4347 = vmatpush1.msra.mxu0 0.0
        %4348 = vmatprep.subr.mxu0 0.0
        %4349 = vmatpush1.msra.mxu0 0.0
        %4350 = vmatprep.subr.mxu0 0.0
        %4351 = vmatpush1.msra.mxu0 0.0
        %4352 = vmatprep.subr.mxu0 0.0
        %4353 = vmatpush1.msra.mxu0 0.0
        %4354 = vmatprep.subr.mxu0 0.0
        %4355 = vmatpush1.msra.mxu0 0.0
        %4356 = vmatprep.subr.mxu0 0.0
        %4357 = vmatpush1.msra.mxu0 0.0
        %4358 = vmatprep.subr.mxu0 0.0
        %4359 = vmatpush1.msra.mxu0 0.0
        %4360 = vmatprep.mubr.f32.mxu0 0.0
        %4361 = vmatmul.mubr.f32.gmra.mrb[0].mxu0 %v4270
        %v4362 = vpop.f32.mrb[0].mxu0
        %v4363 = vadd.f32 %v4231, %v4362
        %v4364 = vpop.f32.mrb[0].mxu0
        %4365 = vmatprep.mubr.f32.mxu0 0.0
        %4366 = vmatmul.mubr.f32.gmra.mrb[0].mxu0 %v4273
        %v4367 = vpop.f32.mrb[0].mxu0
        %v4368 = vadd.f32 %v4236, %v4367
        %v4369 = vpop.f32.mrb[0].mxu0
        %4370 = vmatprep.mubr.f32.mxu0 0.0
        %4371 = vmatmul.mubr.f32.gmra.mrb[0].mxu0 %v4276
        %v4372 = vpop.f32.mrb[0].mxu0
        %v4373 = vadd.f32 %v4241, %v4372
        %v4374 = vpop.f32.mrb[0].mxu0
        %4375 = vmatprep.mubr.f32.mxu0 0.0
        %4376 = vmatmul.mubr.f32.gmra.mrb[0].mxu0 %v4279
        %v4377 = vpop.f32.mrb[0].mxu0
        %v4378 = vadd.f32 %v4246, %v4377
        %v4379 = vpop.f32.mrb[0].mxu0
        %4380 = vmatprep.mubr.f32.mxu0 0.0
        %4381 = vmatmul.mubr.f32.gmra.mrb[0].mxu0 %v4282
        %v4382 = vpop.f32.mrb[0].mxu0
        %v4383 = vadd.f32 %v4251, %v4382
        %v4384 = vpop.f32.mrb[0].mxu0
        %4385 = vmatprep.mubr.f32.mxu0 0.0
        %4386 = vmatmul.mubr.f32.gmra.mrb[0].mxu0 %v4285
        %v4387 = vpop.f32.mrb[0].mxu0
        %v4388 = vadd.f32 %v4256, %v4387
        %v4389 = vpop.f32.mrb[0].mxu0
        %4390 = vmatprep.mubr.f32.mxu0 0.0
        %4391 = vmatmul.mubr.f32.gmra.mrb[0].mxu0 %v4288
        %v4392 = vpop.f32.mrb[0].mxu0
        %v4393 = vadd.f32 %v4261, %v4392
        %v4394 = vpop.f32.mrb[0].mxu0
        %4395 = vmatprep.mubr.f32.mxu0 0.0
        %4396 = vmatmul.mubr.f32.gmra.mrb[0].mxu0 %v4291
        %v4397 = vpop.f32.mrb[0].mxu0
        %v4398 = vadd.f32 %v4266, %v4397
        %v4399 = vpop.f32.mrb[0].mxu0
        %4400 = vdwg.mxu0
        %v4401 = vld [vmem:[#allocation5 + $0x2] sm:$0xff]
        %v4402 = vld [vmem:[#allocation5 + $0xa] sm:$0xff]
        %v4403 = vld [vmem:[#allocation5 + $0x12] sm:$0xff]
        %v4404 = vld [vmem:[#allocation5 + $0x1a] sm:$0xff]
        %v4405 = vld [vmem:[#allocation5 + $0x22] sm:$0xff]
        %v4406 = vld [vmem:[#allocation5 + $0x2a] sm:$0xff]
        %v4407 = vld [vmem:[#allocation5 + $0x32] sm:$0xff]
        %v4408 = vld [vmem:[#allocation5 + $0x3a] sm:$0x3]
        %s4409 = scalar_lea.vmem %s3, 48
        %v4410 = vld [vmem:[%s4409] sm:$0xff]
        %v4411 = vld [vmem:[%s4409 + $0x8] sm:$0xff]
        %v4412 = vld [vmem:[%s4409 + $0x10] sm:$0x1]
        %v4414 = vsel %vm708, %v4401, 0
        %v4417 = vsel %vm708, %v4402, 0
        %v4420 = vsel %vm708, %v4403, 0
        %v4423 = vsel %vm708, %v4404, 0
        %v4426 = vsel %vm708, %v4405, 0
        %v4429 = vsel %vm708, %v4406, 0
        %v4432 = vsel %vm708, %v4407, 0
        %v4435 = vsel %vm708, %v4408, 0
        %v4438 = vsel %vm2741, %v4412, 0
        %4440 = vmatprep.subr.mxu0 0.0
        %4441 = vmatpush1.msra.mxu0 %v4410
        %4442 = vmatprep.subr.mxu0 0.0
        %4443 = vmatpush1.msra.mxu0 %v4411
        %4444 = vmatprep.subr.mxu0 0.0
        %4445 = vmatpush1.msra.mxu0 %v4438
        %4446 = vmatprep.subr.mxu0 0.0
        %4447 = vmatpush1.msra.mxu0 0.0
        %4448 = vmatprep.subr.mxu0 0.0
        %4449 = vmatpush1.msra.mxu0 0.0
        %4450 = vmatprep.subr.mxu0 0.0
        %4451 = vmatpush1.msra.mxu0 0.0
        %4452 = vmatprep.subr.mxu0 0.0
        %4453 = vmatpush1.msra.mxu0 0.0
        %4454 = vmatprep.subr.mxu0 0.0
        %4455 = vmatpush1.msra.mxu0 0.0
        %4456 = vmatprep.subr.mxu0 0.0
        %4457 = vmatpush1.msra.mxu0 0.0
        %4458 = vmatprep.subr.mxu0 0.0
        %4459 = vmatpush1.msra.mxu0 0.0
        %4460 = vmatprep.subr.mxu0 0.0
        %4461 = vmatpush1.msra.mxu0 0.0
        %4462 = vmatprep.subr.mxu0 0.0
        %4463 = vmatpush1.msra.mxu0 0.0
        %4464 = vmatprep.subr.mxu0 0.0
        %4465 = vmatpush1.msra.mxu0 0.0
        %4466 = vmatprep.subr.mxu0 0.0
        %4467 = vmatpush1.msra.mxu0 0.0
        %4468 = vmatprep.subr.mxu0 0.0
        %4469 = vmatpush1.msra.mxu0 0.0
        %4470 = vmatprep.subr.mxu0 0.0
        %4471 = vmatpush1.msra.mxu0 0.0
        %4472 = vmatprep.subr.mxu0 0.0
        %4473 = vmatpush1.msra.mxu0 0.0
        %4474 = vmatprep.subr.mxu0 0.0
        %4475 = vmatpush1.msra.mxu0 0.0
        %4476 = vmatprep.subr.mxu0 0.0
        %4477 = vmatpush1.msra.mxu0 0.0
        %4478 = vmatprep.subr.mxu0 0.0
        %4479 = vmatpush1.msra.mxu0 0.0
        %4480 = vmatprep.subr.mxu0 0.0
        %4481 = vmatpush1.msra.mxu0 0.0
        %4482 = vmatprep.subr.mxu0 0.0
        %4483 = vmatpush1.msra.mxu0 0.0
        %4484 = vmatprep.subr.mxu0 0.0
        %4485 = vmatpush1.msra.mxu0 0.0
        %4486 = vmatprep.subr.mxu0 0.0
        %4487 = vmatpush1.msra.mxu0 0.0
        %4488 = vmatprep.subr.mxu0 0.0
        %4489 = vmatpush1.msra.mxu0 0.0
        %4490 = vmatprep.subr.mxu0 0.0
        %4491 = vmatpush1.msra.mxu0 0.0
        %4492 = vmatprep.subr.mxu0 0.0
        %4493 = vmatpush1.msra.mxu0 0.0
        %4494 = vmatprep.subr.mxu0 0.0
        %4495 = vmatpush1.msra.mxu0 0.0
        %4496 = vmatprep.subr.mxu0 0.0
        %4497 = vmatpush1.msra.mxu0 0.0
        %4498 = vmatprep.subr.mxu0 0.0
        %4499 = vmatpush1.msra.mxu0 0.0
        %4500 = vmatprep.subr.mxu0 0.0
        %4501 = vmatpush1.msra.mxu0 0.0
        %4502 = vmatprep.subr.mxu0 0.0
        %4503 = vmatpush1.msra.mxu0 0.0
        %4504 = vmatprep.mubr.f32.mxu0 0.0
        %4505 = vmatmul.mubr.f32.gmra.mrb[0].mxu0 %v4414
        %v4506 = vpop.f32.mrb[0].mxu0
        %v4507 = vadd.f32 0.0, %v4506
        %v4508 = vpop.f32.mrb[0].mxu0
        %4509 = vmatprep.mubr.f32.mxu0 0.0
        %4510 = vmatmul.mubr.f32.gmra.mrb[0].mxu0 %v4417
        %v4511 = vpop.f32.mrb[0].mxu0
        %v4512 = vadd.f32 0.0, %v4511
        %v4513 = vpop.f32.mrb[0].mxu0
        %4514 = vmatprep.mubr.f32.mxu0 0.0
        %4515 = vmatmul.mubr.f32.gmra.mrb[0].mxu0 %v4420
        %v4516 = vpop.f32.mrb[0].mxu0
        %v4517 = vadd.f32 0.0, %v4516
        %v4518 = vpop.f32.mrb[0].mxu0
        %4519 = vmatprep.mubr.f32.mxu0 0.0
        %4520 = vmatmul.mubr.f32.gmra.mrb[0].mxu0 %v4423
        %v4521 = vpop.f32.mrb[0].mxu0
        %v4522 = vadd.f32 0.0, %v4521
        %v4523 = vpop.f32.mrb[0].mxu0
        %4524 = vmatprep.mubr.f32.mxu0 0.0
        %4525 = vmatmul.mubr.f32.gmra.mrb[0].mxu0 %v4426
        %v4526 = vpop.f32.mrb[0].mxu0
        %v4527 = vadd.f32 0.0, %v4526
        %v4528 = vpop.f32.mrb[0].mxu0
        %4529 = vmatprep.mubr.f32.mxu0 0.0
        %4530 = vmatmul.mubr.f32.gmra.mrb[0].mxu0 %v4429
        %v4531 = vpop.f32.mrb[0].mxu0
        %v4532 = vadd.f32 0.0, %v4531
        %v4533 = vpop.f32.mrb[0].mxu0
        %4534 = vmatprep.mubr.f32.mxu0 0.0
        %4535 = vmatmul.mubr.f32.gmra.mrb[0].mxu0 %v4432
        %v4536 = vpop.f32.mrb[0].mxu0
        %v4537 = vadd.f32 0.0, %v4536
        %v4538 = vpop.f32.mrb[0].mxu0
        %4539 = vmatprep.mubr.f32.mxu0 0.0
        %4540 = vmatmul.mubr.f32.gmra.mrb[0].mxu0 %v4435
        %v4541 = vpop.f32.mrb[0].mxu0
        %v4542 = vadd.f32 0.0, %v4541
        %v4543 = vpop.f32.mrb[0].mxu0
        %4544 = vdwg.mxu0
        %v4545 = vadd.f32 %v4363, %v4507
        %v4546 = vadd.f32 %v4368, %v4512
        %v4547 = vadd.f32 %v4373, %v4517
        %v4548 = vadd.f32 %v4378, %v4522
        %v4549 = vadd.f32 %v4383, %v4527
        %v4550 = vadd.f32 %v4388, %v4532
        %v4551 = vadd.f32 %v4393, %v4537
        %v4552 = vadd.f32 %v4398, %v4542
        %v4553 = vld [vmem:[%s9] sm:$0x1]
        %v4555 = vlaneseq
        %v4556 = vshrl.u32 %v4555, 7
        %v4557 = vsub.s32 0, %v4556
        %v4558 = vrot.slane %v4553, %v4557
        %v4560 = vadd.f32 %v4545, %v4558
        %v4561 = vadd.f32 %v4546, %v4558
        %v4562 = vadd.f32 %v4547, %v4558
        %v4563 = vadd.f32 %v4548, %v4558
        %v4564 = vadd.f32 %v4549, %v4558
        %v4565 = vadd.f32 %v4550, %v4558
        %v4566 = vadd.f32 %v4551, %v4558
        %v4567 = vadd.f32 %v4552, %v4558
        %v4568 = vmax.f32 %v4560, 0.0
        %v4569 = vmax.f32 %v4561, 0.0
        %v4570 = vmax.f32 %v4562, 0.0
        %v4571 = vmax.f32 %v4563, 0.0
        %v4572 = vmax.f32 %v4564, 0.0
        %v4573 = vmax.f32 %v4565, 0.0
        %v4574 = vmax.f32 %v4566, 0.0
        %v4575 = vmax.f32 %v4567, 0.0
        %vm4576 = vcmask 277504
        %4577 = vst.msk [vmem:[#allocation6] sm:$0xff] %vm4576, %v4568
        %4578 = vst.msk [vmem:[#allocation6 + $0x8] sm:$0xff] %vm4576, %v4569
        %4579 = vst.msk [vmem:[#allocation6 + $0x10] sm:$0xff] %vm4576, %v4570
        %4580 = vst.msk [vmem:[#allocation6 + $0x18] sm:$0xff] %vm4576, %v4571
        %4581 = vst.msk [vmem:[#allocation6 + $0x20] sm:$0xff] %vm4576, %v4572
        %4582 = vst.msk [vmem:[#allocation6 + $0x28] sm:$0xff] %vm4576, %v4573
        %4583 = vst.msk [vmem:[#allocation6 + $0x30] sm:$0xff] %vm4576, %v4574
        %vm4584 = vcmask 271360
        %4585 = vst.msk [vmem:[#allocation6 + $0x38] sm:$0x3] %vm4584, %v4575
        %v4586 = vld [vmem:[#allocation6] ss:$4 sm:$0x7f]
        %s4587 = scalar_lea.vmem [#allocation6], 1
        %v4588 = vld [vmem:[%s4587] ss:$4 sm:$0x7f]
        %v4589 = vmax.f32 %v4586, %v4588
        %s4590 = scalar_lea.vmem [#allocation6], 2
        %v4591 = vld [vmem:[%s4590] ss:$4 sm:$0x7f]
        %v4592 = vmax.f32 %v4589, %v4591
        %s4593 = scalar_lea.vmem [#allocation6], 3
        %v4594 = vld [vmem:[%s4593] ss:$4 sm:$0x7f]
        %v4595 = vmax.f32 %v4592, %v4594
        %vm4596 = vcmask 276480
        %4597 = vst.msk [vmem:[#allocation7] sm:$0x7f] %vm4596, %v4595
        %s4598 = scalar_lea.vmem [#allocation6], 30
        %v4599 = vld [vmem:[%s4598] ss:$4 sm:$0x7f]
        %s4600 = scalar_lea.vmem [#allocation6], 31
        %v4601 = vld [vmem:[%s4600] ss:$4 sm:$0x7f]
        %v4602 = vmax.f32 %v4599, %v4601
        %s4603 = scalar_lea.vmem [#allocation6], 32
        %v4604 = vld [vmem:[%s4603] ss:$4 sm:$0x7f]
        %v4605 = vmax.f32 %v4602, %v4604
        %s4606 = scalar_lea.vmem [#allocation6], 33
        %v4607 = vld [vmem:[%s4606] ss:$4 sm:$0x7f]
        %v4608 = vmax.f32 %v4605, %v4607
        %4609 = vst.msk [vmem:[#allocation7 + $0x7] sm:$0x7f] %vm4596, %v4608
        %v4610 = vld [vmem:[#allocation7] sm:$0xff]
        %v4611 = vld [vmem:[#allocation7 + $0x8] sm:$0xf]
        %v4612 = vld [vmem:[%s4] sm:$0xff]
        %v4613 = vld [vmem:[%s4 + $0x8] sm:$0xff]
        %v4614 = vld [vmem:[%s4 + $0x10] sm:$0xff]
        %v4615 = vld [vmem:[%s4 + $0x18] sm:$0xff]
        %v4616 = vld [vmem:[%s4 + $0x20] sm:$0x3]
        %v4617 = vld [vmem:[#allocation7 + $0x1] sm:$0xff]
        %v4618 = vld [vmem:[#allocation7 + $0x9] sm:$0xf]
        %s4619 = scalar_lea.vmem %s4, 40
        %v4620 = vld [vmem:[%s4619] sm:$0xff]
        %v4621 = vld [vmem:[%s4619 + $0x8] sm:$0xff]
        %v4622 = vld [vmem:[%s4619 + $0x10] sm:$0xff]
        %v4623 = vld [vmem:[%s4619 + $0x18] sm:$0xff]
        %v4624 = vld [vmem:[%s4619 + $0x20] sm:$0x3]
        %v4626 = vsel %vm4576, %v4617, 0
        %v4629 = vsel %vm4576, %v4618, 0
        %vm4631 = vcmask 1041408
        %v4633 = vsel %vm4631, %v4624, 0
        %4635 = vmatprep.subr.mxu0 0.0
        %4636 = vmatpush1.msra.mxu0 %v4620
        %4637 = vmatprep.subr.mxu0 0.0
        %4638 = vmatpush1.msra.mxu0 %v4621
        %4639 = vmatprep.subr.mxu0 0.0
        %4640 = vmatpush1.msra.mxu0 %v4622
        %4641 = vmatprep.subr.mxu0 0.0
        %4642 = vmatpush1.msra.mxu0 %v4623
        %4643 = vmatprep.subr.mxu0 0.0
        %4644 = vmatpush1.msra.mxu0 %v4633
        %4645 = vmatprep.subr.mxu0 0.0
        %4646 = vmatpush1.msra.mxu0 0.0
        %4647 = vmatprep.subr.mxu0 0.0
        %4648 = vmatpush1.msra.mxu0 0.0
        %4649 = vmatprep.subr.mxu0 0.0
        %4650 = vmatpush1.msra.mxu0 0.0
        %4651 = vmatprep.subr.mxu0 0.0
        %4652 = vmatpush1.msra.mxu0 0.0
        %4653 = vmatprep.subr.mxu0 0.0
        %4654 = vmatpush1.msra.mxu0 0.0
        %4655 = vmatprep.subr.mxu0 0.0
        %4656 = vmatpush1.msra.mxu0 0.0
        %4657 = vmatprep.subr.mxu0 0.0
        %4658 = vmatpush1.msra.mxu0 0.0
        %4659 = vmatprep.subr.mxu0 0.0
        %4660 = vmatpush1.msra.mxu0 0.0
        %4661 = vmatprep.subr.mxu0 0.0
        %4662 = vmatpush1.msra.mxu0 0.0
        %4663 = vmatprep.subr.mxu0 0.0
        %4664 = vmatpush1.msra.mxu0 0.0
        %4665 = vmatprep.subr.mxu0 0.0
        %4666 = vmatpush1.msra.mxu0 0.0
        %4667 = vmatprep.subr.mxu0 0.0
        %4668 = vmatpush1.msra.mxu0 0.0
        %4669 = vmatprep.subr.mxu0 0.0
        %4670 = vmatpush1.msra.mxu0 0.0
        %4671 = vmatprep.subr.mxu0 0.0
        %4672 = vmatpush1.msra.mxu0 0.0
        %4673 = vmatprep.subr.mxu0 0.0
        %4674 = vmatpush1.msra.mxu0 0.0
        %4675 = vmatprep.subr.mxu0 0.0
        %4676 = vmatpush1.msra.mxu0 0.0
        %4677 = vmatprep.subr.mxu0 0.0
        %4678 = vmatpush1.msra.mxu0 0.0
        %4679 = vmatprep.subr.mxu0 0.0
        %4680 = vmatpush1.msra.mxu0 0.0
        %4681 = vmatprep.subr.mxu0 0.0
        %4682 = vmatpush1.msra.mxu0 0.0
        %4683 = vmatprep.subr.mxu0 0.0
        %4684 = vmatpush1.msra.mxu0 0.0
        %4685 = vmatprep.subr.mxu0 0.0
        %4686 = vmatpush1.msra.mxu0 0.0
        %4687 = vmatprep.subr.mxu0 0.0
        %4688 = vmatpush1.msra.mxu0 0.0
        %4689 = vmatprep.subr.mxu0 0.0
        %4690 = vmatpush1.msra.mxu0 0.0
        %4691 = vmatprep.subr.mxu0 0.0
        %4692 = vmatpush1.msra.mxu0 0.0
        %4693 = vmatprep.subr.mxu0 0.0
        %4694 = vmatpush1.msra.mxu0 0.0
        %4695 = vmatprep.subr.mxu0 0.0
        %4696 = vmatpush1.msra.mxu0 0.0
        %4697 = vmatprep.subr.mxu0 0.0
        %4698 = vmatpush1.msra.mxu0 0.0
        %4699 = vmatprep.mubr.f32.mxu0 0.0
        %4700 = vmatmul.mubr.f32.gmra.mrb[0].mxu0 %v4626
        %v4701 = vpop.f32.mrb[0].mxu0
        %v4702 = vadd.f32 0.0, %v4701
        %v4703 = vpop.f32.mrb[0].mxu0
        %4704 = vmatprep.mubr.f32.mxu0 0.0
        %4705 = vmatmul.mubr.f32.gmra.mrb[0].mxu0 %v4629
        %v4706 = vpop.f32.mrb[0].mxu0
        %v4707 = vadd.f32 0.0, %v4706
        %v4708 = vpop.f32.mrb[0].mxu0
        %4709 = vdwg.mxu0
        %v4711 = vsel %vm4576, %v4610, 0
        %v4714 = vsel %vm4576, %v4611, 0
        %v4717 = vsel %vm4631, %v4616, 0
        %4719 = vmatprep.subr.mxu0 0.0
        %4720 = vmatpush1.msra.mxu0 %v4612
        %4721 = vmatprep.subr.mxu0 0.0
        %4722 = vmatpush1.msra.mxu0 %v4613
        %4723 = vmatprep.subr.mxu0 0.0
        %4724 = vmatpush1.msra.mxu0 %v4614
        %4725 = vmatprep.subr.mxu0 0.0
        %4726 = vmatpush1.msra.mxu0 %v4615
        %4727 = vmatprep.subr.mxu0 0.0
        %4728 = vmatpush1.msra.mxu0 %v4717
        %4729 = vmatprep.subr.mxu0 0.0
        %4730 = vmatpush1.msra.mxu0 0.0
        %4731 = vmatprep.subr.mxu0 0.0
        %4732 = vmatpush1.msra.mxu0 0.0
        %4733 = vmatprep.subr.mxu0 0.0
        %4734 = vmatpush1.msra.mxu0 0.0
        %4735 = vmatprep.subr.mxu0 0.0
        %4736 = vmatpush1.msra.mxu0 0.0
        %4737 = vmatprep.subr.mxu0 0.0
        %4738 = vmatpush1.msra.mxu0 0.0
        %4739 = vmatprep.subr.mxu0 0.0
        %4740 = vmatpush1.msra.mxu0 0.0
        %4741 = vmatprep.subr.mxu0 0.0
        %4742 = vmatpush1.msra.mxu0 0.0
        %4743 = vmatprep.subr.mxu0 0.0
        %4744 = vmatpush1.msra.mxu0 0.0
        %4745 = vmatprep.subr.mxu0 0.0
        %4746 = vmatpush1.msra.mxu0 0.0
        %4747 = vmatprep.subr.mxu0 0.0
        %4748 = vmatpush1.msra.mxu0 0.0
        %4749 = vmatprep.subr.mxu0 0.0
        %4750 = vmatpush1.msra.mxu0 0.0
        %4751 = vmatprep.subr.mxu0 0.0
        %4752 = vmatpush1.msra.mxu0 0.0
        %4753 = vmatprep.subr.mxu0 0.0
        %4754 = vmatpush1.msra.mxu0 0.0
        %4755 = vmatprep.subr.mxu0 0.0
        %4756 = vmatpush1.msra.mxu0 0.0
        %4757 = vmatprep.subr.mxu0 0.0
        %4758 = vmatpush1.msra.mxu0 0.0
        %4759 = vmatprep.subr.mxu0 0.0
        %4760 = vmatpush1.msra.mxu0 0.0
        %4761 = vmatprep.subr.mxu0 0.0
        %4762 = vmatpush1.msra.mxu0 0.0
        %4763 = vmatprep.subr.mxu0 0.0
        %4764 = vmatpush1.msra.mxu0 0.0
        %4765 = vmatprep.subr.mxu0 0.0
        %4766 = vmatpush1.msra.mxu0 0.0
        %4767 = vmatprep.subr.mxu0 0.0
        %4768 = vmatpush1.msra.mxu0 0.0
        %4769 = vmatprep.subr.mxu0 0.0
        %4770 = vmatpush1.msra.mxu0 0.0
        %4771 = vmatprep.subr.mxu0 0.0
        %4772 = vmatpush1.msra.mxu0 0.0
        %4773 = vmatprep.subr.mxu0 0.0
        %4774 = vmatpush1.msra.mxu0 0.0
        %4775 = vmatprep.subr.mxu0 0.0
        %4776 = vmatpush1.msra.mxu0 0.0
        %4777 = vmatprep.subr.mxu0 0.0
        %4778 = vmatpush1.msra.mxu0 0.0
        %4779 = vmatprep.subr.mxu0 0.0
        %4780 = vmatpush1.msra.mxu0 0.0
        %4781 = vmatprep.subr.mxu0 0.0
        %4782 = vmatpush1.msra.mxu0 0.0
        %4783 = vmatprep.mubr.f32.mxu0 0.0
        %4784 = vmatmul.mubr.f32.gmra.mrb[0].mxu0 %v4711
        %v4785 = vpop.f32.mrb[0].mxu0
        %v4786 = vadd.f32 %v4702, %v4785
        %v4787 = vpop.f32.mrb[0].mxu0
        %4788 = vmatprep.mubr.f32.mxu0 0.0
        %4789 = vmatmul.mubr.f32.gmra.mrb[0].mxu0 %v4714
        %v4790 = vpop.f32.mrb[0].mxu0
        %v4791 = vadd.f32 %v4707, %v4790
        %v4792 = vpop.f32.mrb[0].mxu0
        %4793 = vdwg.mxu0
        %v4794 = vld [vmem:[#allocation7 + $0x2] sm:$0xff]
        %v4795 = vld [vmem:[#allocation7 + $0xa] sm:$0xf]
        %s4796 = scalar_lea.vmem %s4, 80
        %v4797 = vld [vmem:[%s4796] sm:$0xff]
        %v4798 = vld [vmem:[%s4796 + $0x8] sm:$0xff]
        %v4799 = vld [vmem:[%s4796 + $0x10] sm:$0xff]
        %v4800 = vld [vmem:[%s4796 + $0x18] sm:$0xff]
        %v4801 = vld [vmem:[%s4796 + $0x20] sm:$0x3]
        %v4803 = vsel %vm4576, %v4794, 0
        %v4806 = vsel %vm4576, %v4795, 0
        %v4809 = vsel %vm4631, %v4801, 0
        %4811 = vmatprep.subr.mxu0 0.0
        %4812 = vmatpush1.msra.mxu0 %v4797
        %4813 = vmatprep.subr.mxu0 0.0
        %4814 = vmatpush1.msra.mxu0 %v4798
        %4815 = vmatprep.subr.mxu0 0.0
        %4816 = vmatpush1.msra.mxu0 %v4799
        %4817 = vmatprep.subr.mxu0 0.0
        %4818 = vmatpush1.msra.mxu0 %v4800
        %4819 = vmatprep.subr.mxu0 0.0
        %4820 = vmatpush1.msra.mxu0 %v4809
        %4821 = vmatprep.subr.mxu0 0.0
        %4822 = vmatpush1.msra.mxu0 0.0
        %4823 = vmatprep.subr.mxu0 0.0
        %4824 = vmatpush1.msra.mxu0 0.0
        %4825 = vmatprep.subr.mxu0 0.0
        %4826 = vmatpush1.msra.mxu0 0.0
        %4827 = vmatprep.subr.mxu0 0.0
        %4828 = vmatpush1.msra.mxu0 0.0
        %4829 = vmatprep.subr.mxu0 0.0
        %4830 = vmatpush1.msra.mxu0 0.0
        %4831 = vmatprep.subr.mxu0 0.0
        %4832 = vmatpush1.msra.mxu0 0.0
        %4833 = vmatprep.subr.mxu0 0.0
        %4834 = vmatpush1.msra.mxu0 0.0
        %4835 = vmatprep.subr.mxu0 0.0
        %4836 = vmatpush1.msra.mxu0 0.0
        %4837 = vmatprep.subr.mxu0 0.0
        %4838 = vmatpush1.msra.mxu0 0.0
        %4839 = vmatprep.subr.mxu0 0.0
        %4840 = vmatpush1.msra.mxu0 0.0
        %4841 = vmatprep.subr.mxu0 0.0
        %4842 = vmatpush1.msra.mxu0 0.0
        %4843 = vmatprep.subr.mxu0 0.0
        %4844 = vmatpush1.msra.mxu0 0.0
        %4845 = vmatprep.subr.mxu0 0.0
        %4846 = vmatpush1.msra.mxu0 0.0
        %4847 = vmatprep.subr.mxu0 0.0
        %4848 = vmatpush1.msra.mxu0 0.0
        %4849 = vmatprep.subr.mxu0 0.0
        %4850 = vmatpush1.msra.mxu0 0.0
        %4851 = vmatprep.subr.mxu0 0.0
        %4852 = vmatpush1.msra.mxu0 0.0
        %4853 = vmatprep.subr.mxu0 0.0
        %4854 = vmatpush1.msra.mxu0 0.0
        %4855 = vmatprep.subr.mxu0 0.0
        %4856 = vmatpush1.msra.mxu0 0.0
        %4857 = vmatprep.subr.mxu0 0.0
        %4858 = vmatpush1.msra.mxu0 0.0
        %4859 = vmatprep.subr.mxu0 0.0
        %4860 = vmatpush1.msra.mxu0 0.0
        %4861 = vmatprep.subr.mxu0 0.0
        %4862 = vmatpush1.msra.mxu0 0.0
        %4863 = vmatprep.subr.mxu0 0.0
        %4864 = vmatpush1.msra.mxu0 0.0
        %4865 = vmatprep.subr.mxu0 0.0
        %4866 = vmatpush1.msra.mxu0 0.0
        %4867 = vmatprep.subr.mxu0 0.0
        %4868 = vmatpush1.msra.mxu0 0.0
        %4869 = vmatprep.subr.mxu0 0.0
        %4870 = vmatpush1.msra.mxu0 0.0
        %4871 = vmatprep.subr.mxu0 0.0
        %4872 = vmatpush1.msra.mxu0 0.0
        %4873 = vmatprep.subr.mxu0 0.0
        %4874 = vmatpush1.msra.mxu0 0.0
        %4875 = vmatprep.mubr.f32.mxu0 0.0
        %4876 = vmatmul.mubr.f32.gmra.mrb[0].mxu0 %v4803
        %v4877 = vpop.f32.mrb[0].mxu0
        %v4878 = vadd.f32 0.0, %v4877
        %v4879 = vpop.f32.mrb[0].mxu0
        %4880 = vmatprep.mubr.f32.mxu0 0.0
        %4881 = vmatmul.mubr.f32.gmra.mrb[0].mxu0 %v4806
        %v4882 = vpop.f32.mrb[0].mxu0
        %v4883 = vadd.f32 0.0, %v4882
        %v4884 = vpop.f32.mrb[0].mxu0
        %4885 = vdwg.mxu0
        %v4886 = vadd.f32 %v4786, %v4878
        %v4887 = vadd.f32 %v4791, %v4883
        %v4888 = vld [vmem:[%s10] sm:$0x1]
        %v4890 = vlaneseq
        %v4891 = vshrl.u32 %v4890, 7
        %v4892 = vsub.s32 0, %v4891
        %v4893 = vrot.slane %v4888, %v4892
        %v4895 = vadd.f32 %v4886, %v4893
        %v4896 = vadd.f32 %v4887, %v4893
        %v4897 = vmax.f32 %v4895, 0.0
        %v4898 = vmax.f32 %v4896, 0.0
        %vm4899 = vcmask 273408
        %v4900 = vsel %vm4899, %v4897, -inf
        %v4901 = vrot.slane %v4900, 4
        %v4902 = vmax.f32 %v4900, %v4901
        %v4903 = vrot.slane %v4902, 2
        %v4904 = vmax.f32 %v4902, %v4903
        %v4905 = vrot.slane %v4904, 1
        %v4906 = vmax.f32 %v4904, %v4905
        %vm4907 = vcmask 270336
        %4908 = vst.msk [vmem:[#allocation8] sm:$0x1] %vm4907, %v4906
        %vm4909 = vcmask 277511
        %v4910 = vsel %vm4909, %v4897, -inf
        %vm4911 = vcmask 272384
        %v4912 = vsel %vm4911, %v4898, -inf
        %v4913 = vmax.f32 %v4910, %v4912
        %v4914 = vrot.slane %v4913, 4
        %v4915 = vmax.f32 %v4913, %v4914
        %v4916 = vrot.slane %v4915, 2
        %v4917 = vmax.f32 %v4915, %v4916
        %v4918 = vrot.slane %v4917, 1
        %v4919 = vmax.f32 %v4917, %v4918
        %4920 = vst.msk [vmem:[#allocation8 + $0x1] sm:$0x1] %vm4907, %v4919
        %v4921 = vld [vmem:[#allocation8] sm:$0x3]
        %v4922 = vld [vmem:[%s5] sm:$0xff]
        %v4923 = vld [vmem:[%s5 + $0x8] sm:$0xff]
        %v4924 = vld [vmem:[%s5 + $0x10] sm:$0xff]
        %v4925 = vld [vmem:[%s5 + $0x18] sm:$0xff]
        %v4926 = vld [vmem:[%s5 + $0x20] sm:$0x3]
        %v4927 = vld [vmem:[%s6] sm:$0x1]
        %v4929 = vlaneseq
        %v4930 = vshrl.u32 %v4929, 7
        %v4931 = vsub.s32 0, %v4930
        %v4932 = vrot.slane %v4927, %v4931
        %v4935 = vsel %vm4576, %v4921, 0
        %v4938 = vsel %vm4631, %v4926, 0
        %4940 = vmatprep.subr.mxu0 0.0
        %4941 = vmatpush1.msra.mxu0 %v4922
        %4942 = vmatprep.subr.mxu0 0.0
        %4943 = vmatpush1.msra.mxu0 %v4923
        %4944 = vmatprep.subr.mxu0 0.0
        %4945 = vmatpush1.msra.mxu0 %v4924
        %4946 = vmatprep.subr.mxu0 0.0
        %4947 = vmatpush1.msra.mxu0 %v4925
        %4948 = vmatprep.subr.mxu0 0.0
        %4949 = vmatpush1.msra.mxu0 %v4938
        %4950 = vmatprep.subr.mxu0 0.0
        %4951 = vmatpush1.msra.mxu0 0.0
        %4952 = vmatprep.subr.mxu0 0.0
        %4953 = vmatpush1.msra.mxu0 0.0
        %4954 = vmatprep.subr.mxu0 0.0
        %4955 = vmatpush1.msra.mxu0 0.0
        %4956 = vmatprep.subr.mxu0 0.0
        %4957 = vmatpush1.msra.mxu0 0.0
        %4958 = vmatprep.subr.mxu0 0.0
        %4959 = vmatpush1.msra.mxu0 0.0
        %4960 = vmatprep.subr.mxu0 0.0
        %4961 = vmatpush1.msra.mxu0 0.0
        %4962 = vmatprep.subr.mxu0 0.0
        %4963 = vmatpush1.msra.mxu0 0.0
        %4964 = vmatprep.subr.mxu0 0.0
        %4965 = vmatpush1.msra.mxu0 0.0
        %4966 = vmatprep.subr.mxu0 0.0
        %4967 = vmatpush1.msra.mxu0 0.0
        %4968 = vmatprep.subr.mxu0 0.0
        %4969 = vmatpush1.msra.mxu0 0.0
        %4970 = vmatprep.subr.mxu0 0.0
        %4971 = vmatpush1.msra.mxu0 0.0
        %4972 = vmatprep.subr.mxu0 0.0
        %4973 = vmatpush1.msra.mxu0 0.0
        %4974 = vmatprep.subr.mxu0 0.0
        %4975 = vmatpush1.msra.mxu0 0.0
        %4976 = vmatprep.subr.mxu0 0.0
        %4977 = vmatpush1.msra.mxu0 0.0
        %4978 = vmatprep.subr.mxu0 0.0
        %4979 = vmatpush1.msra.mxu0 0.0
        %4980 = vmatprep.subr.mxu0 0.0
        %4981 = vmatpush1.msra.mxu0 0.0
        %4982 = vmatprep.subr.mxu0 0.0
        %4983 = vmatpush1.msra.mxu0 0.0
        %4984 = vmatprep.subr.mxu0 0.0
        %4985 = vmatpush1.msra.mxu0 0.0
        %4986 = vmatprep.subr.mxu0 0.0
        %4987 = vmatpush1.msra.mxu0 0.0
        %4988 = vmatprep.subr.mxu0 0.0
        %4989 = vmatpush1.msra.mxu0 0.0
        %4990 = vmatprep.subr.mxu0 0.0
        %4991 = vmatpush1.msra.mxu0 0.0
        %4992 = vmatprep.subr.mxu0 0.0
        %4993 = vmatpush1.msra.mxu0 0.0
        %4994 = vmatprep.subr.mxu0 0.0
        %4995 = vmatpush1.msra.mxu0 0.0
        %4996 = vmatprep.subr.mxu0 0.0
        %4997 = vmatpush1.msra.mxu0 0.0
        %4998 = vmatprep.subr.mxu0 0.0
        %4999 = vmatpush1.msra.mxu0 0.0
        %5000 = vmatprep.subr.mxu0 0.0
        %5001 = vmatpush1.msra.mxu0 0.0
        %5002 = vmatprep.subr.mxu0 0.0
        %5003 = vmatpush1.msra.mxu0 0.0
        %5004 = vmatprep.mubr.f32.mxu0 0.0
        %5005 = vmatmul.mubr.f32.gmra.mrb[0].mxu0 %v4935
        %v5006 = vpop.f32.mrb[0].mxu0
        %v5007 = vadd.f32 %v4932, %v5006
        %v5008 = vpop.f32.mrb[0].mxu0
        %5009 = vdwg.mxu0
        %v5010 = vsel %vm4631, %v5007, -inf
        %5011 = vmax.xlane.f32.xlu0 %v5010
        %v5012 = vpop.xlane.xlu0 %5011
        %v5013 = vsub.f32 %v5007, %v5012
        %v5014 = vmul.f32 %v5013, 1.442695
        %v5015 = vpow.pop %v5014
        %v5016 = vsel %vm4631, %v5015, 0.0
        %5017 = vadd.xlane.f32.xlu0 %v5016
        %v5018 = vpop.xlane.xlu0 %5017
        %v5019 = vlog2.pop %v5018
        %v5020 = vmul.f32 %v5019, 0.6931472
        %v5021 = vsub.f32 %v5013, %v5020
        %5022 = vst [vmem:[%s379] sm:$0x3] %v5021
        %s5023 = sand.u32 %s269, 1
        %s5024 = scalar_lea.sflag [#allocation10], %s5023
        %s5025 = sand.u32 %s269, 1
        %s5026 = smul.addr %s5025, 2
        %s5027 = scalar_lea.vmem [#allocation9], %s5026
        // Predicated region
        $region65: #{tpu_custom_call.1} parent=63 // pred_check
          %p5028 = pneg %p279
        $region66: #{tpu_custom_call.1} parent=63 // pred_check_branch
          %5030 = sbr.rel (%p5028) target = $region68
        $region67: #{tpu_custom_call.1} parent=63 // pred_region
          %s5032 = ssub.s32 32, 32
          %5033 = vsyncadd %s5024, %s5032
          %s5034 = smul.addr %s25, 32
          %s5035 = scalar_lea.hbm %s11, %s5034
          %s5037 = sshll.u32 %s5027, 4
          %s5038 = int_to_ptr.vmem [resolvable:$true] %s5037
          %5040 = dma.vmem_to_hbm [thread:$0]  %s5038, 32, %s5035, %s5024
        $region68: #{tpu_custom_call.1} parent=63 // pred_fallthru
          _
      $region64: #{tpu_custom_call.1} parent=5 // pred_fallthru
        _
      %p5041 = scmp.le.s32.totalorder 2, %s20
      // Predicated region
      $region69: #{tpu_custom_call.1} parent=5 // pred_check
        %p5042 = pneg %p5041
      $region70: #{tpu_custom_call.1} parent=5 // pred_check_branch
        %5044 = sbr.rel (%p5042) target = $region72
      $region71: #{tpu_custom_call.1} parent=5 // pred_region
        %s5045 = ssub.s32 %s20, 2
        // Predicated region
        $region73: #{tpu_custom_call.1} parent=71 // pred_check
          %p5046 = pneg %p285
        $region74: #{tpu_custom_call.1} parent=71 // pred_check_branch
          %5048 = sbr.rel (%p5046) target = $region76
        $region75: #{tpu_custom_call.1} parent=71 // pred_region
          %s5049 = sand.u32 %s270, 1
          %s5050 = scalar_lea.sflag [#allocation10], %s5049
          %s5051 = sand.u32 %s270, 1
          %s5052 = smul.addr %s5051, 2
          %s5053 = scalar_lea.vmem [#allocation9], %s5052
          %5054 = dma.done %s5050, 32
        $region76: #{tpu_custom_call.1} parent=71 // pred_fallthru
          _
      $region72: #{tpu_custom_call.1} parent=5 // pred_fallthru
        _
    $region6: #{tpu_custom_call.1} parent=1 // loop_footer
      %s24 = sadd.s32 1, %s20
    $region7: #{tpu_custom_call.1} parent=1 // loop_footer_branch
      %19 = sbr.rel target = $region3
    $region8: #{tpu_custom_call.1} parent=1 // loop_exit
      _
    %5055 = vsyncpa [#allocation10], 1
    %s5056 = scalar_lea.sflag [#allocation10], 1
    %5057 = vsyncpa %s5056, 1

</llo_original>
